<compile_context>
chip_gen: v7x
topology: tpu7x:2x2x1
jax: 0.10.0
libtpu: 0.0.40
codegen_flags: <defaults>
</compile_context>

<pallas_src>
import math

import jax
import jax.numpy as jnp
from jax.experimental import pallas as pl
from jax.experimental.pallas import tpu as pltpu

# ---------------- model hyper-parameters (small, consistent with the module) --
B = 2            # batch
S = 8            # sequence length
D = 32           # n_units (model dim)
N_HEADS = 4      # heads (D % N_HEADS == 0)
D_K = D // N_HEADS
D_FF = 64        # MLP hidden
V = 64           # vocab_size
V_PAD = 128      # vocab padded to a full 128-lane tile for lane-dense stores
N_BLOCKS = 2     # transformer_stack depth
BS = B * S


# ---------------- Pallas kernel ------------------------------------------------
def _kernel_layer_norm(x, g, b, eps=1e-6):
    # annotated-transformer LayerNorm: a * (x - mean) / (std + eps) + b,
    # torch.std uses the unbiased estimate (ddof = 1).
    mean = jnp.mean(x, axis=-1, keepdims=True)
    c = x - mean
    var = jnp.sum(c * c, axis=-1, keepdims=True) * (1.0 / (x.shape[-1] - 1))
    inv = pl.reciprocal(jnp.sqrt(var) + eps, approx=True)       # EUP divide
    return g * (c * inv) + b


def transformer_kernel(x_ref, maskb_ref, wqkv_ref, wo_ref, w1_ref, w2_ref,
                       vec_ref, b1_ref, lnf_ref, wout_ref, bout_ref, out_ref):
    f32 = jnp.float32
    x = x_ref[...]                       # (B*S, D)
    maskb = maskb_ref[...]               # (B*H, S, S), additive: 0 / -1e9
    scale = 1.0 / math.sqrt(D_K)

    for blk in range(N_BLOCKS):          # unrolled at trace time
        wqkv = wqkv_ref[blk]             # (D, 3D) fused [Wq|Wk|Wv]
        wo = wo_ref[blk]                 # (D, D)
        w1 = w1_ref[blk]                 # (D, D_FF)
        w2 = w2_ref[blk]                 # (D_FF, D)
        vec = vec_ref[blk]               # (9, D): bq bk bv bo b2 g1 be1 g2 be2
        bq, bk, bv, bo = vec[0:1], vec[1:2], vec[2:3], vec[3:4]
        b2 = vec[4:5]
        g1, be1, g2, be2 = vec[5:6], vec[6:7], vec[7:8], vec[8:9]
        b1 = b1_ref[blk]                 # (1, D_FF)

        # ---- sublayer 1: x + MHA(LN(x)) --------------------------------------
        xn = _kernel_layer_norm(x, g1, be1)
        qkv = jnp.dot(xn, wqkv, preferred_element_type=f32)     # one fused matmul
        q = qkv[:, :D] + bq
        k = qkv[:, D:2 * D] + bk
        v = qkv[:, 2 * D:] + bv

        # head-major (B*H, S, D_K) views built from static slices
        def heads(t):
            return jnp.stack(
                [t[b * S:(b + 1) * S, h * D_K:(h + 1) * D_K]
                 for b in range(B) for h in range(N_HEADS)], axis=0)

        qh, kh, vh = heads(q), heads(k), heads(v)

        s = jnp.einsum('nqd,nkd->nqk', qh, kh,
                       preferred_element_type=f32) * scale + maskb
        m = jnp.max(s, axis=-1, keepdims=True)
        e = jnp.exp(s - m)
        p = e * pl.reciprocal(jnp.sum(e, axis=-1, keepdims=True), approx=True)
        ctx = jnp.einsum('nqk,nkd->nqd', p, vh, preferred_element_type=f32)

        # reassemble (B*S, D): heads along lanes, examples along sublanes
        ctx2d = jnp.concatenate(
            [jnp.concatenate([ctx[b * N_HEADS + h] for h in range(N_HEADS)],
                             axis=-1)
             for b in range(B)], axis=0)
        x = x + jnp.dot(ctx2d, wo, preferred_element_type=f32) + bo

        # ---- sublayer 2: x + MLP(LN(x)) --------------------------------------
        xn = _kernel_layer_norm(x, g2, be2)
        h1 = jnp.maximum(jnp.dot(xn, w1, preferred_element_type=f32) + b1, 0.0)
        x = x + jnp.dot(h1, w2, preferred_element_type=f32) + b2

    # ---- final LayerNorm + output projection + log_softmax (padded vocab) ----
    lnf = lnf_ref[...]                                  # (2, D): gamma, beta
    xn = _kernel_layer_norm(x, lnf[0:1], lnf[1:2])
    logits = jnp.dot(xn, wout_ref[...], preferred_element_type=f32) + bout_ref[...]
    m = jnp.max(logits, axis=-1, keepdims=True)
    e = jnp.exp(logits - m)                             # pad columns underflow to 0
    lse = jnp.log(jnp.sum(e, axis=-1, keepdims=True)) + m
    out_ref[...] = logits - lse                         # (B*S, 128) lane-dense store


# ---------------- wrapper -------------------------------------------------------
def full_transformer_pallas(tokens, mask, params):
    # embedding gather + positional encoding: plain-JAX glue outside the kernel.
    x = params["emb"][tokens] * math.sqrt(D) + params["pe"][:S]
    x2 = x.reshape(BS, D).astype(jnp.float32)

    # additive mask bias expanded per head: (B*H, S, S) with 0 (attend) / -1e9
    mask_bias = (mask.astype(jnp.float32) - 1.0) * 1e9
    mask_bias = jnp.broadcast_to(mask_bias[:, None, :, :], (B, N_HEADS, S, S))
    mask_bias = mask_bias.reshape(B * N_HEADS, S, S)

    blocks = params["blocks"]
    wqkv_all = jnp.stack([jnp.concatenate([b_["wq"], b_["wk"], b_["wv"]], axis=1)
                          for b_ in blocks])                       # (NB, D, 3D)
    wo_all = jnp.stack([b_["wo"] for b_ in blocks])                # (NB, D, D)
    w1_all = jnp.stack([b_["w1"] for b_ in blocks])                # (NB, D, D_FF)
    w2_all = jnp.stack([b_["w2"] for b_ in blocks])                # (NB, D_FF, D)
    vec_all = jnp.stack([jnp.concatenate(
        [b_["bq"], b_["bk"], b_["bv"], b_["bo"], b_["b2"],
         b_["ln1_g"], b_["ln1_b"], b_["ln2_g"], b_["ln2_b"]], axis=0)
        for b_ in blocks])                                         # (NB, 9, D)
    b1_all = jnp.stack([b_["b1"] for b_ in blocks])                # (NB, 1, D_FF)
    lnf = jnp.concatenate([params["lnf_g"], params["lnf_b"]], axis=0)   # (2, D)

    # pad vocab 64 -> 128: zero weights, -1e30 bias in pad columns
    w_out_p = jnp.concatenate(
        [params["w_out"], jnp.zeros((D, V_PAD - V), jnp.float32)], axis=1)
    b_out_p = jnp.concatenate(
        [params["b_out"], jnp.full((1, V_PAD - V), -1e30, jnp.float32)], axis=1)

    vmem = pl.BlockSpec(memory_space=pltpu.MemorySpace.VMEM)
    out = pl.pallas_call(
        transformer_kernel,
        out_shape=jax.ShapeDtypeStruct((BS, V_PAD), jnp.float32),
        in_specs=[vmem] * 11,
        out_specs=vmem,
    )(x2, mask_bias, wqkv_all, wo_all, w1_all, w2_all,
      vec_all, b1_all, lnf, w_out_p, b_out_p)

    return out.reshape(B, S, V_PAD)[:, :, :V]


# ---------------- pure-JAX reference (correctness sanity check) -----------------
def _ref_layer_norm(x, g, b, eps=1e-6):
    mean = jnp.mean(x, axis=-1, keepdims=True)
    var = jnp.sum((x - mean) ** 2, axis=-1, keepdims=True) / (x.shape[-1] - 1)
    return g * (x - mean) / (jnp.sqrt(var) + eps) + b


def _ref_attention(x, mask, blk):
    q = jnp.dot(x, blk["wq"]) + blk["bq"]
    k = jnp.dot(x, blk["wk"]) + blk["bk"]
    v = jnp.dot(x, blk["wv"]) + blk["bv"]
    outs = []
    for h in range(N_HEADS):
        sl = slice(h * D_K, (h + 1) * D_K)
        s = jnp.dot(q[:, sl], k[:, sl].T) / math.sqrt(D_K)
        s = jnp.where(mask > 0, s, -1e9)
        p = jax.nn.softmax(s, axis=-1)
        outs.append(jnp.dot(p, v[:, sl]))
    o = jnp.concatenate(outs, axis=-1)
    return jnp.dot(o, blk["wo"]) + blk["bo"]


def full_transformer_ref(tokens, mask, params):
    x = params["emb"][tokens] * math.sqrt(D) + params["pe"][:S]
    x = x.astype(jnp.float32)

    def one(xb, mb):
        y = xb
        for blk in params["blocks"]:
            h = _ref_layer_norm(y, blk["ln1_g"], blk["ln1_b"])
            y = y + _ref_attention(h, mb, blk)
            h = _ref_layer_norm(y, blk["ln2_g"], blk["ln2_b"])
            ff = jax.nn.relu(jnp.dot(h, blk["w1"]) + blk["b1"])
            y = y + jnp.dot(ff, blk["w2"]) + blk["b2"]
        y = _ref_layer_norm(y, params["lnf_g"], params["lnf_b"])
        logits = jnp.dot(y, params["w_out"]) + params["b_out"]
        return jax.nn.log_softmax(logits, axis=-1)

    return jax.vmap(one)(x, mask)


# ---------------- deterministic parameter init ----------------------------------
def _linear(key, fan_in, fan_out):
    kw, kb = jax.random.split(key)
    bound = 1.0 / math.sqrt(fan_in)
    w = jax.random.uniform(kw, (fan_in, fan_out), jnp.float32, -bound, bound)
    b = jax.random.uniform(kb, (1, fan_out), jnp.float32, -bound, bound)
    return w, b


def _sinusoidal_pe(max_len, d):
    pos = jnp.arange(max_len, dtype=jnp.float32)[:, None]
    div = jnp.exp(jnp.arange(0, d, 2, dtype=jnp.float32) * (-math.log(10000.0) / d))
    pe = jnp.zeros((max_len, d), jnp.float32)
    pe = pe.at[:, 0::2].set(jnp.sin(pos * div))
    pe = pe.at[:, 1::2].set(jnp.cos(pos * div))
    return pe


def init_params(key):
    keys = jax.random.split(key, 3 + N_BLOCKS)
    params = {
        "emb": jax.random.normal(keys[0], (V, D), jnp.float32) * 0.1,
        "pe": _sinusoidal_pe(S, D),
        "lnf_g": jnp.ones((1, D), jnp.float32),
        "lnf_b": jnp.zeros((1, D), jnp.float32),
        "blocks": [],
    }
    w_out, b_out = _linear(keys[1], D, V)
    params["w_out"], params["b_out"] = w_out, b_out
    for i in range(N_BLOCKS):
        ks = jax.random.split(keys[3 + i], 6)
        wq, bq = _linear(ks[0], D, D)
        wk, bk = _linear(ks[1], D, D)
        wv, bv = _linear(ks[2], D, D)
        wo, bo = _linear(ks[3], D, D)
        w1, b1 = _linear(ks[4], D, D_FF)
        w2, b2 = _linear(ks[5], D_FF, D)
        params["blocks"].append(dict(
            wq=wq, bq=bq, wk=wk, bk=bk, wv=wv, bv=bv, wo=wo, bo=bo,
            ln1_g=jnp.ones((1, D), jnp.float32), ln1_b=jnp.zeros((1, D), jnp.float32),
            w1=w1, b1=b1, w2=w2, b2=b2,
            ln2_g=jnp.ones((1, D), jnp.float32), ln2_b=jnp.zeros((1, D), jnp.float32),
        ))
    return params


# ---------------- main ------------------------------------------------------------
if __name__ == "__main__":
    key = jax.random.PRNGKey(0)
    kp, kt = jax.random.split(key)
    params = init_params(kp)

    tokens = jax.random.randint(kt, (B, S), 0, V, dtype=jnp.int32)
    causal = jnp.tril(jnp.ones((S, S), jnp.float32))
    mask = jnp.broadcast_to(causal, (B, S, S))      # 1 = attend, 0 = masked

    out = jax.block_until_ready(full_transformer_pallas(tokens, mask, params))
    ref = jax.block_until_ready(full_transformer_ref(tokens, mask, params))

    assert out.shape == (B, S, V)
    assert bool(jnp.all(jnp.isfinite(out)))
    # tolerance slightly relaxed (1e-3 -> 2e-3) to absorb pl.reciprocal(approx=True)
    assert bool(jnp.allclose(out, ref, atol=2e-3, rtol=2e-3)), "mismatch vs reference"
    # log_softmax rows must sum to ~1 in prob space (pad columns contribute 0)
    assert bool(jnp.allclose(jnp.sum(jnp.exp(out), axis=-1), 1.0, atol=1e-4))

    print("KERNEL_OK")
</pallas_src>

<mosaic_0001>
module attributes {stable_mosaic.version = 11 : i64} {
  func.func @transformer_kernel(%arg0: memref<16x32xf32, #tpu.memory_space<vmem>>, %arg1: memref<8x8x8xf32, #tpu.memory_space<vmem>>, %arg2: memref<2x32x96xf32, #tpu.memory_space<vmem>>, %arg3: memref<2x32x32xf32, #tpu.memory_space<vmem>>, %arg4: memref<2x32x64xf32, #tpu.memory_space<vmem>>, %arg5: memref<2x64x32xf32, #tpu.memory_space<vmem>>, %arg6: memref<2x9x32xf32, #tpu.memory_space<vmem>>, %arg7: memref<2x1x64xf32, #tpu.memory_space<vmem>>, %arg8: memref<2x32xf32, #tpu.memory_space<vmem>>, %arg9: memref<32x128xf32, #tpu.memory_space<vmem>>, %arg10: memref<1x128xf32, #tpu.memory_space<vmem>>, %arg11: memref<16x128xf32, #tpu.memory_space<vmem>>) attributes {dimension_semantics = [], scalar_prefetch = 0 : i64, scratch_operands = 0 : i64, tpu.core_type = #tpu.core_type<tc>} {
    %c0 = arith.constant 0 : index
    %c0_0 = arith.constant 0 : index
    %0 = vector.load %arg0[%c0, %c0_0] : memref<16x32xf32, #tpu.memory_space<vmem>>, vector<16x32xf32>
    %c0_1 = arith.constant 0 : index
    %c0_2 = arith.constant 0 : index
    %c0_3 = arith.constant 0 : index
    %1 = vector.load %arg1[%c0_1, %c0_2, %c0_3] : memref<8x8x8xf32, #tpu.memory_space<vmem>>, vector<8x8x8xf32>
    %c0_4 = arith.constant 0 : index
    %c0_5 = arith.constant 0 : index
    %c0_6 = arith.constant 0 : index
    %2 = vector.load %arg2[%c0_4, %c0_5, %c0_6] : memref<2x32x96xf32, #tpu.memory_space<vmem>>, vector<1x32x96xf32>
    %3 = vector.shape_cast %2 : vector<1x32x96xf32> to vector<32x96xf32>
    %c0_7 = arith.constant 0 : index
    %c0_8 = arith.constant 0 : index
    %c0_9 = arith.constant 0 : index
    %4 = vector.load %arg3[%c0_7, %c0_8, %c0_9] : memref<2x32x32xf32, #tpu.memory_space<vmem>>, vector<1x32x32xf32>
    %5 = vector.shape_cast %4 : vector<1x32x32xf32> to vector<32x32xf32>
    %c0_10 = arith.constant 0 : index
    %c0_11 = arith.constant 0 : index
    %c0_12 = arith.constant 0 : index
    %6 = vector.load %arg4[%c0_10, %c0_11, %c0_12] : memref<2x32x64xf32, #tpu.memory_space<vmem>>, vector<1x32x64xf32>
    %7 = vector.shape_cast %6 : vector<1x32x64xf32> to vector<32x64xf32>
    %c0_13 = arith.constant 0 : index
    %c0_14 = arith.constant 0 : index
    %c0_15 = arith.constant 0 : index
    %8 = vector.load %arg5[%c0_13, %c0_14, %c0_15] : memref<2x64x32xf32, #tpu.memory_space<vmem>>, vector<1x64x32xf32>
    %9 = vector.shape_cast %8 : vector<1x64x32xf32> to vector<64x32xf32>
    %c0_16 = arith.constant 0 : index
    %c0_17 = arith.constant 0 : index
    %c0_18 = arith.constant 0 : index
    %10 = vector.load %arg6[%c0_16, %c0_17, %c0_18] : memref<2x9x32xf32, #tpu.memory_space<vmem>>, vector<1x9x32xf32>
    %11 = vector.shape_cast %10 : vector<1x9x32xf32> to vector<9x32xf32>
    %12 = vector.extract_strided_slice %11 {offsets = [0, 0], sizes = [1, 32], strides = [1, 1]} : vector<9x32xf32> to vector<1x32xf32>
    %13 = vector.extract_strided_slice %11 {offsets = [1, 0], sizes = [1, 32], strides = [1, 1]} : vector<9x32xf32> to vector<1x32xf32>
    %14 = vector.extract_strided_slice %11 {offsets = [2, 0], sizes = [1, 32], strides = [1, 1]} : vector<9x32xf32> to vector<1x32xf32>
    %15 = vector.extract_strided_slice %11 {offsets = [3, 0], sizes = [1, 32], strides = [1, 1]} : vector<9x32xf32> to vector<1x32xf32>
    %16 = vector.extract_strided_slice %11 {offsets = [4, 0], sizes = [1, 32], strides = [1, 1]} : vector<9x32xf32> to vector<1x32xf32>
    %17 = vector.extract_strided_slice %11 {offsets = [5, 0], sizes = [1, 32], strides = [1, 1]} : vector<9x32xf32> to vector<1x32xf32>
    %18 = vector.extract_strided_slice %11 {offsets = [6, 0], sizes = [1, 32], strides = [1, 1]} : vector<9x32xf32> to vector<1x32xf32>
    %19 = vector.extract_strided_slice %11 {offsets = [7, 0], sizes = [1, 32], strides = [1, 1]} : vector<9x32xf32> to vector<1x32xf32>
    %20 = vector.extract_strided_slice %11 {offsets = [8, 0], sizes = [1, 32], strides = [1, 1]} : vector<9x32xf32> to vector<1x32xf32>
    %c0_19 = arith.constant 0 : index
    %c0_20 = arith.constant 0 : index
    %c0_21 = arith.constant 0 : index
    %21 = vector.load %arg7[%c0_19, %c0_20, %c0_21] : memref<2x1x64xf32, #tpu.memory_space<vmem>>, vector<1x1x64xf32>
    %22 = vector.shape_cast %21 : vector<1x1x64xf32> to vector<1x64xf32>
    %cst = arith.constant dense<0.000000e+00> : vector<16xf32>
    %23 = vector.multi_reduction <add>, %0, %cst [1] : vector<16x32xf32> to vector<16xf32>
    %24 = vector.shape_cast %23 : vector<16xf32> to vector<16x1xf32>
    %cst_22 = arith.constant 3.200000e+01 : f32
    %25 = vector.broadcast %cst_22 : f32 to vector<16x1xf32>
    %26 = arith.divf %24, %25 : vector<16x1xf32>
    %27 = vector.broadcast %26 : vector<16x1xf32> to vector<16x32xf32>
    %28 = arith.subf %0, %27 : vector<16x32xf32>
    %29 = arith.mulf %28, %28 : vector<16x32xf32>
    %cst_23 = arith.constant dense<0.000000e+00> : vector<16xf32>
    %30 = vector.multi_reduction <add>, %29, %cst_23 [1] : vector<16x32xf32> to vector<16xf32>
    %31 = vector.shape_cast %30 : vector<16xf32> to vector<16x1xf32>
    %cst_24 = arith.constant 0.0322580636 : f32
    %32 = vector.broadcast %cst_24 : f32 to vector<16x1xf32>
    %33 = arith.mulf %31, %32 : vector<16x1xf32>
    %34 = math.sqrt %33 : vector<16x1xf32>
    %cst_25 = arith.constant 9.99999997E-7 : f32
    %35 = vector.broadcast %cst_25 : f32 to vector<16x1xf32>
    %36 = arith.addf %34, %35 : vector<16x1xf32>
    %37 = tpu.reciprocal %36 {approx = true} : vector<16x1xf32> -> vector<16x1xf32>
    %38 = vector.broadcast %37 : vector<16x1xf32> to vector<16x32xf32>
    %39 = arith.mulf %28, %38 : vector<16x32xf32>
    %40 = vector.broadcast %17 : vector<1x32xf32> to vector<16x32xf32>
    %41 = arith.mulf %40, %39 : vector<16x32xf32>
    %42 = vector.broadcast %18 : vector<1x32xf32> to vector<16x32xf32>
    %43 = arith.addf %41, %42 : vector<16x32xf32>
    %cst_26 = arith.constant dense<0.000000e+00> : vector<16x96xf32>
    %44 = tpu.matmul %43, %3, %cst_26 {dimension_numbers = #tpu.dot_dimension_numbers<[1], [0], [0], [1], [0, 0, 1, 1], [], []>} : vector<16x32xf32>, vector<32x96xf32>, vector<16x96xf32> -> vector<16x96xf32>
    %45 = vector.extract_strided_slice %44 {offsets = [0, 0], sizes = [16, 32], strides = [1, 1]} : vector<16x96xf32> to vector<16x32xf32>
    %46 = vector.broadcast %12 : vector<1x32xf32> to vector<16x32xf32>
    %47 = arith.addf %45, %46 : vector<16x32xf32>
    %48 = vector.extract_strided_slice %44 {offsets = [0, 32], sizes = [16, 32], strides = [1, 1]} : vector<16x96xf32> to vector<16x32xf32>
    %49 = vector.broadcast %13 : vector<1x32xf32> to vector<16x32xf32>
    %50 = arith.addf %48, %49 : vector<16x32xf32>
    %51 = vector.extract_strided_slice %44 {offsets = [0, 64], sizes = [16, 32], strides = [1, 1]} : vector<16x96xf32> to vector<16x32xf32>
    %52 = vector.broadcast %14 : vector<1x32xf32> to vector<16x32xf32>
    %53 = arith.addf %51, %52 : vector<16x32xf32>
    %54 = vector.extract_strided_slice %47 {offsets = [0, 0], sizes = [8, 8], strides = [1, 1]} : vector<16x32xf32> to vector<8x8xf32>
    %55 = vector.extract_strided_slice %47 {offsets = [0, 8], sizes = [8, 8], strides = [1, 1]} : vector<16x32xf32> to vector<8x8xf32>
    %56 = vector.extract_strided_slice %47 {offsets = [0, 16], sizes = [8, 8], strides = [1, 1]} : vector<16x32xf32> to vector<8x8xf32>
    %57 = vector.extract_strided_slice %47 {offsets = [0, 24], sizes = [8, 8], strides = [1, 1]} : vector<16x32xf32> to vector<8x8xf32>
    %58 = vector.extract_strided_slice %47 {offsets = [8, 0], sizes = [8, 8], strides = [1, 1]} : vector<16x32xf32> to vector<8x8xf32>
    %59 = vector.extract_strided_slice %47 {offsets = [8, 8], sizes = [8, 8], strides = [1, 1]} : vector<16x32xf32> to vector<8x8xf32>
    %60 = vector.extract_strided_slice %47 {offsets = [8, 16], sizes = [8, 8], strides = [1, 1]} : vector<16x32xf32> to vector<8x8xf32>
    %61 = vector.extract_strided_slice %47 {offsets = [8, 24], sizes = [8, 8], strides = [1, 1]} : vector<16x32xf32> to vector<8x8xf32>
    %62 = vector.shape_cast %54 : vector<8x8xf32> to vector<1x8x8xf32>
    %63 = vector.shape_cast %55 : vector<8x8xf32> to vector<1x8x8xf32>
    %64 = vector.shape_cast %56 : vector<8x8xf32> to vector<1x8x8xf32>
    %65 = vector.shape_cast %57 : vector<8x8xf32> to vector<1x8x8xf32>
    %66 = vector.shape_cast %58 : vector<8x8xf32> to vector<1x8x8xf32>
    %67 = vector.shape_cast %59 : vector<8x8xf32> to vector<1x8x8xf32>
    %68 = vector.shape_cast %60 : vector<8x8xf32> to vector<1x8x8xf32>
    %69 = vector.shape_cast %61 : vector<8x8xf32> to vector<1x8x8xf32>
    %70 = tpu.concatenate %62, %63, %64, %65, %66, %67, %68, %69 in 0 : vector<1x8x8xf32>, vector<1x8x8xf32>, vector<1x8x8xf32>, vector<1x8x8xf32>, vector<1x8x8xf32>, vector<1x8x8xf32>, vector<1x8x8xf32>, vector<1x8x8xf32> -> vector<8x8x8xf32>
    %71 = vector.extract_strided_slice %50 {offsets = [0, 0], sizes = [8, 8], strides = [1, 1]} : vector<16x32xf32> to vector<8x8xf32>
    %72 = vector.extract_strided_slice %50 {offsets = [0, 8], sizes = [8, 8], strides = [1, 1]} : vector<16x32xf32> to vector<8x8xf32>
    %73 = vector.extract_strided_slice %50 {offsets = [0, 16], sizes = [8, 8], strides = [1, 1]} : vector<16x32xf32> to vector<8x8xf32>
    %74 = vector.extract_strided_slice %50 {offsets = [0, 24], sizes = [8, 8], strides = [1, 1]} : vector<16x32xf32> to vector<8x8xf32>
    %75 = vector.extract_strided_slice %50 {offsets = [8, 0], sizes = [8, 8], strides = [1, 1]} : vector<16x32xf32> to vector<8x8xf32>
    %76 = vector.extract_strided_slice %50 {offsets = [8, 8], sizes = [8, 8], strides = [1, 1]} : vector<16x32xf32> to vector<8x8xf32>
    %77 = vector.extract_strided_slice %50 {offsets = [8, 16], sizes = [8, 8], strides = [1, 1]} : vector<16x32xf32> to vector<8x8xf32>
    %78 = vector.extract_strided_slice %50 {offsets = [8, 24], sizes = [8, 8], strides = [1, 1]} : vector<16x32xf32> to vector<8x8xf32>
    %79 = vector.shape_cast %71 : vector<8x8xf32> to vector<1x8x8xf32>
    %80 = vector.shape_cast %72 : vector<8x8xf32> to vector<1x8x8xf32>
    %81 = vector.shape_cast %73 : vector<8x8xf32> to vector<1x8x8xf32>
    %82 = vector.shape_cast %74 : vector<8x8xf32> to vector<1x8x8xf32>
    %83 = vector.shape_cast %75 : vector<8x8xf32> to vector<1x8x8xf32>
    %84 = vector.shape_cast %76 : vector<8x8xf32> to vector<1x8x8xf32>
    %85 = vector.shape_cast %77 : vector<8x8xf32> to vector<1x8x8xf32>
    %86 = vector.shape_cast %78 : vector<8x8xf32> to vector<1x8x8xf32>
    %87 = tpu.concatenate %79, %80, %81, %82, %83, %84, %85, %86 in 0 : vector<1x8x8xf32>, vector<1x8x8xf32>, vector<1x8x8xf32>, vector<1x8x8xf32>, vector<1x8x8xf32>, vector<1x8x8xf32>, vector<1x8x8xf32>, vector<1x8x8xf32> -> vector<8x8x8xf32>
    %88 = vector.extract_strided_slice %53 {offsets = [0, 0], sizes = [8, 8], strides = [1, 1]} : vector<16x32xf32> to vector<8x8xf32>
    %89 = vector.extract_strided_slice %53 {offsets = [0, 8], sizes = [8, 8], strides = [1, 1]} : vector<16x32xf32> to vector<8x8xf32>
    %90 = vector.extract_strided_slice %53 {offsets = [0, 16], sizes = [8, 8], strides = [1, 1]} : vector<16x32xf32> to vector<8x8xf32>
    %91 = vector.extract_strided_slice %53 {offsets = [0, 24], sizes = [8, 8], strides = [1, 1]} : vector<16x32xf32> to vector<8x8xf32>
    %92 = vector.extract_strided_slice %53 {offsets = [8, 0], sizes = [8, 8], strides = [1, 1]} : vector<16x32xf32> to vector<8x8xf32>
    %93 = vector.extract_strided_slice %53 {offsets = [8, 8], sizes = [8, 8], strides = [1, 1]} : vector<16x32xf32> to vector<8x8xf32>
    %94 = vector.extract_strided_slice %53 {offsets = [8, 16], sizes = [8, 8], strides = [1, 1]} : vector<16x32xf32> to vector<8x8xf32>
    %95 = vector.extract_strided_slice %53 {offsets = [8, 24], sizes = [8, 8], strides = [1, 1]} : vector<16x32xf32> to vector<8x8xf32>
    %96 = vector.shape_cast %88 : vector<8x8xf32> to vector<1x8x8xf32>
    %97 = vector.shape_cast %89 : vector<8x8xf32> to vector<1x8x8xf32>
    %98 = vector.shape_cast %90 : vector<8x8xf32> to vector<1x8x8xf32>
    %99 = vector.shape_cast %91 : vector<8x8xf32> to vector<1x8x8xf32>
    %100 = vector.shape_cast %92 : vector<8x8xf32> to vector<1x8x8xf32>
    %101 = vector.shape_cast %93 : vector<8x8xf32> to vector<1x8x8xf32>
    %102 = vector.shape_cast %94 : vector<8x8xf32> to vector<1x8x8xf32>
    %103 = vector.shape_cast %95 : vector<8x8xf32> to vector<1x8x8xf32>
    %104 = tpu.concatenate %96, %97, %98, %99, %100, %101, %102, %103 in 0 : vector<1x8x8xf32>, vector<1x8x8xf32>, vector<1x8x8xf32>, vector<1x8x8xf32>, vector<1x8x8xf32>, vector<1x8x8xf32>, vector<1x8x8xf32>, vector<1x8x8xf32> -> vector<8x8x8xf32>
    "tpu.trace_start"() <{level = 10 : i32, message = "nqd,nkd->nqk"}> : () -> ()
    %cst_27 = arith.constant dense<0.000000e+00> : vector<8x8x8xf32>
    %105 = tpu.matmul %70, %87, %cst_27 {dimension_numbers = #tpu.dot_dimension_numbers<[2], [2], [1], [1], [0, 0, 0, 1, 1, 1], [0], [0]>} : vector<8x8x8xf32>, vector<8x8x8xf32>, vector<8x8x8xf32> -> vector<8x8x8xf32>
    "tpu.trace_stop"() : () -> ()
    %cst_28 = arith.constant 0.353553385 : f32
    %106 = vector.broadcast %cst_28 : f32 to vector<8x8x8xf32>
    %107 = arith.mulf %105, %106 : vector<8x8x8xf32>
    %108 = arith.addf %107, %1 : vector<8x8x8xf32>
    %cst_29 = arith.constant dense<0xFF800000> : vector<8x8xf32>
    %109 = vector.multi_reduction <maximumf>, %108, %cst_29 [2] : vector<8x8x8xf32> to vector<8x8xf32>
    %110 = vector.shape_cast %109 : vector<8x8xf32> to vector<8x8x1xf32>
    %111 = vector.broadcast %110 : vector<8x8x1xf32> to vector<8x8x8xf32>
    %112 = arith.subf %108, %111 : vector<8x8x8xf32>
    %113 = math.exp %112 : vector<8x8x8xf32>
    %cst_30 = arith.constant dense<0.000000e+00> : vector<8x8xf32>
    %114 = vector.multi_reduction <add>, %113, %cst_30 [2] : vector<8x8x8xf32> to vector<8x8xf32>
    %115 = vector.shape_cast %114 : vector<8x8xf32> to vector<8x8x1xf32>
    %116 = tpu.reciprocal %115 {approx = true} : vector<8x8x1xf32> -> vector<8x8x1xf32>
    %117 = vector.broadcast %116 : vector<8x8x1xf32> to vector<8x8x8xf32>
    %118 = arith.mulf %113, %117 : vector<8x8x8xf32>
    "tpu.trace_start"() <{level = 10 : i32, message = "nqk,nkd->nqd"}> : () -> ()
    %cst_31 = arith.constant dense<0.000000e+00> : vector<8x8x8xf32>
    %119 = tpu.matmul %118, %104, %cst_31 {dimension_numbers = #tpu.dot_dimension_numbers<[2], [1], [1], [2], [0, 0, 0, 1, 1, 2], [0], [0]>} : vector<8x8x8xf32>, vector<8x8x8xf32>, vector<8x8x8xf32> -> vector<8x8x8xf32>
    "tpu.trace_stop"() : () -> ()
    %120 = vector.extract_strided_slice %119 {offsets = [0, 0, 0], sizes = [1, 8, 8], strides = [1, 1, 1]} : vector<8x8x8xf32> to vector<1x8x8xf32>
    %121 = vector.shape_cast %120 : vector<1x8x8xf32> to vector<8x8xf32>
    %122 = vector.extract_strided_slice %119 {offsets = [1, 0, 0], sizes = [1, 8, 8], strides = [1, 1, 1]} : vector<8x8x8xf32> to vector<1x8x8xf32>
    %123 = vector.shape_cast %122 : vector<1x8x8xf32> to vector<8x8xf32>
    %124 = vector.extract_strided_slice %119 {offsets = [2, 0, 0], sizes = [1, 8, 8], strides = [1, 1, 1]} : vector<8x8x8xf32> to vector<1x8x8xf32>
    %125 = vector.shape_cast %124 : vector<1x8x8xf32> to vector<8x8xf32>
    %126 = vector.extract_strided_slice %119 {offsets = [3, 0, 0], sizes = [1, 8, 8], strides = [1, 1, 1]} : vector<8x8x8xf32> to vector<1x8x8xf32>
    %127 = vector.shape_cast %126 : vector<1x8x8xf32> to vector<8x8xf32>
    %128 = tpu.concatenate %121, %123, %125, %127 in 1 : vector<8x8xf32>, vector<8x8xf32>, vector<8x8xf32>, vector<8x8xf32> -> vector<8x32xf32>
    %129 = vector.extract_strided_slice %119 {offsets = [4, 0, 0], sizes = [1, 8, 8], strides = [1, 1, 1]} : vector<8x8x8xf32> to vector<1x8x8xf32>
    %130 = vector.shape_cast %129 : vector<1x8x8xf32> to vector<8x8xf32>
    %131 = vector.extract_strided_slice %119 {offsets = [5, 0, 0], sizes = [1, 8, 8], strides = [1, 1, 1]} : vector<8x8x8xf32> to vector<1x8x8xf32>
    %132 = vector.shape_cast %131 : vector<1x8x8xf32> to vector<8x8xf32>
    %133 = vector.extract_strided_slice %119 {offsets = [6, 0, 0], sizes = [1, 8, 8], strides = [1, 1, 1]} : vector<8x8x8xf32> to vector<1x8x8xf32>
    %134 = vector.shape_cast %133 : vector<1x8x8xf32> to vector<8x8xf32>
    %135 = vector.extract_strided_slice %119 {offsets = [7, 0, 0], sizes = [1, 8, 8], strides = [1, 1, 1]} : vector<8x8x8xf32> to vector<1x8x8xf32>
    %136 = vector.shape_cast %135 : vector<1x8x8xf32> to vector<8x8xf32>
    %137 = tpu.concatenate %130, %132, %134, %136 in 1 : vector<8x8xf32>, vector<8x8xf32>, vector<8x8xf32>, vector<8x8xf32> -> vector<8x32xf32>
    %138 = tpu.concatenate %128, %137 in 0 : vector<8x32xf32>, vector<8x32xf32> -> vector<16x32xf32>
    %cst_32 = arith.constant dense<0.000000e+00> : vector<16x32xf32>
    %139 = tpu.matmul %138, %5, %cst_32 {dimension_numbers = #tpu.dot_dimension_numbers<[1], [0], [0], [1], [0, 0, 1, 1], [], []>} : vector<16x32xf32>, vector<32x32xf32>, vector<16x32xf32> -> vector<16x32xf32>
    %140 = arith.addf %0, %139 : vector<16x32xf32>
    %141 = vector.broadcast %15 : vector<1x32xf32> to vector<16x32xf32>
    %142 = arith.addf %140, %141 : vector<16x32xf32>
    %cst_33 = arith.constant dense<0.000000e+00> : vector<16xf32>
    %143 = vector.multi_reduction <add>, %142, %cst_33 [1] : vector<16x32xf32> to vector<16xf32>
    %144 = vector.shape_cast %143 : vector<16xf32> to vector<16x1xf32>
    %cst_34 = arith.constant 3.200000e+01 : f32
    %145 = vector.broadcast %cst_34 : f32 to vector<16x1xf32>
    %146 = arith.divf %144, %145 : vector<16x1xf32>
    %147 = vector.broadcast %146 : vector<16x1xf32> to vector<16x32xf32>
    %148 = arith.subf %142, %147 : vector<16x32xf32>
    %149 = arith.mulf %148, %148 : vector<16x32xf32>
    %cst_35 = arith.constant dense<0.000000e+00> : vector<16xf32>
    %150 = vector.multi_reduction <add>, %149, %cst_35 [1] : vector<16x32xf32> to vector<16xf32>
    %151 = vector.shape_cast %150 : vector<16xf32> to vector<16x1xf32>
    %cst_36 = arith.constant 0.0322580636 : f32
    %152 = vector.broadcast %cst_36 : f32 to vector<16x1xf32>
    %153 = arith.mulf %151, %152 : vector<16x1xf32>
    %154 = math.sqrt %153 : vector<16x1xf32>
    %cst_37 = arith.constant 9.99999997E-7 : f32
    %155 = vector.broadcast %cst_37 : f32 to vector<16x1xf32>
    %156 = arith.addf %154, %155 : vector<16x1xf32>
    %157 = tpu.reciprocal %156 {approx = true} : vector<16x1xf32> -> vector<16x1xf32>
    %158 = vector.broadcast %157 : vector<16x1xf32> to vector<16x32xf32>
    %159 = arith.mulf %148, %158 : vector<16x32xf32>
    %160 = vector.broadcast %19 : vector<1x32xf32> to vector<16x32xf32>
    %161 = arith.mulf %160, %159 : vector<16x32xf32>
    %162 = vector.broadcast %20 : vector<1x32xf32> to vector<16x32xf32>
    %163 = arith.addf %161, %162 : vector<16x32xf32>
    %cst_38 = arith.constant dense<0.000000e+00> : vector<16x64xf32>
    %164 = tpu.matmul %163, %7, %cst_38 {dimension_numbers = #tpu.dot_dimension_numbers<[1], [0], [0], [1], [0, 0, 1, 1], [], []>} : vector<16x32xf32>, vector<32x64xf32>, vector<16x64xf32> -> vector<16x64xf32>
    %165 = vector.broadcast %22 : vector<1x64xf32> to vector<16x64xf32>
    %166 = arith.addf %164, %165 : vector<16x64xf32>
    %cst_39 = arith.constant 0.000000e+00 : f32
    %167 = vector.broadcast %cst_39 : f32 to vector<16x64xf32>
    %168 = arith.maximumf %166, %167 : vector<16x64xf32>
    %cst_40 = arith.constant dense<0.000000e+00> : vector<16x32xf32>
    %169 = tpu.matmul %168, %9, %cst_40 {dimension_numbers = #tpu.dot_dimension_numbers<[1], [0], [0], [1], [0, 0, 1, 1], [], []>} : vector<16x64xf32>, vector<64x32xf32>, vector<16x32xf32> -> vector<16x32xf32>
    %170 = arith.addf %142, %169 : vector<16x32xf32>
    %171 = vector.broadcast %16 : vector<1x32xf32> to vector<16x32xf32>
    %172 = arith.addf %170, %171 : vector<16x32xf32>
    %c1 = arith.constant 1 : index
    %c0_41 = arith.constant 0 : index
    %c0_42 = arith.constant 0 : index
    %173 = vector.load %arg2[%c1, %c0_41, %c0_42] : memref<2x32x96xf32, #tpu.memory_space<vmem>>, vector<1x32x96xf32>
    %174 = vector.shape_cast %173 : vector<1x32x96xf32> to vector<32x96xf32>
    %c1_43 = arith.constant 1 : index
    %c0_44 = arith.constant 0 : index
    %c0_45 = arith.constant 0 : index
    %175 = vector.load %arg3[%c1_43, %c0_44, %c0_45] : memref<2x32x32xf32, #tpu.memory_space<vmem>>, vector<1x32x32xf32>
    %176 = vector.shape_cast %175 : vector<1x32x32xf32> to vector<32x32xf32>
    %c1_46 = arith.constant 1 : index
    %c0_47 = arith.constant 0 : index
    %c0_48 = arith.constant 0 : index
    %177 = vector.load %arg4[%c1_46, %c0_47, %c0_48] : memref<2x32x64xf32, #tpu.memory_space<vmem>>, vector<1x32x64xf32>
    %178 = vector.shape_cast %177 : vector<1x32x64xf32> to vector<32x64xf32>
    %c1_49 = arith.constant 1 : index
    %c0_50 = arith.constant 0 : index
    %c0_51 = arith.constant 0 : index
    %179 = vector.load %arg5[%c1_49, %c0_50, %c0_51] : memref<2x64x32xf32, #tpu.memory_space<vmem>>, vector<1x64x32xf32>
    %180 = vector.shape_cast %179 : vector<1x64x32xf32> to vector<64x32xf32>
    %c1_52 = arith.constant 1 : index
    %c0_53 = arith.constant 0 : index
    %c0_54 = arith.constant 0 : index
    %181 = vector.load %arg6[%c1_52, %c0_53, %c0_54] : memref<2x9x32xf32, #tpu.memory_space<vmem>>, vector<1x9x32xf32>
    %182 = vector.shape_cast %181 : vector<1x9x32xf32> to vector<9x32xf32>
    %183 = vector.extract_strided_slice %182 {offsets = [0, 0], sizes = [1, 32], strides = [1, 1]} : vector<9x32xf32> to vector<1x32xf32>
    %184 = vector.extract_strided_slice %182 {offsets = [1, 0], sizes = [1, 32], strides = [1, 1]} : vector<9x32xf32> to vector<1x32xf32>
    %185 = vector.extract_strided_slice %182 {offsets = [2, 0], sizes = [1, 32], strides = [1, 1]} : vector<9x32xf32> to vector<1x32xf32>
    %186 = vector.extract_strided_slice %182 {offsets = [3, 0], sizes = [1, 32], strides = [1, 1]} : vector<9x32xf32> to vector<1x32xf32>
    %187 = vector.extract_strided_slice %182 {offsets = [4, 0], sizes = [1, 32], strides = [1, 1]} : vector<9x32xf32> to vector<1x32xf32>
    %188 = vector.extract_strided_slice %182 {offsets = [5, 0], sizes = [1, 32], strides = [1, 1]} : vector<9x32xf32> to vector<1x32xf32>
    %189 = vector.extract_strided_slice %182 {offsets = [6, 0], sizes = [1, 32], strides = [1, 1]} : vector<9x32xf32> to vector<1x32xf32>
    %190 = vector.extract_strided_slice %182 {offsets = [7, 0], sizes = [1, 32], strides = [1, 1]} : vector<9x32xf32> to vector<1x32xf32>
    %191 = vector.extract_strided_slice %182 {offsets = [8, 0], sizes = [1, 32], strides = [1, 1]} : vector<9x32xf32> to vector<1x32xf32>
    %c1_55 = arith.constant 1 : index
    %c0_56 = arith.constant 0 : index
    %c0_57 = arith.constant 0 : index
    %192 = vector.load %arg7[%c1_55, %c0_56, %c0_57] : memref<2x1x64xf32, #tpu.memory_space<vmem>>, vector<1x1x64xf32>
    %193 = vector.shape_cast %192 : vector<1x1x64xf32> to vector<1x64xf32>
    %cst_58 = arith.constant dense<0.000000e+00> : vector<16xf32>
    %194 = vector.multi_reduction <add>, %172, %cst_58 [1] : vector<16x32xf32> to vector<16xf32>
    %195 = vector.shape_cast %194 : vector<16xf32> to vector<16x1xf32>
    %cst_59 = arith.constant 3.200000e+01 : f32
    %196 = vector.broadcast %cst_59 : f32 to vector<16x1xf32>
    %197 = arith.divf %195, %196 : vector<16x1xf32>
    %198 = vector.broadcast %197 : vector<16x1xf32> to vector<16x32xf32>
    %199 = arith.subf %172, %198 : vector<16x32xf32>
    %200 = arith.mulf %199, %199 : vector<16x32xf32>
    %cst_60 = arith.constant dense<0.000000e+00> : vector<16xf32>
    %201 = vector.multi_reduction <add>, %200, %cst_60 [1] : vector<16x32xf32> to vector<16xf32>
    %202 = vector.shape_cast %201 : vector<16xf32> to vector<16x1xf32>
    %cst_61 = arith.constant 0.0322580636 : f32
    %203 = vector.broadcast %cst_61 : f32 to vector<16x1xf32>
    %204 = arith.mulf %202, %203 : vector<16x1xf32>
    %205 = math.sqrt %204 : vector<16x1xf32>
    %cst_62 = arith.constant 9.99999997E-7 : f32
    %206 = vector.broadcast %cst_62 : f32 to vector<16x1xf32>
    %207 = arith.addf %205, %206 : vector<16x1xf32>
    %208 = tpu.reciprocal %207 {approx = true} : vector<16x1xf32> -> vector<16x1xf32>
    %209 = vector.broadcast %208 : vector<16x1xf32> to vector<16x32xf32>
    %210 = arith.mulf %199, %209 : vector<16x32xf32>
    %211 = vector.broadcast %188 : vector<1x32xf32> to vector<16x32xf32>
    %212 = arith.mulf %211, %210 : vector<16x32xf32>
    %213 = vector.broadcast %189 : vector<1x32xf32> to vector<16x32xf32>
    %214 = arith.addf %212, %213 : vector<16x32xf32>
    %cst_63 = arith.constant dense<0.000000e+00> : vector<16x96xf32>
    %215 = tpu.matmul %214, %174, %cst_63 {dimension_numbers = #tpu.dot_dimension_numbers<[1], [0], [0], [1], [0, 0, 1, 1], [], []>} : vector<16x32xf32>, vector<32x96xf32>, vector<16x96xf32> -> vector<16x96xf32>
    %216 = vector.extract_strided_slice %215 {offsets = [0, 0], sizes = [16, 32], strides = [1, 1]} : vector<16x96xf32> to vector<16x32xf32>
    %217 = vector.broadcast %183 : vector<1x32xf32> to vector<16x32xf32>
    %218 = arith.addf %216, %217 : vector<16x32xf32>
    %219 = vector.extract_strided_slice %215 {offsets = [0, 32], sizes = [16, 32], strides = [1, 1]} : vector<16x96xf32> to vector<16x32xf32>
    %220 = vector.broadcast %184 : vector<1x32xf32> to vector<16x32xf32>
    %221 = arith.addf %219, %220 : vector<16x32xf32>
    %222 = vector.extract_strided_slice %215 {offsets = [0, 64], sizes = [16, 32], strides = [1, 1]} : vector<16x96xf32> to vector<16x32xf32>
    %223 = vector.broadcast %185 : vector<1x32xf32> to vector<16x32xf32>
    %224 = arith.addf %222, %223 : vector<16x32xf32>
    %225 = vector.extract_strided_slice %218 {offsets = [0, 0], sizes = [8, 8], strides = [1, 1]} : vector<16x32xf32> to vector<8x8xf32>
    %226 = vector.extract_strided_slice %218 {offsets = [0, 8], sizes = [8, 8], strides = [1, 1]} : vector<16x32xf32> to vector<8x8xf32>
    %227 = vector.extract_strided_slice %218 {offsets = [0, 16], sizes = [8, 8], strides = [1, 1]} : vector<16x32xf32> to vector<8x8xf32>
    %228 = vector.extract_strided_slice %218 {offsets = [0, 24], sizes = [8, 8], strides = [1, 1]} : vector<16x32xf32> to vector<8x8xf32>
    %229 = vector.extract_strided_slice %218 {offsets = [8, 0], sizes = [8, 8], strides = [1, 1]} : vector<16x32xf32> to vector<8x8xf32>
    %230 = vector.extract_strided_slice %218 {offsets = [8, 8], sizes = [8, 8], strides = [1, 1]} : vector<16x32xf32> to vector<8x8xf32>
    %231 = vector.extract_strided_slice %218 {offsets = [8, 16], sizes = [8, 8], strides = [1, 1]} : vector<16x32xf32> to vector<8x8xf32>
    %232 = vector.extract_strided_slice %218 {offsets = [8, 24], sizes = [8, 8], strides = [1, 1]} : vector<16x32xf32> to vector<8x8xf32>
    %233 = vector.shape_cast %225 : vector<8x8xf32> to vector<1x8x8xf32>
    %234 = vector.shape_cast %226 : vector<8x8xf32> to vector<1x8x8xf32>
    %235 = vector.shape_cast %227 : vector<8x8xf32> to vector<1x8x8xf32>
    %236 = vector.shape_cast %228 : vector<8x8xf32> to vector<1x8x8xf32>
    %237 = vector.shape_cast %229 : vector<8x8xf32> to vector<1x8x8xf32>
    %238 = vector.shape_cast %230 : vector<8x8xf32> to vector<1x8x8xf32>
    %239 = vector.shape_cast %231 : vector<8x8xf32> to vector<1x8x8xf32>
    %240 = vector.shape_cast %232 : vector<8x8xf32> to vector<1x8x8xf32>
    %241 = tpu.concatenate %233, %234, %235, %236, %237, %238, %239, %240 in 0 : vector<1x8x8xf32>, vector<1x8x8xf32>, vector<1x8x8xf32>, vector<1x8x8xf32>, vector<1x8x8xf32>, vector<1x8x8xf32>, vector<1x8x8xf32>, vector<1x8x8xf32> -> vector<8x8x8xf32>
    %242 = vector.extract_strided_slice %221 {offsets = [0, 0], sizes = [8, 8], strides = [1, 1]} : vector<16x32xf32> to vector<8x8xf32>
    %243 = vector.extract_strided_slice %221 {offsets = [0, 8], sizes = [8, 8], strides = [1, 1]} : vector<16x32xf32> to vector<8x8xf32>
    %244 = vector.extract_strided_slice %221 {offsets = [0, 16], sizes = [8, 8], strides = [1, 1]} : vector<16x32xf32> to vector<8x8xf32>
    %245 = vector.extract_strided_slice %221 {offsets = [0, 24], sizes = [8, 8], strides = [1, 1]} : vector<16x32xf32> to vector<8x8xf32>
    %246 = vector.extract_strided_slice %221 {offsets = [8, 0], sizes = [8, 8], strides = [1, 1]} : vector<16x32xf32> to vector<8x8xf32>
    %247 = vector.extract_strided_slice %221 {offsets = [8, 8], sizes = [8, 8], strides = [1, 1]} : vector<16x32xf32> to vector<8x8xf32>
    %248 = vector.extract_strided_slice %221 {offsets = [8, 16], sizes = [8, 8], strides = [1, 1]} : vector<16x32xf32> to vector<8x8xf32>
    %249 = vector.extract_strided_slice %221 {offsets = [8, 24], sizes = [8, 8], strides = [1, 1]} : vector<16x32xf32> to vector<8x8xf32>
    %250 = vector.shape_cast %242 : vector<8x8xf32> to vector<1x8x8xf32>
    %251 = vector.shape_cast %243 : vector<8x8xf32> to vector<1x8x8xf32>
    %252 = vector.shape_cast %244 : vector<8x8xf32> to vector<1x8x8xf32>
    %253 = vector.shape_cast %245 : vector<8x8xf32> to vector<1x8x8xf32>
    %254 = vector.shape_cast %246 : vector<8x8xf32> to vector<1x8x8xf32>
    %255 = vector.shape_cast %247 : vector<8x8xf32> to vector<1x8x8xf32>
    %256 = vector.shape_cast %248 : vector<8x8xf32> to vector<1x8x8xf32>
    %257 = vector.shape_cast %249 : vector<8x8xf32> to vector<1x8x8xf32>
    %258 = tpu.concatenate %250, %251, %252, %253, %254, %255, %256, %257 in 0 : vector<1x8x8xf32>, vector<1x8x8xf32>, vector<1x8x8xf32>, vector<1x8x8xf32>, vector<1x8x8xf32>, vector<1x8x8xf32>, vector<1x8x8xf32>, vector<1x8x8xf32> -> vector<8x8x8xf32>
    %259 = vector.extract_strided_slice %224 {offsets = [0, 0], sizes = [8, 8], strides = [1, 1]} : vector<16x32xf32> to vector<8x8xf32>
    %260 = vector.extract_strided_slice %224 {offsets = [0, 8], sizes = [8, 8], strides = [1, 1]} : vector<16x32xf32> to vector<8x8xf32>
    %261 = vector.extract_strided_slice %224 {offsets = [0, 16], sizes = [8, 8], strides = [1, 1]} : vector<16x32xf32> to vector<8x8xf32>
    %262 = vector.extract_strided_slice %224 {offsets = [0, 24], sizes = [8, 8], strides = [1, 1]} : vector<16x32xf32> to vector<8x8xf32>
    %263 = vector.extract_strided_slice %224 {offsets = [8, 0], sizes = [8, 8], strides = [1, 1]} : vector<16x32xf32> to vector<8x8xf32>
    %264 = vector.extract_strided_slice %224 {offsets = [8, 8], sizes = [8, 8], strides = [1, 1]} : vector<16x32xf32> to vector<8x8xf32>
    %265 = vector.extract_strided_slice %224 {offsets = [8, 16], sizes = [8, 8], strides = [1, 1]} : vector<16x32xf32> to vector<8x8xf32>
    %266 = vector.extract_strided_slice %224 {offsets = [8, 24], sizes = [8, 8], strides = [1, 1]} : vector<16x32xf32> to vector<8x8xf32>
    %267 = vector.shape_cast %259 : vector<8x8xf32> to vector<1x8x8xf32>
    %268 = vector.shape_cast %260 : vector<8x8xf32> to vector<1x8x8xf32>
    %269 = vector.shape_cast %261 : vector<8x8xf32> to vector<1x8x8xf32>
    %270 = vector.shape_cast %262 : vector<8x8xf32> to vector<1x8x8xf32>
    %271 = vector.shape_cast %263 : vector<8x8xf32> to vector<1x8x8xf32>
    %272 = vector.shape_cast %264 : vector<8x8xf32> to vector<1x8x8xf32>
    %273 = vector.shape_cast %265 : vector<8x8xf32> to vector<1x8x8xf32>
    %274 = vector.shape_cast %266 : vector<8x8xf32> to vector<1x8x8xf32>
    %275 = tpu.concatenate %267, %268, %269, %270, %271, %272, %273, %274 in 0 : vector<1x8x8xf32>, vector<1x8x8xf32>, vector<1x8x8xf32>, vector<1x8x8xf32>, vector<1x8x8xf32>, vector<1x8x8xf32>, vector<1x8x8xf32>, vector<1x8x8xf32> -> vector<8x8x8xf32>
    "tpu.trace_start"() <{level = 10 : i32, message = "nqd,nkd->nqk"}> : () -> ()
    %cst_64 = arith.constant dense<0.000000e+00> : vector<8x8x8xf32>
    %276 = tpu.matmul %241, %258, %cst_64 {dimension_numbers = #tpu.dot_dimension_numbers<[2], [2], [1], [1], [0, 0, 0, 1, 1, 1], [0], [0]>} : vector<8x8x8xf32>, vector<8x8x8xf32>, vector<8x8x8xf32> -> vector<8x8x8xf32>
    "tpu.trace_stop"() : () -> ()
    %cst_65 = arith.constant 0.353553385 : f32
    %277 = vector.broadcast %cst_65 : f32 to vector<8x8x8xf32>
    %278 = arith.mulf %276, %277 : vector<8x8x8xf32>
    %279 = arith.addf %278, %1 : vector<8x8x8xf32>
    %cst_66 = arith.constant dense<0xFF800000> : vector<8x8xf32>
    %280 = vector.multi_reduction <maximumf>, %279, %cst_66 [2] : vector<8x8x8xf32> to vector<8x8xf32>
    %281 = vector.shape_cast %280 : vector<8x8xf32> to vector<8x8x1xf32>
    %282 = vector.broadcast %281 : vector<8x8x1xf32> to vector<8x8x8xf32>
    %283 = arith.subf %279, %282 : vector<8x8x8xf32>
    %284 = math.exp %283 : vector<8x8x8xf32>
    %cst_67 = arith.constant dense<0.000000e+00> : vector<8x8xf32>
    %285 = vector.multi_reduction <add>, %284, %cst_67 [2] : vector<8x8x8xf32> to vector<8x8xf32>
    %286 = vector.shape_cast %285 : vector<8x8xf32> to vector<8x8x1xf32>
    %287 = tpu.reciprocal %286 {approx = true} : vector<8x8x1xf32> -> vector<8x8x1xf32>
    %288 = vector.broadcast %287 : vector<8x8x1xf32> to vector<8x8x8xf32>
    %289 = arith.mulf %284, %288 : vector<8x8x8xf32>
    "tpu.trace_start"() <{level = 10 : i32, message = "nqk,nkd->nqd"}> : () -> ()
    %cst_68 = arith.constant dense<0.000000e+00> : vector<8x8x8xf32>
    %290 = tpu.matmul %289, %275, %cst_68 {dimension_numbers = #tpu.dot_dimension_numbers<[2], [1], [1], [2], [0, 0, 0, 1, 1, 2], [0], [0]>} : vector<8x8x8xf32>, vector<8x8x8xf32>, vector<8x8x8xf32> -> vector<8x8x8xf32>
    "tpu.trace_stop"() : () -> ()
    %291 = vector.extract_strided_slice %290 {offsets = [0, 0, 0], sizes = [1, 8, 8], strides = [1, 1, 1]} : vector<8x8x8xf32> to vector<1x8x8xf32>
    %292 = vector.shape_cast %291 : vector<1x8x8xf32> to vector<8x8xf32>
    %293 = vector.extract_strided_slice %290 {offsets = [1, 0, 0], sizes = [1, 8, 8], strides = [1, 1, 1]} : vector<8x8x8xf32> to vector<1x8x8xf32>
    %294 = vector.shape_cast %293 : vector<1x8x8xf32> to vector<8x8xf32>
    %295 = vector.extract_strided_slice %290 {offsets = [2, 0, 0], sizes = [1, 8, 8], strides = [1, 1, 1]} : vector<8x8x8xf32> to vector<1x8x8xf32>
    %296 = vector.shape_cast %295 : vector<1x8x8xf32> to vector<8x8xf32>
    %297 = vector.extract_strided_slice %290 {offsets = [3, 0, 0], sizes = [1, 8, 8], strides = [1, 1, 1]} : vector<8x8x8xf32> to vector<1x8x8xf32>
    %298 = vector.shape_cast %297 : vector<1x8x8xf32> to vector<8x8xf32>
    %299 = tpu.concatenate %292, %294, %296, %298 in 1 : vector<8x8xf32>, vector<8x8xf32>, vector<8x8xf32>, vector<8x8xf32> -> vector<8x32xf32>
    %300 = vector.extract_strided_slice %290 {offsets = [4, 0, 0], sizes = [1, 8, 8], strides = [1, 1, 1]} : vector<8x8x8xf32> to vector<1x8x8xf32>
    %301 = vector.shape_cast %300 : vector<1x8x8xf32> to vector<8x8xf32>
    %302 = vector.extract_strided_slice %290 {offsets = [5, 0, 0], sizes = [1, 8, 8], strides = [1, 1, 1]} : vector<8x8x8xf32> to vector<1x8x8xf32>
    %303 = vector.shape_cast %302 : vector<1x8x8xf32> to vector<8x8xf32>
    %304 = vector.extract_strided_slice %290 {offsets = [6, 0, 0], sizes = [1, 8, 8], strides = [1, 1, 1]} : vector<8x8x8xf32> to vector<1x8x8xf32>
    %305 = vector.shape_cast %304 : vector<1x8x8xf32> to vector<8x8xf32>
    %306 = vector.extract_strided_slice %290 {offsets = [7, 0, 0], sizes = [1, 8, 8], strides = [1, 1, 1]} : vector<8x8x8xf32> to vector<1x8x8xf32>
    %307 = vector.shape_cast %306 : vector<1x8x8xf32> to vector<8x8xf32>
    %308 = tpu.concatenate %301, %303, %305, %307 in 1 : vector<8x8xf32>, vector<8x8xf32>, vector<8x8xf32>, vector<8x8xf32> -> vector<8x32xf32>
    %309 = tpu.concatenate %299, %308 in 0 : vector<8x32xf32>, vector<8x32xf32> -> vector<16x32xf32>
    %cst_69 = arith.constant dense<0.000000e+00> : vector<16x32xf32>
    %310 = tpu.matmul %309, %176, %cst_69 {dimension_numbers = #tpu.dot_dimension_numbers<[1], [0], [0], [1], [0, 0, 1, 1], [], []>} : vector<16x32xf32>, vector<32x32xf32>, vector<16x32xf32> -> vector<16x32xf32>
    %311 = arith.addf %172, %310 : vector<16x32xf32>
    %312 = vector.broadcast %186 : vector<1x32xf32> to vector<16x32xf32>
    %313 = arith.addf %311, %312 : vector<16x32xf32>
    %cst_70 = arith.constant dense<0.000000e+00> : vector<16xf32>
    %314 = vector.multi_reduction <add>, %313, %cst_70 [1] : vector<16x32xf32> to vector<16xf32>
    %315 = vector.shape_cast %314 : vector<16xf32> to vector<16x1xf32>
    %cst_71 = arith.constant 3.200000e+01 : f32
    %316 = vector.broadcast %cst_71 : f32 to vector<16x1xf32>
    %317 = arith.divf %315, %316 : vector<16x1xf32>
    %318 = vector.broadcast %317 : vector<16x1xf32> to vector<16x32xf32>
    %319 = arith.subf %313, %318 : vector<16x32xf32>
    %320 = arith.mulf %319, %319 : vector<16x32xf32>
    %cst_72 = arith.constant dense<0.000000e+00> : vector<16xf32>
    %321 = vector.multi_reduction <add>, %320, %cst_72 [1] : vector<16x32xf32> to vector<16xf32>
    %322 = vector.shape_cast %321 : vector<16xf32> to vector<16x1xf32>
    %cst_73 = arith.constant 0.0322580636 : f32
    %323 = vector.broadcast %cst_73 : f32 to vector<16x1xf32>
    %324 = arith.mulf %322, %323 : vector<16x1xf32>
    %325 = math.sqrt %324 : vector<16x1xf32>
    %cst_74 = arith.constant 9.99999997E-7 : f32
    %326 = vector.broadcast %cst_74 : f32 to vector<16x1xf32>
    %327 = arith.addf %325, %326 : vector<16x1xf32>
    %328 = tpu.reciprocal %327 {approx = true} : vector<16x1xf32> -> vector<16x1xf32>
    %329 = vector.broadcast %328 : vector<16x1xf32> to vector<16x32xf32>
    %330 = arith.mulf %319, %329 : vector<16x32xf32>
    %331 = vector.broadcast %190 : vector<1x32xf32> to vector<16x32xf32>
    %332 = arith.mulf %331, %330 : vector<16x32xf32>
    %333 = vector.broadcast %191 : vector<1x32xf32> to vector<16x32xf32>
    %334 = arith.addf %332, %333 : vector<16x32xf32>
    %cst_75 = arith.constant dense<0.000000e+00> : vector<16x64xf32>
    %335 = tpu.matmul %334, %178, %cst_75 {dimension_numbers = #tpu.dot_dimension_numbers<[1], [0], [0], [1], [0, 0, 1, 1], [], []>} : vector<16x32xf32>, vector<32x64xf32>, vector<16x64xf32> -> vector<16x64xf32>
    %336 = vector.broadcast %193 : vector<1x64xf32> to vector<16x64xf32>
    %337 = arith.addf %335, %336 : vector<16x64xf32>
    %cst_76 = arith.constant 0.000000e+00 : f32
    %338 = vector.broadcast %cst_76 : f32 to vector<16x64xf32>
    %339 = arith.maximumf %337, %338 : vector<16x64xf32>
    %cst_77 = arith.constant dense<0.000000e+00> : vector<16x32xf32>
    %340 = tpu.matmul %339, %180, %cst_77 {dimension_numbers = #tpu.dot_dimension_numbers<[1], [0], [0], [1], [0, 0, 1, 1], [], []>} : vector<16x64xf32>, vector<64x32xf32>, vector<16x32xf32> -> vector<16x32xf32>
    %341 = arith.addf %313, %340 : vector<16x32xf32>
    %342 = vector.broadcast %187 : vector<1x32xf32> to vector<16x32xf32>
    %343 = arith.addf %341, %342 : vector<16x32xf32>
    %c0_78 = arith.constant 0 : index
    %c0_79 = arith.constant 0 : index
    %344 = vector.load %arg8[%c0_78, %c0_79] : memref<2x32xf32, #tpu.memory_space<vmem>>, vector<2x32xf32>
    %345 = vector.extract_strided_slice %344 {offsets = [0, 0], sizes = [1, 32], strides = [1, 1]} : vector<2x32xf32> to vector<1x32xf32>
    %346 = vector.extract_strided_slice %344 {offsets = [1, 0], sizes = [1, 32], strides = [1, 1]} : vector<2x32xf32> to vector<1x32xf32>
    %cst_80 = arith.constant dense<0.000000e+00> : vector<16xf32>
    %347 = vector.multi_reduction <add>, %343, %cst_80 [1] : vector<16x32xf32> to vector<16xf32>
    %348 = vector.shape_cast %347 : vector<16xf32> to vector<16x1xf32>
    %cst_81 = arith.constant 3.200000e+01 : f32
    %349 = vector.broadcast %cst_81 : f32 to vector<16x1xf32>
    %350 = arith.divf %348, %349 : vector<16x1xf32>
    %351 = vector.broadcast %350 : vector<16x1xf32> to vector<16x32xf32>
    %352 = arith.subf %343, %351 : vector<16x32xf32>
    %353 = arith.mulf %352, %352 : vector<16x32xf32>
    %cst_82 = arith.constant dense<0.000000e+00> : vector<16xf32>
    %354 = vector.multi_reduction <add>, %353, %cst_82 [1] : vector<16x32xf32> to vector<16xf32>
    %355 = vector.shape_cast %354 : vector<16xf32> to vector<16x1xf32>
    %cst_83 = arith.constant 0.0322580636 : f32
    %356 = vector.broadcast %cst_83 : f32 to vector<16x1xf32>
    %357 = arith.mulf %355, %356 : vector<16x1xf32>
    %358 = math.sqrt %357 : vector<16x1xf32>
    %cst_84 = arith.constant 9.99999997E-7 : f32
    %359 = vector.broadcast %cst_84 : f32 to vector<16x1xf32>
    %360 = arith.addf %358, %359 : vector<16x1xf32>
    %361 = tpu.reciprocal %360 {approx = true} : vector<16x1xf32> -> vector<16x1xf32>
    %362 = vector.broadcast %361 : vector<16x1xf32> to vector<16x32xf32>
    %363 = arith.mulf %352, %362 : vector<16x32xf32>
    %364 = vector.broadcast %345 : vector<1x32xf32> to vector<16x32xf32>
    %365 = arith.mulf %364, %363 : vector<16x32xf32>
    %366 = vector.broadcast %346 : vector<1x32xf32> to vector<16x32xf32>
    %367 = arith.addf %365, %366 : vector<16x32xf32>
    %c0_85 = arith.constant 0 : index
    %c0_86 = arith.constant 0 : index
    %368 = vector.load %arg9[%c0_85, %c0_86] : memref<32x128xf32, #tpu.memory_space<vmem>>, vector<32x128xf32>
    %cst_87 = arith.constant dense<0.000000e+00> : vector<16x128xf32>
    %369 = tpu.matmul %367, %368, %cst_87 {dimension_numbers = #tpu.dot_dimension_numbers<[1], [0], [0], [1], [0, 0, 1, 1], [], []>} : vector<16x32xf32>, vector<32x128xf32>, vector<16x128xf32> -> vector<16x128xf32>
    %c0_88 = arith.constant 0 : index
    %c0_89 = arith.constant 0 : index
    %370 = vector.load %arg10[%c0_88, %c0_89] : memref<1x128xf32, #tpu.memory_space<vmem>>, vector<1x128xf32>
    %371 = vector.broadcast %370 : vector<1x128xf32> to vector<16x128xf32>
    %372 = arith.addf %369, %371 : vector<16x128xf32>
    %cst_90 = arith.constant dense<0xFF800000> : vector<16xf32>
    %373 = vector.multi_reduction <maximumf>, %372, %cst_90 [1] : vector<16x128xf32> to vector<16xf32>
    %374 = vector.shape_cast %373 : vector<16xf32> to vector<16x1xf32>
    %375 = vector.broadcast %374 : vector<16x1xf32> to vector<16x128xf32>
    %376 = arith.subf %372, %375 : vector<16x128xf32>
    %377 = math.exp %376 : vector<16x128xf32>
    %cst_91 = arith.constant dense<0.000000e+00> : vector<16xf32>
    %378 = vector.multi_reduction <add>, %377, %cst_91 [1] : vector<16x128xf32> to vector<16xf32>
    %379 = vector.shape_cast %378 : vector<16xf32> to vector<16x1xf32>
    %380 = math.log %379 : vector<16x1xf32>
    %381 = arith.addf %380, %374 : vector<16x1xf32>
    %382 = vector.broadcast %381 : vector<16x1xf32> to vector<16x128xf32>
    %383 = arith.subf %372, %382 : vector<16x128xf32>
    %c0_92 = arith.constant 0 : index
    %c0_93 = arith.constant 0 : index
    %384 = vector.load %arg11[%c0_92, %c0_93] : memref<16x128xf32, #tpu.memory_space<vmem>>, vector<16x128xf32>
    tpu.vector_store %arg11[%c0_92, %c0_93], %383 {strides = array<i32>} : memref<16x128xf32, #tpu.memory_space<vmem>>, vector<16x128xf32>,
    return
  }
}

</mosaic_0001>

<llo_original>
// kernel: tpu_custom_call.1
$region0: #{tpu_custom_call.1}
  #allocation0 [shape = 'u32[]', space=smem, size = 0x4, offset = 0x4, fixed_abs, tag = 'smem constant byte address 0x4 - core index']
  #allocation1 [shape = 'u32[144,128]{1,0:T(1,128)}', space=vmem, size = 0x12000, scoped, tag = 'internal scratch']
  %s0 = inlined_call_operand.hbm [shape: f32[16,32], index: 0, kind: input, shape index: {}]
  %s1 = inlined_call_operand.vmem [shape: f32[8,8,8], index: 1, kind: input, shape index: {}]
  %s2 = inlined_call_operand.vmem [shape: f32[2,32,96], index: 2, kind: input, shape index: {}]
  %s3 = inlined_call_operand.vmem [shape: f32[2,32,32], index: 3, kind: input, shape index: {}]
  %s4 = inlined_call_operand.hbm [shape: f32[2,32,64], index: 4, kind: input, shape index: {}]
  %s5 = inlined_call_operand.vmem [shape: f32[2,64,32], index: 5, kind: input, shape index: {}]
  %s6 = inlined_call_operand.vmem [shape: f32[2,9,32], index: 6, kind: input, shape index: {}]
  %s7 = inlined_call_operand.vmem [shape: f32[2,1,64], index: 7, kind: input, shape index: {}]
  %s8 = inlined_call_operand.vmem [shape: f32[2,32], index: 8, kind: input, shape index: {}]
  %s9 = inlined_call_operand.hbm [shape: f32[32,128], index: 9, kind: input, shape index: {}]
  %s10 = inlined_call_operand.vmem [shape: f32[1,128], index: 10, kind: input, shape index: {}]
  %s11 = inlined_call_operand.hbm [shape: f32[16,128], index: 11, kind: output, shape index: {}]
  %s12 = sld [smem:[#allocation0]]
  $region66: #{tpu_custom_call.1} parent=0
    _
  %s14 = ssub.s32 1, %s12
  %s15 = scalar_select 0, %s14, %s12
  $region1: #{tpu_custom_call.1} parent=0
    #allocation2 [shape = 'u8[8192]{0}', space=vmem, size = 0x2000, scoped, tag = 'input window, operand 0, single buffered']
    #allocation3 [shape = 's32[1]{0}', space=sflag, size = 0x4, scoped, tag = 'scoped memory for tpu_custom_call.1']
    #allocation4 [shape = 's32[1]{0}', space=sflag, size = 0x4, scoped, tag = 'scoped memory for tpu_custom_call.1']
    #allocation5 [shape = 'u8[32768]{0}', space=vmem, size = 0x8000, scoped, tag = 'input window, operand 4, single buffered']
    #allocation6 [shape = 's32[1]{0}', space=sflag, size = 0x4, scoped, tag = 'scoped memory for tpu_custom_call.1']
    #allocation7 [shape = 'u8[16384]{0}', space=vmem, size = 0x4000, scoped, tag = 'input window, operand 9, single buffered']
    #allocation8 [shape = 'u8[8192]{0}', space=vmem, size = 0x2000, scoped, tag = 'output window, operand 0, single buffered']
    %16 = vsyncpa [#allocation3], 0
    %17 = vsyncpa [#allocation6], 0
    %18 = vsyncpa [#allocation4], 0
    // Predicated region
    $region2: #{tpu_custom_call.1} parent=1 // pred_check
      _
    $region3: #{tpu_custom_call.1} parent=1 // pred_check_branch
      %20 = sbr.rel (0) target = $region5
    $region4: #{tpu_custom_call.1} parent=1 // pred_region
      %s22 = ssub.s32 256, 256
      %23 = vsyncadd [#allocation3], %s22
      %s24 = sshll.u32 [#allocation2], 4
      %s25 = int_to_ptr.vmem [resolvable:$true] %s24
      %30 = dma.hbm_to_vmem [thread:$0]  %s0, 256, %s25, [#allocation3], 128, 128, 8
    $region5: #{tpu_custom_call.1} parent=1 // pred_fallthru
      _
    // Predicated region
    $region6: #{tpu_custom_call.1} parent=1 // pred_check
      _
    $region7: #{tpu_custom_call.1} parent=1 // pred_check_branch
      %32 = sbr.rel (0) target = $region9
    $region8: #{tpu_custom_call.1} parent=1 // pred_region
      _
    $region9: #{tpu_custom_call.1} parent=1 // pred_fallthru
      _
    // Predicated region
    $region10: #{tpu_custom_call.1} parent=1 // pred_check
      _
    $region11: #{tpu_custom_call.1} parent=1 // pred_check_branch
      %34 = sbr.rel (0) target = $region13
    $region12: #{tpu_custom_call.1} parent=1 // pred_region
      _
    $region13: #{tpu_custom_call.1} parent=1 // pred_fallthru
      _
    // Predicated region
    $region14: #{tpu_custom_call.1} parent=1 // pred_check
      _
    $region15: #{tpu_custom_call.1} parent=1 // pred_check_branch
      %36 = sbr.rel (0) target = $region17
    $region16: #{tpu_custom_call.1} parent=1 // pred_region
      _
    $region17: #{tpu_custom_call.1} parent=1 // pred_fallthru
      _
    // Predicated region
    $region18: #{tpu_custom_call.1} parent=1 // pred_check
      _
    $region19: #{tpu_custom_call.1} parent=1 // pred_check_branch
      %38 = sbr.rel (0) target = $region21
    $region20: #{tpu_custom_call.1} parent=1 // pred_region
      %s40 = ssub.s32 1024, 1024
      %41 = vsyncadd [#allocation6], %s40
      %s42 = sshll.u32 [#allocation5], 4
      %s43 = int_to_ptr.vmem [resolvable:$true] %s42
      %48 = dma.hbm_to_vmem [thread:$0]  %s4, 1024, %s43, [#allocation6], 128, 128, 8
    $region21: #{tpu_custom_call.1} parent=1 // pred_fallthru
      _
    // Predicated region
    $region22: #{tpu_custom_call.1} parent=1 // pred_check
      _
    $region23: #{tpu_custom_call.1} parent=1 // pred_check_branch
      %50 = sbr.rel (0) target = $region25
    $region24: #{tpu_custom_call.1} parent=1 // pred_region
      _
    $region25: #{tpu_custom_call.1} parent=1 // pred_fallthru
      _
    // Predicated region
    $region26: #{tpu_custom_call.1} parent=1 // pred_check
      _
    $region27: #{tpu_custom_call.1} parent=1 // pred_check_branch
      %52 = sbr.rel (0) target = $region29
    $region28: #{tpu_custom_call.1} parent=1 // pred_region
      _
    $region29: #{tpu_custom_call.1} parent=1 // pred_fallthru
      _
    // Predicated region
    $region30: #{tpu_custom_call.1} parent=1 // pred_check
      _
    $region31: #{tpu_custom_call.1} parent=1 // pred_check_branch
      %54 = sbr.rel (0) target = $region33
    $region32: #{tpu_custom_call.1} parent=1 // pred_region
      _
    $region33: #{tpu_custom_call.1} parent=1 // pred_fallthru
      _
    // Predicated region
    $region34: #{tpu_custom_call.1} parent=1 // pred_check
      _
    $region35: #{tpu_custom_call.1} parent=1 // pred_check_branch
      %56 = sbr.rel (0) target = $region37
    $region36: #{tpu_custom_call.1} parent=1 // pred_region
      _
    $region37: #{tpu_custom_call.1} parent=1 // pred_fallthru
      _
    // Predicated region
    $region38: #{tpu_custom_call.1} parent=1 // pred_check
      _
    $region39: #{tpu_custom_call.1} parent=1 // pred_check_branch
      %58 = sbr.rel (0) target = $region41
    $region40: #{tpu_custom_call.1} parent=1 // pred_region
      %s60 = ssub.s32 512, 512
      %61 = vsyncadd [#allocation6], %s60
      %s62 = sshll.u32 [#allocation7], 4
      %s63 = int_to_ptr.vmem [resolvable:$true] %s62
      %68 = dma.hbm_to_vmem [thread:$0]  %s9, 512, %s63, [#allocation6], 128, 128, 8
    $region41: #{tpu_custom_call.1} parent=1 // pred_fallthru
      _
    // Predicated region
    $region42: #{tpu_custom_call.1} parent=1 // pred_check
      _
    $region43: #{tpu_custom_call.1} parent=1 // pred_check_branch
      %70 = sbr.rel (0) target = $region45
    $region44: #{tpu_custom_call.1} parent=1 // pred_region
      _
    $region45: #{tpu_custom_call.1} parent=1 // pred_fallthru
      _
    // Predicated region
    $region46: #{tpu_custom_call.1} parent=1 // pred_check
      _
    $region47: #{tpu_custom_call.1} parent=1 // pred_check_branch
      %72 = sbr.rel (0) target = $region49
    $region48: #{tpu_custom_call.1} parent=1 // pred_region
      %73 = dma.done [#allocation3], 256
    $region49: #{tpu_custom_call.1} parent=1 // pred_fallthru
      _
    // Predicated region
    $region50: #{tpu_custom_call.1} parent=1 // pred_check
      _
    $region51: #{tpu_custom_call.1} parent=1 // pred_check_branch
      %75 = sbr.rel (0) target = $region53
    $region52: #{tpu_custom_call.1} parent=1 // pred_region
      %76 = dma.done [#allocation6], 1024
    $region53: #{tpu_custom_call.1} parent=1 // pred_fallthru
      _
    // Predicated region
    $region54: #{tpu_custom_call.1} parent=1 // pred_check
      _
    $region55: #{tpu_custom_call.1} parent=1 // pred_check_branch
      %78 = sbr.rel (0) target = $region57
    $region56: #{tpu_custom_call.1} parent=1 // pred_region
      %79 = dma.done [#allocation6], 512
    $region57: #{tpu_custom_call.1} parent=1 // pred_fallthru
      _
    %v80 = vld [vmem:[#allocation2] sm:$0xff]
    %v81 = vld [vmem:[#allocation2 + $0x8] sm:$0xff]
    %v82 = vld [vmem:[%s1] sm:$0xff]
    %v83 = vld [vmem:[%s1 + $0x8] sm:$0xff]
    %v84 = vld [vmem:[%s1 + $0x10] sm:$0xff]
    %v85 = vld [vmem:[%s1 + $0x18] sm:$0xff]
    %v86 = vld [vmem:[%s1 + $0x20] sm:$0xff]
    %v87 = vld [vmem:[%s1 + $0x28] sm:$0xff]
    %v88 = vld [vmem:[%s1 + $0x30] sm:$0xff]
    %v89 = vld [vmem:[%s1 + $0x38] sm:$0xff]
    %v90 = vld [vmem:[%s2] sm:$0xff]
    %v91 = vld [vmem:[%s2 + $0x8] sm:$0xff]
    %v92 = vld [vmem:[%s2 + $0x10] sm:$0xff]
    %v93 = vld [vmem:[%s2 + $0x18] sm:$0xff]
    %v94 = vld [vmem:[%s3] sm:$0xff]
    %v95 = vld [vmem:[%s3 + $0x8] sm:$0xff]
    %v96 = vld [vmem:[%s3 + $0x10] sm:$0xff]
    %v97 = vld [vmem:[%s3 + $0x18] sm:$0xff]
    %v98 = vld [vmem:[#allocation5] sm:$0xff]
    %v99 = vld [vmem:[#allocation5 + $0x8] sm:$0xff]
    %v100 = vld [vmem:[#allocation5 + $0x10] sm:$0xff]
    %v101 = vld [vmem:[#allocation5 + $0x18] sm:$0xff]
    %v102 = vld [vmem:[%s5] sm:$0xff]
    %v103 = vld [vmem:[%s5 + $0x8] sm:$0xff]
    %v104 = vld [vmem:[%s5 + $0x10] sm:$0xff]
    %v105 = vld [vmem:[%s5 + $0x18] sm:$0xff]
    %v106 = vld [vmem:[%s5 + $0x20] sm:$0xff]
    %v107 = vld [vmem:[%s5 + $0x28] sm:$0xff]
    %v108 = vld [vmem:[%s5 + $0x30] sm:$0xff]
    %v109 = vld [vmem:[%s5 + $0x38] sm:$0xff]
    %v110 = vld [vmem:[%s6] sm:$0xff]
    %v111 = vld [vmem:[%s6 + $0x8] sm:$0x1]
    %v112 = vld [vmem:[%s7] sm:$0x1]
    %vm113 = vcmask 261120
    %v114 = vsel %vm113, %v80, 0.0
    %115 = vadd.xlane.f32.xlu0 %v114
    %v116 = vpop.xlane.xlu0 %115
    %v117 = vsel %vm113, %v81, 0.0
    %118 = vadd.xlane.f32.xlu0 %v117
    %v119 = vpop.xlane.xlu0 %118
    %v120 = vrcp.pop 32.0
    %v121 = vmul.f32 %v116, %v120
    %v122 = vmul.f32 %v119, %v120
    %v123 = vsub.f32 %v80, %v121
    %v124 = vsub.f32 %v81, %v122
    %v125 = vmul.f32 %v123, %v123
    %v126 = vmul.f32 %v124, %v124
    %v127 = vsel %vm113, %v125, 0.0
    %128 = vadd.xlane.f32.xlu0 %v127
    %v129 = vpop.xlane.xlu0 %128
    %v130 = vsel %vm113, %v126, 0.0
    %131 = vadd.xlane.f32.xlu0 %v130
    %v132 = vpop.xlane.xlu0 %131
    %v133 = vmul.f32 %v129, 0.032258064
    %v134 = vmul.f32 %v132, 0.032258064
    %v135 = vrsqrt.pop %v133
    %v136 = vmul.f32 %v133, %v135
    %vm137 = vcmp.eq.f32.partialorder %v133, inf
    %v138 = vsel %vm137, %v133, %v136
    %vm139 = vcmp.eq.f32.partialorder %v133, 0.0
    %v140 = vand.u32 %v133, 2147483648
    %v141 = vsel %vm139, %v140, %v138
    %v142 = vrsqrt.pop %v134
    %v143 = vmul.f32 %v134, %v142
    %vm144 = vcmp.eq.f32.partialorder %v134, inf
    %v145 = vsel %vm144, %v134, %v143
    %vm146 = vcmp.eq.f32.partialorder %v134, 0.0
    %v147 = vand.u32 %v134, 2147483648
    %v148 = vsel %vm146, %v147, %v145
    %v149 = vadd.f32 %v141, 1e-06
    %v150 = vadd.f32 %v148, 1e-06
    %v151 = vrcp.pop %v149
    %v152 = vrcp.pop %v150
    %v153 = vmul.f32 %v123, %v151
    %v154 = vmul.f32 %v124, %v152
    %v155 = vlaneseq
    %v156 = vshrl.u32 %v155, 7
    %v157 = vsub.s32 5, %v156
    %v158 = vrot.slane %v110, %v157
    %v159 = vmul.f32 %v158, %v153
    %v160 = vmul.f32 %v158, %v154
    %v161 = vlaneseq
    %v162 = vshrl.u32 %v161, 7
    %v163 = vsub.s32 6, %v162
    %v164 = vrot.slane %v110, %v163
    %v165 = vadd.f32 %v159, %v164
    %v166 = vadd.f32 %v160, %v164
    %v168 = vsel %vm113, %v165, 0
    %v171 = vsel %vm113, %v166, 0
    %173 = vmatprep.subr.mxu0 0.0
    %174 = vmatpush1.msra.mxu0 %v90
    %175 = vmatprep.subr.mxu0 0.0
    %176 = vmatpush1.msra.mxu0 %v91
    %177 = vmatprep.subr.mxu0 0.0
    %178 = vmatpush1.msra.mxu0 %v92
    %179 = vmatprep.subr.mxu0 0.0
    %180 = vmatpush1.msra.mxu0 %v93
    %181 = vmatprep.subr.mxu0 0.0
    %182 = vmatpush1.msra.mxu0 0.0
    %183 = vmatprep.subr.mxu0 0.0
    %184 = vmatpush1.msra.mxu0 0.0
    %185 = vmatprep.subr.mxu0 0.0
    %186 = vmatpush1.msra.mxu0 0.0
    %187 = vmatprep.subr.mxu0 0.0
    %188 = vmatpush1.msra.mxu0 0.0
    %189 = vmatprep.subr.mxu0 0.0
    %190 = vmatpush1.msra.mxu0 0.0
    %191 = vmatprep.subr.mxu0 0.0
    %192 = vmatpush1.msra.mxu0 0.0
    %193 = vmatprep.subr.mxu0 0.0
    %194 = vmatpush1.msra.mxu0 0.0
    %195 = vmatprep.subr.mxu0 0.0
    %196 = vmatpush1.msra.mxu0 0.0
    %197 = vmatprep.subr.mxu0 0.0
    %198 = vmatpush1.msra.mxu0 0.0
    %199 = vmatprep.subr.mxu0 0.0
    %200 = vmatpush1.msra.mxu0 0.0
    %201 = vmatprep.subr.mxu0 0.0
    %202 = vmatpush1.msra.mxu0 0.0
    %203 = vmatprep.subr.mxu0 0.0
    %204 = vmatpush1.msra.mxu0 0.0
    %205 = vmatprep.subr.mxu0 0.0
    %206 = vmatpush1.msra.mxu0 0.0
    %207 = vmatprep.subr.mxu0 0.0
    %208 = vmatpush1.msra.mxu0 0.0
    %209 = vmatprep.subr.mxu0 0.0
    %210 = vmatpush1.msra.mxu0 0.0
    %211 = vmatprep.subr.mxu0 0.0
    %212 = vmatpush1.msra.mxu0 0.0
    %213 = vmatprep.subr.mxu0 0.0
    %214 = vmatpush1.msra.mxu0 0.0
    %215 = vmatprep.subr.mxu0 0.0
    %216 = vmatpush1.msra.mxu0 0.0
    %217 = vmatprep.subr.mxu0 0.0
    %218 = vmatpush1.msra.mxu0 0.0
    %219 = vmatprep.subr.mxu0 0.0
    %220 = vmatpush1.msra.mxu0 0.0
    %221 = vmatprep.subr.mxu0 0.0
    %222 = vmatpush1.msra.mxu0 0.0
    %223 = vmatprep.subr.mxu0 0.0
    %224 = vmatpush1.msra.mxu0 0.0
    %225 = vmatprep.subr.mxu0 0.0
    %226 = vmatpush1.msra.mxu0 0.0
    %227 = vmatprep.subr.mxu0 0.0
    %228 = vmatpush1.msra.mxu0 0.0
    %229 = vmatprep.subr.mxu0 0.0
    %230 = vmatpush1.msra.mxu0 0.0
    %231 = vmatprep.subr.mxu0 0.0
    %232 = vmatpush1.msra.mxu0 0.0
    %233 = vmatprep.subr.mxu0 0.0
    %234 = vmatpush1.msra.mxu0 0.0
    %235 = vmatprep.subr.mxu0 0.0
    %236 = vmatpush1.msra.mxu0 0.0
    %237 = vmatprep.mubr.f32.mxu0 0.0
    %238 = vmatmul.mubr.f32.gmra.mrb[0].mxu0 %v168
    %v239 = vpop.f32.mrb[0].mxu0
    %v240 = vadd.f32 0.0, %v239
    %v241 = vpop.f32.mrb[0].mxu0
    %242 = vmatprep.mubr.f32.mxu0 0.0
    %243 = vmatmul.mubr.f32.gmra.mrb[0].mxu0 %v171
    %v244 = vpop.f32.mrb[0].mxu0
    %v245 = vadd.f32 0.0, %v244
    %v246 = vpop.f32.mrb[0].mxu0
    %247 = vdwg.mxu0
    %v248 = vlaneseq
    %v249 = vshrl.u32 %v248, 7
    %v250 = vsub.s32 0, %v249
    %v251 = vrot.slane %v110, %v250
    %v252 = vadd.f32 %v240, %v251
    %v253 = vadd.f32 %v245, %v251
    %v254 = vlaneseq
    %v255 = vshrl.u32 %v254, 7
    %v256 = vsub.s32 1, %v255
    %v257 = vrot.slane %v110, %v256
    %259 = vrot.lane.b32.xlu0 %v257, 32
    %v260 = vpop.permute.xlu0 %259
    %v262 = vadd.f32 %v240, %v260
    %v263 = vadd.f32 %v245, %v260
    %v264 = vlaneseq
    %v265 = vshrl.u32 %v264, 7
    %v266 = vsub.s32 2, %v265
    %v267 = vrot.slane %v110, %v266
    %269 = vrot.lane.b32.xlu0 %v267, 64
    %v270 = vpop.permute.xlu0 %269
    %v272 = vadd.f32 %v240, %v270
    %v273 = vadd.f32 %v245, %v270
    %275 = vrot.lane.b32.xlu0 %v252, 120
    %v276 = vpop.permute.xlu0 %275
    %277 = vrot.lane.b32.xlu0 %v252, 112
    %v278 = vpop.permute.xlu0 %277
    %279 = vrot.lane.b32.xlu0 %v252, 104
    %v280 = vpop.permute.xlu0 %279
    %282 = vrot.lane.b32.xlu0 %v253, 120
    %v283 = vpop.permute.xlu0 %282
    %284 = vrot.lane.b32.xlu0 %v253, 112
    %v285 = vpop.permute.xlu0 %284
    %286 = vrot.lane.b32.xlu0 %v253, 104
    %v287 = vpop.permute.xlu0 %286
    %289 = vrot.lane.b32.xlu0 %v262, 120
    %v290 = vpop.permute.xlu0 %289
    %291 = vrot.lane.b32.xlu0 %v262, 112
    %v292 = vpop.permute.xlu0 %291
    %293 = vrot.lane.b32.xlu0 %v262, 104
    %v294 = vpop.permute.xlu0 %293
    %296 = vrot.lane.b32.xlu0 %v263, 120
    %v297 = vpop.permute.xlu0 %296
    %298 = vrot.lane.b32.xlu0 %v263, 112
    %v299 = vpop.permute.xlu0 %298
    %300 = vrot.lane.b32.xlu0 %v263, 104
    %v301 = vpop.permute.xlu0 %300
    %303 = vrot.lane.b32.xlu0 %v272, 120
    %v304 = vpop.permute.xlu0 %303
    %305 = vrot.lane.b32.xlu0 %v272, 112
    %v306 = vpop.permute.xlu0 %305
    %307 = vrot.lane.b32.xlu0 %v272, 104
    %v308 = vpop.permute.xlu0 %307
    %310 = vrot.lane.b32.xlu0 %v273, 120
    %v311 = vpop.permute.xlu0 %310
    %312 = vrot.lane.b32.xlu0 %v273, 112
    %v313 = vpop.permute.xlu0 %312
    %314 = vrot.lane.b32.xlu0 %v273, 104
    %v315 = vpop.permute.xlu0 %314
    %316 = vrot.lane.b32.xlu0 %v262, 96
    %v317 = vpop.permute.xlu0 %316
    %vm318 = vcmask 64512
    %v319 = vsel %vm318, %v252, 0
    %v321 = vsel %vm318, %v317, 0
    %323 = vmatprep.subr.mxu0 0.0
    %324 = vmatpush1.xpose.msra.mxu0 %v321
    %325 = vmatprep.subr.mxu0 0.0
    %326 = vmatpush1.xpose.msra.mxu0 0.0
    %327 = vmatprep.subr.mxu0 0.0
    %328 = vmatpush1.xpose.msra.mxu0 0.0
    %329 = vmatprep.subr.mxu0 0.0
    %330 = vmatpush1.xpose.msra.mxu0 0.0
    %331 = vmatprep.subr.mxu0 0.0
    %332 = vmatpush1.xpose.msra.mxu0 0.0
    %333 = vmatprep.subr.mxu0 0.0
    %334 = vmatpush1.xpose.msra.mxu0 0.0
    %335 = vmatprep.subr.mxu0 0.0
    %336 = vmatpush1.xpose.msra.mxu0 0.0
    %337 = vmatprep.subr.mxu0 0.0
    %338 = vmatpush1.xpose.msra.mxu0 0.0
    %339 = vmatprep.subr.mxu0 0.0
    %340 = vmatpush1.xpose.msra.mxu0 0.0
    %341 = vmatprep.subr.mxu0 0.0
    %342 = vmatpush1.xpose.msra.mxu0 0.0
    %343 = vmatprep.subr.mxu0 0.0
    %344 = vmatpush1.xpose.msra.mxu0 0.0
    %345 = vmatprep.subr.mxu0 0.0
    %346 = vmatpush1.xpose.msra.mxu0 0.0
    %347 = vmatprep.subr.mxu0 0.0
    %348 = vmatpush1.xpose.msra.mxu0 0.0
    %349 = vmatprep.subr.mxu0 0.0
    %350 = vmatpush1.xpose.msra.mxu0 0.0
    %351 = vmatprep.subr.mxu0 0.0
    %352 = vmatpush1.xpose.msra.mxu0 0.0
    %353 = vmatprep.subr.mxu0 0.0
    %354 = vmatpush1.xpose.msra.mxu0 0.0
    %355 = vmatprep.subr.mxu0 0.0
    %356 = vmatpush1.xpose.msra.mxu0 0.0
    %357 = vmatprep.subr.mxu0 0.0
    %358 = vmatpush1.xpose.msra.mxu0 0.0
    %359 = vmatprep.subr.mxu0 0.0
    %360 = vmatpush1.xpose.msra.mxu0 0.0
    %361 = vmatprep.subr.mxu0 0.0
    %362 = vmatpush1.xpose.msra.mxu0 0.0
    %363 = vmatprep.subr.mxu0 0.0
    %364 = vmatpush1.xpose.msra.mxu0 0.0
    %365 = vmatprep.subr.mxu0 0.0
    %366 = vmatpush1.xpose.msra.mxu0 0.0
    %367 = vmatprep.subr.mxu0 0.0
    %368 = vmatpush1.xpose.msra.mxu0 0.0
    %369 = vmatprep.subr.mxu0 0.0
    %370 = vmatpush1.xpose.msra.mxu0 0.0
    %371 = vmatprep.subr.mxu0 0.0
    %372 = vmatpush1.xpose.msra.mxu0 0.0
    %373 = vmatprep.subr.mxu0 0.0
    %374 = vmatpush1.xpose.msra.mxu0 0.0
    %375 = vmatprep.subr.mxu0 0.0
    %376 = vmatpush1.xpose.msra.mxu0 0.0
    %377 = vmatprep.subr.mxu0 0.0
    %378 = vmatpush1.xpose.msra.mxu0 0.0
    %379 = vmatprep.subr.mxu0 0.0
    %380 = vmatpush1.xpose.msra.mxu0 0.0
    %381 = vmatprep.subr.mxu0 0.0
    %382 = vmatpush1.xpose.msra.mxu0 0.0
    %383 = vmatprep.subr.mxu0 0.0
    %384 = vmatpush1.xpose.msra.mxu0 0.0
    %385 = vmatprep.subr.mxu0 0.0
    %386 = vmatpush1.xpose.msra.mxu0 0.0
    %387 = vmatprep.mubr.f32.mxu0 0.0
    %388 = vmatmul.mubr.f32.gmra.mrb[0].mxu0 %v319
    %v389 = vpop.f32.mrb[0].mxu0
    %v390 = vadd.f32 0.0, %v389
    %v391 = vpop.f32.mrb[0].mxu0
    %392 = vdwg.mxu0
    %393 = vrot.lane.b32.xlu0 %v290, 96
    %v394 = vpop.permute.xlu0 %393
    %v395 = vsel %vm318, %v276, 0
    %v397 = vsel %vm318, %v394, 0
    %399 = vmatprep.subr.mxu0 0.0
    %400 = vmatpush1.xpose.msra.mxu0 %v397
    %401 = vmatprep.subr.mxu0 0.0
    %402 = vmatpush1.xpose.msra.mxu0 0.0
    %403 = vmatprep.subr.mxu0 0.0
    %404 = vmatpush1.xpose.msra.mxu0 0.0
    %405 = vmatprep.subr.mxu0 0.0
    %406 = vmatpush1.xpose.msra.mxu0 0.0
    %407 = vmatprep.subr.mxu0 0.0
    %408 = vmatpush1.xpose.msra.mxu0 0.0
    %409 = vmatprep.subr.mxu0 0.0
    %410 = vmatpush1.xpose.msra.mxu0 0.0
    %411 = vmatprep.subr.mxu0 0.0
    %412 = vmatpush1.xpose.msra.mxu0 0.0
    %413 = vmatprep.subr.mxu0 0.0
    %414 = vmatpush1.xpose.msra.mxu0 0.0
    %415 = vmatprep.subr.mxu0 0.0
    %416 = vmatpush1.xpose.msra.mxu0 0.0
    %417 = vmatprep.subr.mxu0 0.0
    %418 = vmatpush1.xpose.msra.mxu0 0.0
    %419 = vmatprep.subr.mxu0 0.0
    %420 = vmatpush1.xpose.msra.mxu0 0.0
    %421 = vmatprep.subr.mxu0 0.0
    %422 = vmatpush1.xpose.msra.mxu0 0.0
    %423 = vmatprep.subr.mxu0 0.0
    %424 = vmatpush1.xpose.msra.mxu0 0.0
    %425 = vmatprep.subr.mxu0 0.0
    %426 = vmatpush1.xpose.msra.mxu0 0.0
    %427 = vmatprep.subr.mxu0 0.0
    %428 = vmatpush1.xpose.msra.mxu0 0.0
    %429 = vmatprep.subr.mxu0 0.0
    %430 = vmatpush1.xpose.msra.mxu0 0.0
    %431 = vmatprep.subr.mxu0 0.0
    %432 = vmatpush1.xpose.msra.mxu0 0.0
    %433 = vmatprep.subr.mxu0 0.0
    %434 = vmatpush1.xpose.msra.mxu0 0.0
    %435 = vmatprep.subr.mxu0 0.0
    %436 = vmatpush1.xpose.msra.mxu0 0.0
    %437 = vmatprep.subr.mxu0 0.0
    %438 = vmatpush1.xpose.msra.mxu0 0.0
    %439 = vmatprep.subr.mxu0 0.0
    %440 = vmatpush1.xpose.msra.mxu0 0.0
    %441 = vmatprep.subr.mxu0 0.0
    %442 = vmatpush1.xpose.msra.mxu0 0.0
    %443 = vmatprep.subr.mxu0 0.0
    %444 = vmatpush1.xpose.msra.mxu0 0.0
    %445 = vmatprep.subr.mxu0 0.0
    %446 = vmatpush1.xpose.msra.mxu0 0.0
    %447 = vmatprep.subr.mxu0 0.0
    %448 = vmatpush1.xpose.msra.mxu0 0.0
    %449 = vmatprep.subr.mxu0 0.0
    %450 = vmatpush1.xpose.msra.mxu0 0.0
    %451 = vmatprep.subr.mxu0 0.0
    %452 = vmatpush1.xpose.msra.mxu0 0.0
    %453 = vmatprep.subr.mxu0 0.0
    %454 = vmatpush1.xpose.msra.mxu0 0.0
    %455 = vmatprep.subr.mxu0 0.0
    %456 = vmatpush1.xpose.msra.mxu0 0.0
    %457 = vmatprep.subr.mxu0 0.0
    %458 = vmatpush1.xpose.msra.mxu0 0.0
    %459 = vmatprep.subr.mxu0 0.0
    %460 = vmatpush1.xpose.msra.mxu0 0.0
    %461 = vmatprep.subr.mxu0 0.0
    %462 = vmatpush1.xpose.msra.mxu0 0.0
    %463 = vmatprep.mubr.f32.mxu0 0.0
    %464 = vmatmul.mubr.f32.gmra.mrb[0].mxu0 %v395
    %v465 = vpop.f32.mrb[0].mxu0
    %v466 = vadd.f32 0.0, %v465
    %v467 = vpop.f32.mrb[0].mxu0
    %468 = vdwg.mxu0
    %469 = vrot.lane.b32.xlu0 %v292, 96
    %v470 = vpop.permute.xlu0 %469
    %v471 = vsel %vm318, %v278, 0
    %v473 = vsel %vm318, %v470, 0
    %475 = vmatprep.subr.mxu0 0.0
    %476 = vmatpush1.xpose.msra.mxu0 %v473
    %477 = vmatprep.subr.mxu0 0.0
    %478 = vmatpush1.xpose.msra.mxu0 0.0
    %479 = vmatprep.subr.mxu0 0.0
    %480 = vmatpush1.xpose.msra.mxu0 0.0
    %481 = vmatprep.subr.mxu0 0.0
    %482 = vmatpush1.xpose.msra.mxu0 0.0
    %483 = vmatprep.subr.mxu0 0.0
    %484 = vmatpush1.xpose.msra.mxu0 0.0
    %485 = vmatprep.subr.mxu0 0.0
    %486 = vmatpush1.xpose.msra.mxu0 0.0
    %487 = vmatprep.subr.mxu0 0.0
    %488 = vmatpush1.xpose.msra.mxu0 0.0
    %489 = vmatprep.subr.mxu0 0.0
    %490 = vmatpush1.xpose.msra.mxu0 0.0
    %491 = vmatprep.subr.mxu0 0.0
    %492 = vmatpush1.xpose.msra.mxu0 0.0
    %493 = vmatprep.subr.mxu0 0.0
    %494 = vmatpush1.xpose.msra.mxu0 0.0
    %495 = vmatprep.subr.mxu0 0.0
    %496 = vmatpush1.xpose.msra.mxu0 0.0
    %497 = vmatprep.subr.mxu0 0.0
    %498 = vmatpush1.xpose.msra.mxu0 0.0
    %499 = vmatprep.subr.mxu0 0.0
    %500 = vmatpush1.xpose.msra.mxu0 0.0
    %501 = vmatprep.subr.mxu0 0.0
    %502 = vmatpush1.xpose.msra.mxu0 0.0
    %503 = vmatprep.subr.mxu0 0.0
    %504 = vmatpush1.xpose.msra.mxu0 0.0
    %505 = vmatprep.subr.mxu0 0.0
    %506 = vmatpush1.xpose.msra.mxu0 0.0
    %507 = vmatprep.subr.mxu0 0.0
    %508 = vmatpush1.xpose.msra.mxu0 0.0
    %509 = vmatprep.subr.mxu0 0.0
    %510 = vmatpush1.xpose.msra.mxu0 0.0
    %511 = vmatprep.subr.mxu0 0.0
    %512 = vmatpush1.xpose.msra.mxu0 0.0
    %513 = vmatprep.subr.mxu0 0.0
    %514 = vmatpush1.xpose.msra.mxu0 0.0
    %515 = vmatprep.subr.mxu0 0.0
    %516 = vmatpush1.xpose.msra.mxu0 0.0
    %517 = vmatprep.subr.mxu0 0.0
    %518 = vmatpush1.xpose.msra.mxu0 0.0
    %519 = vmatprep.subr.mxu0 0.0
    %520 = vmatpush1.xpose.msra.mxu0 0.0
    %521 = vmatprep.subr.mxu0 0.0
    %522 = vmatpush1.xpose.msra.mxu0 0.0
    %523 = vmatprep.subr.mxu0 0.0
    %524 = vmatpush1.xpose.msra.mxu0 0.0
    %525 = vmatprep.subr.mxu0 0.0
    %526 = vmatpush1.xpose.msra.mxu0 0.0
    %527 = vmatprep.subr.mxu0 0.0
    %528 = vmatpush1.xpose.msra.mxu0 0.0
    %529 = vmatprep.subr.mxu0 0.0
    %530 = vmatpush1.xpose.msra.mxu0 0.0
    %531 = vmatprep.subr.mxu0 0.0
    %532 = vmatpush1.xpose.msra.mxu0 0.0
    %533 = vmatprep.subr.mxu0 0.0
    %534 = vmatpush1.xpose.msra.mxu0 0.0
    %535 = vmatprep.subr.mxu0 0.0
    %536 = vmatpush1.xpose.msra.mxu0 0.0
    %537 = vmatprep.subr.mxu0 0.0
    %538 = vmatpush1.xpose.msra.mxu0 0.0
    %539 = vmatprep.mubr.f32.mxu0 0.0
    %540 = vmatmul.mubr.f32.gmra.mrb[0].mxu0 %v471
    %v541 = vpop.f32.mrb[0].mxu0
    %v542 = vadd.f32 0.0, %v541
    %v543 = vpop.f32.mrb[0].mxu0
    %544 = vdwg.mxu0
    %545 = vrot.lane.b32.xlu0 %v294, 96
    %v546 = vpop.permute.xlu0 %545
    %v547 = vsel %vm318, %v280, 0
    %v549 = vsel %vm318, %v546, 0
    %551 = vmatprep.subr.mxu0 0.0
    %552 = vmatpush1.xpose.msra.mxu0 %v549
    %553 = vmatprep.subr.mxu0 0.0
    %554 = vmatpush1.xpose.msra.mxu0 0.0
    %555 = vmatprep.subr.mxu0 0.0
    %556 = vmatpush1.xpose.msra.mxu0 0.0
    %557 = vmatprep.subr.mxu0 0.0
    %558 = vmatpush1.xpose.msra.mxu0 0.0
    %559 = vmatprep.subr.mxu0 0.0
    %560 = vmatpush1.xpose.msra.mxu0 0.0
    %561 = vmatprep.subr.mxu0 0.0
    %562 = vmatpush1.xpose.msra.mxu0 0.0
    %563 = vmatprep.subr.mxu0 0.0
    %564 = vmatpush1.xpose.msra.mxu0 0.0
    %565 = vmatprep.subr.mxu0 0.0
    %566 = vmatpush1.xpose.msra.mxu0 0.0
    %567 = vmatprep.subr.mxu0 0.0
    %568 = vmatpush1.xpose.msra.mxu0 0.0
    %569 = vmatprep.subr.mxu0 0.0
    %570 = vmatpush1.xpose.msra.mxu0 0.0
    %571 = vmatprep.subr.mxu0 0.0
    %572 = vmatpush1.xpose.msra.mxu0 0.0
    %573 = vmatprep.subr.mxu0 0.0
    %574 = vmatpush1.xpose.msra.mxu0 0.0
    %575 = vmatprep.subr.mxu0 0.0
    %576 = vmatpush1.xpose.msra.mxu0 0.0
    %577 = vmatprep.subr.mxu0 0.0
    %578 = vmatpush1.xpose.msra.mxu0 0.0
    %579 = vmatprep.subr.mxu0 0.0
    %580 = vmatpush1.xpose.msra.mxu0 0.0
    %581 = vmatprep.subr.mxu0 0.0
    %582 = vmatpush1.xpose.msra.mxu0 0.0
    %583 = vmatprep.subr.mxu0 0.0
    %584 = vmatpush1.xpose.msra.mxu0 0.0
    %585 = vmatprep.subr.mxu0 0.0
    %586 = vmatpush1.xpose.msra.mxu0 0.0
    %587 = vmatprep.subr.mxu0 0.0
    %588 = vmatpush1.xpose.msra.mxu0 0.0
    %589 = vmatprep.subr.mxu0 0.0
    %590 = vmatpush1.xpose.msra.mxu0 0.0
    %591 = vmatprep.subr.mxu0 0.0
    %592 = vmatpush1.xpose.msra.mxu0 0.0
    %593 = vmatprep.subr.mxu0 0.0
    %594 = vmatpush1.xpose.msra.mxu0 0.0
    %595 = vmatprep.subr.mxu0 0.0
    %596 = vmatpush1.xpose.msra.mxu0 0.0
    %597 = vmatprep.subr.mxu0 0.0
    %598 = vmatpush1.xpose.msra.mxu0 0.0
    %599 = vmatprep.subr.mxu0 0.0
    %600 = vmatpush1.xpose.msra.mxu0 0.0
    %601 = vmatprep.subr.mxu0 0.0
    %602 = vmatpush1.xpose.msra.mxu0 0.0
    %603 = vmatprep.subr.mxu0 0.0
    %604 = vmatpush1.xpose.msra.mxu0 0.0
    %605 = vmatprep.subr.mxu0 0.0
    %606 = vmatpush1.xpose.msra.mxu0 0.0
    %607 = vmatprep.subr.mxu0 0.0
    %608 = vmatpush1.xpose.msra.mxu0 0.0
    %609 = vmatprep.subr.mxu0 0.0
    %610 = vmatpush1.xpose.msra.mxu0 0.0
    %611 = vmatprep.subr.mxu0 0.0
    %612 = vmatpush1.xpose.msra.mxu0 0.0
    %613 = vmatprep.subr.mxu0 0.0
    %614 = vmatpush1.xpose.msra.mxu0 0.0
    %615 = vmatprep.mubr.f32.mxu0 0.0
    %616 = vmatmul.mubr.f32.gmra.mrb[0].mxu0 %v547
    %v617 = vpop.f32.mrb[0].mxu0
    %v618 = vadd.f32 0.0, %v617
    %v619 = vpop.f32.mrb[0].mxu0
    %620 = vdwg.mxu0
    %621 = vrot.lane.b32.xlu0 %v263, 96
    %v622 = vpop.permute.xlu0 %621
    %v623 = vsel %vm318, %v253, 0
    %v625 = vsel %vm318, %v622, 0
    %627 = vmatprep.subr.mxu0 0.0
    %628 = vmatpush1.xpose.msra.mxu0 %v625
    %629 = vmatprep.subr.mxu0 0.0
    %630 = vmatpush1.xpose.msra.mxu0 0.0
    %631 = vmatprep.subr.mxu0 0.0
    %632 = vmatpush1.xpose.msra.mxu0 0.0
    %633 = vmatprep.subr.mxu0 0.0
    %634 = vmatpush1.xpose.msra.mxu0 0.0
    %635 = vmatprep.subr.mxu0 0.0
    %636 = vmatpush1.xpose.msra.mxu0 0.0
    %637 = vmatprep.subr.mxu0 0.0
    %638 = vmatpush1.xpose.msra.mxu0 0.0
    %639 = vmatprep.subr.mxu0 0.0
    %640 = vmatpush1.xpose.msra.mxu0 0.0
    %641 = vmatprep.subr.mxu0 0.0
    %642 = vmatpush1.xpose.msra.mxu0 0.0
    %643 = vmatprep.subr.mxu0 0.0
    %644 = vmatpush1.xpose.msra.mxu0 0.0
    %645 = vmatprep.subr.mxu0 0.0
    %646 = vmatpush1.xpose.msra.mxu0 0.0
    %647 = vmatprep.subr.mxu0 0.0
    %648 = vmatpush1.xpose.msra.mxu0 0.0
    %649 = vmatprep.subr.mxu0 0.0
    %650 = vmatpush1.xpose.msra.mxu0 0.0
    %651 = vmatprep.subr.mxu0 0.0
    %652 = vmatpush1.xpose.msra.mxu0 0.0
    %653 = vmatprep.subr.mxu0 0.0
    %654 = vmatpush1.xpose.msra.mxu0 0.0
    %655 = vmatprep.subr.mxu0 0.0
    %656 = vmatpush1.xpose.msra.mxu0 0.0
    %657 = vmatprep.subr.mxu0 0.0
    %658 = vmatpush1.xpose.msra.mxu0 0.0
    %659 = vmatprep.subr.mxu0 0.0
    %660 = vmatpush1.xpose.msra.mxu0 0.0
    %661 = vmatprep.subr.mxu0 0.0
    %662 = vmatpush1.xpose.msra.mxu0 0.0
    %663 = vmatprep.subr.mxu0 0.0
    %664 = vmatpush1.xpose.msra.mxu0 0.0
    %665 = vmatprep.subr.mxu0 0.0
    %666 = vmatpush1.xpose.msra.mxu0 0.0
    %667 = vmatprep.subr.mxu0 0.0
    %668 = vmatpush1.xpose.msra.mxu0 0.0
    %669 = vmatprep.subr.mxu0 0.0
    %670 = vmatpush1.xpose.msra.mxu0 0.0
    %671 = vmatprep.subr.mxu0 0.0
    %672 = vmatpush1.xpose.msra.mxu0 0.0
    %673 = vmatprep.subr.mxu0 0.0
    %674 = vmatpush1.xpose.msra.mxu0 0.0
    %675 = vmatprep.subr.mxu0 0.0
    %676 = vmatpush1.xpose.msra.mxu0 0.0
    %677 = vmatprep.subr.mxu0 0.0
    %678 = vmatpush1.xpose.msra.mxu0 0.0
    %679 = vmatprep.subr.mxu0 0.0
    %680 = vmatpush1.xpose.msra.mxu0 0.0
    %681 = vmatprep.subr.mxu0 0.0
    %682 = vmatpush1.xpose.msra.mxu0 0.0
    %683 = vmatprep.subr.mxu0 0.0
    %684 = vmatpush1.xpose.msra.mxu0 0.0
    %685 = vmatprep.subr.mxu0 0.0
    %686 = vmatpush1.xpose.msra.mxu0 0.0
    %687 = vmatprep.subr.mxu0 0.0
    %688 = vmatpush1.xpose.msra.mxu0 0.0
    %689 = vmatprep.subr.mxu0 0.0
    %690 = vmatpush1.xpose.msra.mxu0 0.0
    %691 = vmatprep.mubr.f32.mxu0 0.0
    %692 = vmatmul.mubr.f32.gmra.mrb[0].mxu0 %v623
    %v693 = vpop.f32.mrb[0].mxu0
    %v694 = vadd.f32 0.0, %v693
    %v695 = vpop.f32.mrb[0].mxu0
    %696 = vdwg.mxu0
    %697 = vrot.lane.b32.xlu0 %v297, 96
    %v698 = vpop.permute.xlu0 %697
    %v699 = vsel %vm318, %v283, 0
    %v701 = vsel %vm318, %v698, 0
    %703 = vmatprep.subr.mxu0 0.0
    %704 = vmatpush1.xpose.msra.mxu0 %v701
    %705 = vmatprep.subr.mxu0 0.0
    %706 = vmatpush1.xpose.msra.mxu0 0.0
    %707 = vmatprep.subr.mxu0 0.0
    %708 = vmatpush1.xpose.msra.mxu0 0.0
    %709 = vmatprep.subr.mxu0 0.0
    %710 = vmatpush1.xpose.msra.mxu0 0.0
    %711 = vmatprep.subr.mxu0 0.0
    %712 = vmatpush1.xpose.msra.mxu0 0.0
    %713 = vmatprep.subr.mxu0 0.0
    %714 = vmatpush1.xpose.msra.mxu0 0.0
    %715 = vmatprep.subr.mxu0 0.0
    %716 = vmatpush1.xpose.msra.mxu0 0.0
    %717 = vmatprep.subr.mxu0 0.0
    %718 = vmatpush1.xpose.msra.mxu0 0.0
    %719 = vmatprep.subr.mxu0 0.0
    %720 = vmatpush1.xpose.msra.mxu0 0.0
    %721 = vmatprep.subr.mxu0 0.0
    %722 = vmatpush1.xpose.msra.mxu0 0.0
    %723 = vmatprep.subr.mxu0 0.0
    %724 = vmatpush1.xpose.msra.mxu0 0.0
    %725 = vmatprep.subr.mxu0 0.0
    %726 = vmatpush1.xpose.msra.mxu0 0.0
    %727 = vmatprep.subr.mxu0 0.0
    %728 = vmatpush1.xpose.msra.mxu0 0.0
    %729 = vmatprep.subr.mxu0 0.0
    %730 = vmatpush1.xpose.msra.mxu0 0.0
    %731 = vmatprep.subr.mxu0 0.0
    %732 = vmatpush1.xpose.msra.mxu0 0.0
    %733 = vmatprep.subr.mxu0 0.0
    %734 = vmatpush1.xpose.msra.mxu0 0.0
    %735 = vmatprep.subr.mxu0 0.0
    %736 = vmatpush1.xpose.msra.mxu0 0.0
    %737 = vmatprep.subr.mxu0 0.0
    %738 = vmatpush1.xpose.msra.mxu0 0.0
    %739 = vmatprep.subr.mxu0 0.0
    %740 = vmatpush1.xpose.msra.mxu0 0.0
    %741 = vmatprep.subr.mxu0 0.0
    %742 = vmatpush1.xpose.msra.mxu0 0.0
    %743 = vmatprep.subr.mxu0 0.0
    %744 = vmatpush1.xpose.msra.mxu0 0.0
    %745 = vmatprep.subr.mxu0 0.0
    %746 = vmatpush1.xpose.msra.mxu0 0.0
    %747 = vmatprep.subr.mxu0 0.0
    %748 = vmatpush1.xpose.msra.mxu0 0.0
    %749 = vmatprep.subr.mxu0 0.0
    %750 = vmatpush1.xpose.msra.mxu0 0.0
    %751 = vmatprep.subr.mxu0 0.0
    %752 = vmatpush1.xpose.msra.mxu0 0.0
    %753 = vmatprep.subr.mxu0 0.0
    %754 = vmatpush1.xpose.msra.mxu0 0.0
    %755 = vmatprep.subr.mxu0 0.0
    %756 = vmatpush1.xpose.msra.mxu0 0.0
    %757 = vmatprep.subr.mxu0 0.0
    %758 = vmatpush1.xpose.msra.mxu0 0.0
    %759 = vmatprep.subr.mxu0 0.0
    %760 = vmatpush1.xpose.msra.mxu0 0.0
    %761 = vmatprep.subr.mxu0 0.0
    %762 = vmatpush1.xpose.msra.mxu0 0.0
    %763 = vmatprep.subr.mxu0 0.0
    %764 = vmatpush1.xpose.msra.mxu0 0.0
    %765 = vmatprep.subr.mxu0 0.0
    %766 = vmatpush1.xpose.msra.mxu0 0.0
    %767 = vmatprep.mubr.f32.mxu0 0.0
    %768 = vmatmul.mubr.f32.gmra.mrb[0].mxu0 %v699
    %v769 = vpop.f32.mrb[0].mxu0
    %v770 = vadd.f32 0.0, %v769
    %v771 = vpop.f32.mrb[0].mxu0
    %772 = vdwg.mxu0
    %773 = vrot.lane.b32.xlu0 %v299, 96
    %v774 = vpop.permute.xlu0 %773
    %v775 = vsel %vm318, %v285, 0
    %v777 = vsel %vm318, %v774, 0
    %779 = vmatprep.subr.mxu0 0.0
    %780 = vmatpush1.xpose.msra.mxu0 %v777
    %781 = vmatprep.subr.mxu0 0.0
    %782 = vmatpush1.xpose.msra.mxu0 0.0
    %783 = vmatprep.subr.mxu0 0.0
    %784 = vmatpush1.xpose.msra.mxu0 0.0
    %785 = vmatprep.subr.mxu0 0.0
    %786 = vmatpush1.xpose.msra.mxu0 0.0
    %787 = vmatprep.subr.mxu0 0.0
    %788 = vmatpush1.xpose.msra.mxu0 0.0
    %789 = vmatprep.subr.mxu0 0.0
    %790 = vmatpush1.xpose.msra.mxu0 0.0
    %791 = vmatprep.subr.mxu0 0.0
    %792 = vmatpush1.xpose.msra.mxu0 0.0
    %793 = vmatprep.subr.mxu0 0.0
    %794 = vmatpush1.xpose.msra.mxu0 0.0
    %795 = vmatprep.subr.mxu0 0.0
    %796 = vmatpush1.xpose.msra.mxu0 0.0
    %797 = vmatprep.subr.mxu0 0.0
    %798 = vmatpush1.xpose.msra.mxu0 0.0
    %799 = vmatprep.subr.mxu0 0.0
    %800 = vmatpush1.xpose.msra.mxu0 0.0
    %801 = vmatprep.subr.mxu0 0.0
    %802 = vmatpush1.xpose.msra.mxu0 0.0
    %803 = vmatprep.subr.mxu0 0.0
    %804 = vmatpush1.xpose.msra.mxu0 0.0
    %805 = vmatprep.subr.mxu0 0.0
    %806 = vmatpush1.xpose.msra.mxu0 0.0
    %807 = vmatprep.subr.mxu0 0.0
    %808 = vmatpush1.xpose.msra.mxu0 0.0
    %809 = vmatprep.subr.mxu0 0.0
    %810 = vmatpush1.xpose.msra.mxu0 0.0
    %811 = vmatprep.subr.mxu0 0.0
    %812 = vmatpush1.xpose.msra.mxu0 0.0
    %813 = vmatprep.subr.mxu0 0.0
    %814 = vmatpush1.xpose.msra.mxu0 0.0
    %815 = vmatprep.subr.mxu0 0.0
    %816 = vmatpush1.xpose.msra.mxu0 0.0
    %817 = vmatprep.subr.mxu0 0.0
    %818 = vmatpush1.xpose.msra.mxu0 0.0
    %819 = vmatprep.subr.mxu0 0.0
    %820 = vmatpush1.xpose.msra.mxu0 0.0
    %821 = vmatprep.subr.mxu0 0.0
    %822 = vmatpush1.xpose.msra.mxu0 0.0
    %823 = vmatprep.subr.mxu0 0.0
    %824 = vmatpush1.xpose.msra.mxu0 0.0
    %825 = vmatprep.subr.mxu0 0.0
    %826 = vmatpush1.xpose.msra.mxu0 0.0
    %827 = vmatprep.subr.mxu0 0.0
    %828 = vmatpush1.xpose.msra.mxu0 0.0
    %829 = vmatprep.subr.mxu0 0.0
    %830 = vmatpush1.xpose.msra.mxu0 0.0
    %831 = vmatprep.subr.mxu0 0.0
    %832 = vmatpush1.xpose.msra.mxu0 0.0
    %833 = vmatprep.subr.mxu0 0.0
    %834 = vmatpush1.xpose.msra.mxu0 0.0
    %835 = vmatprep.subr.mxu0 0.0
    %836 = vmatpush1.xpose.msra.mxu0 0.0
    %837 = vmatprep.subr.mxu0 0.0
    %838 = vmatpush1.xpose.msra.mxu0 0.0
    %839 = vmatprep.subr.mxu0 0.0
    %840 = vmatpush1.xpose.msra.mxu0 0.0
    %841 = vmatprep.subr.mxu0 0.0
    %842 = vmatpush1.xpose.msra.mxu0 0.0
    %843 = vmatprep.mubr.f32.mxu0 0.0
    %844 = vmatmul.mubr.f32.gmra.mrb[0].mxu0 %v775
    %v845 = vpop.f32.mrb[0].mxu0
    %v846 = vadd.f32 0.0, %v845
    %v847 = vpop.f32.mrb[0].mxu0
    %848 = vdwg.mxu0
    %849 = vrot.lane.b32.xlu0 %v301, 96
    %v850 = vpop.permute.xlu0 %849
    %v851 = vsel %vm318, %v287, 0
    %v853 = vsel %vm318, %v850, 0
    %855 = vmatprep.subr.mxu0 0.0
    %856 = vmatpush1.xpose.msra.mxu0 %v853
    %857 = vmatprep.subr.mxu0 0.0
    %858 = vmatpush1.xpose.msra.mxu0 0.0
    %859 = vmatprep.subr.mxu0 0.0
    %860 = vmatpush1.xpose.msra.mxu0 0.0
    %861 = vmatprep.subr.mxu0 0.0
    %862 = vmatpush1.xpose.msra.mxu0 0.0
    %863 = vmatprep.subr.mxu0 0.0
    %864 = vmatpush1.xpose.msra.mxu0 0.0
    %865 = vmatprep.subr.mxu0 0.0
    %866 = vmatpush1.xpose.msra.mxu0 0.0
    %867 = vmatprep.subr.mxu0 0.0
    %868 = vmatpush1.xpose.msra.mxu0 0.0
    %869 = vmatprep.subr.mxu0 0.0
    %870 = vmatpush1.xpose.msra.mxu0 0.0
    %871 = vmatprep.subr.mxu0 0.0
    %872 = vmatpush1.xpose.msra.mxu0 0.0
    %873 = vmatprep.subr.mxu0 0.0
    %874 = vmatpush1.xpose.msra.mxu0 0.0
    %875 = vmatprep.subr.mxu0 0.0
    %876 = vmatpush1.xpose.msra.mxu0 0.0
    %877 = vmatprep.subr.mxu0 0.0
    %878 = vmatpush1.xpose.msra.mxu0 0.0
    %879 = vmatprep.subr.mxu0 0.0
    %880 = vmatpush1.xpose.msra.mxu0 0.0
    %881 = vmatprep.subr.mxu0 0.0
    %882 = vmatpush1.xpose.msra.mxu0 0.0
    %883 = vmatprep.subr.mxu0 0.0
    %884 = vmatpush1.xpose.msra.mxu0 0.0
    %885 = vmatprep.subr.mxu0 0.0
    %886 = vmatpush1.xpose.msra.mxu0 0.0
    %887 = vmatprep.subr.mxu0 0.0
    %888 = vmatpush1.xpose.msra.mxu0 0.0
    %889 = vmatprep.subr.mxu0 0.0
    %890 = vmatpush1.xpose.msra.mxu0 0.0
    %891 = vmatprep.subr.mxu0 0.0
    %892 = vmatpush1.xpose.msra.mxu0 0.0
    %893 = vmatprep.subr.mxu0 0.0
    %894 = vmatpush1.xpose.msra.mxu0 0.0
    %895 = vmatprep.subr.mxu0 0.0
    %896 = vmatpush1.xpose.msra.mxu0 0.0
    %897 = vmatprep.subr.mxu0 0.0
    %898 = vmatpush1.xpose.msra.mxu0 0.0
    %899 = vmatprep.subr.mxu0 0.0
    %900 = vmatpush1.xpose.msra.mxu0 0.0
    %901 = vmatprep.subr.mxu0 0.0
    %902 = vmatpush1.xpose.msra.mxu0 0.0
    %903 = vmatprep.subr.mxu0 0.0
    %904 = vmatpush1.xpose.msra.mxu0 0.0
    %905 = vmatprep.subr.mxu0 0.0
    %906 = vmatpush1.xpose.msra.mxu0 0.0
    %907 = vmatprep.subr.mxu0 0.0
    %908 = vmatpush1.xpose.msra.mxu0 0.0
    %909 = vmatprep.subr.mxu0 0.0
    %910 = vmatpush1.xpose.msra.mxu0 0.0
    %911 = vmatprep.subr.mxu0 0.0
    %912 = vmatpush1.xpose.msra.mxu0 0.0
    %913 = vmatprep.subr.mxu0 0.0
    %914 = vmatpush1.xpose.msra.mxu0 0.0
    %915 = vmatprep.subr.mxu0 0.0
    %916 = vmatpush1.xpose.msra.mxu0 0.0
    %917 = vmatprep.subr.mxu0 0.0
    %918 = vmatpush1.xpose.msra.mxu0 0.0
    %919 = vmatprep.mubr.f32.mxu0 0.0
    %920 = vmatmul.mubr.f32.gmra.mrb[0].mxu0 %v851
    %v921 = vpop.f32.mrb[0].mxu0
    %v922 = vadd.f32 0.0, %v921
    %v923 = vpop.f32.mrb[0].mxu0
    %924 = vdwg.mxu0
    %v925 = vmul.f32 %v390, 0.35355338
    %v926 = vmul.f32 %v466, 0.35355338
    %v927 = vmul.f32 %v542, 0.35355338
    %v928 = vmul.f32 %v618, 0.35355338
    %v929 = vmul.f32 %v694, 0.35355338
    %v930 = vmul.f32 %v770, 0.35355338
    %v931 = vmul.f32 %v846, 0.35355338
    %v932 = vmul.f32 %v922, 0.35355338
    %v933 = vadd.f32 %v925, %v82
    %v934 = vadd.f32 %v926, %v83
    %v935 = vadd.f32 %v927, %v84
    %v936 = vadd.f32 %v928, %v85
    %v937 = vadd.f32 %v929, %v86
    %v938 = vadd.f32 %v930, %v87
    %v939 = vadd.f32 %v931, %v88
    %v940 = vadd.f32 %v932, %v89
    %v941 = vsel %vm318, %v933, -inf
    %942 = vmax.xlane.f32.xlu0 %v941
    %v943 = vpop.xlane.xlu0 %942
    %v944 = vsel %vm318, %v934, -inf
    %945 = vmax.xlane.f32.xlu0 %v944
    %v946 = vpop.xlane.xlu0 %945
    %v947 = vsel %vm318, %v935, -inf
    %948 = vmax.xlane.f32.xlu0 %v947
    %v949 = vpop.xlane.xlu0 %948
    %v950 = vsel %vm318, %v936, -inf
    %951 = vmax.xlane.f32.xlu0 %v950
    %v952 = vpop.xlane.xlu0 %951
    %v953 = vsel %vm318, %v937, -inf
    %954 = vmax.xlane.f32.xlu0 %v953
    %v955 = vpop.xlane.xlu0 %954
    %v956 = vsel %vm318, %v938, -inf
    %957 = vmax.xlane.f32.xlu0 %v956
    %v958 = vpop.xlane.xlu0 %957
    %v959 = vsel %vm318, %v939, -inf
    %960 = vmax.xlane.f32.xlu0 %v959
    %v961 = vpop.xlane.xlu0 %960
    %v962 = vsel %vm318, %v940, -inf
    %963 = vmax.xlane.f32.xlu0 %v962
    %v964 = vpop.xlane.xlu0 %963
    %v965 = vsub.f32 %v933, %v943
    %v966 = vsub.f32 %v934, %v946
    %v967 = vsub.f32 %v935, %v949
    %v968 = vsub.f32 %v936, %v952
    %v969 = vsub.f32 %v937, %v955
    %v970 = vsub.f32 %v938, %v958
    %v971 = vsub.f32 %v939, %v961
    %v972 = vsub.f32 %v940, %v964
    %v973 = vmul.f32 %v965, 1.442695
    %v974 = vpow.pop %v973
    %v975 = vmul.f32 %v966, 1.442695
    %v976 = vpow.pop %v975
    %v977 = vmul.f32 %v967, 1.442695
    %v978 = vpow.pop %v977
    %v979 = vmul.f32 %v968, 1.442695
    %v980 = vpow.pop %v979
    %v981 = vmul.f32 %v969, 1.442695
    %v982 = vpow.pop %v981
    %v983 = vmul.f32 %v970, 1.442695
    %v984 = vpow.pop %v983
    %v985 = vmul.f32 %v971, 1.442695
    %v986 = vpow.pop %v985
    %v987 = vmul.f32 %v972, 1.442695
    %v988 = vpow.pop %v987
    %v989 = vsel %vm318, %v974, 0.0
    %990 = vadd.xlane.f32.xlu0 %v989
    %v991 = vpop.xlane.xlu0 %990
    %v992 = vsel %vm318, %v976, 0.0
    %993 = vadd.xlane.f32.xlu0 %v992
    %v994 = vpop.xlane.xlu0 %993
    %v995 = vsel %vm318, %v978, 0.0
    %996 = vadd.xlane.f32.xlu0 %v995
    %v997 = vpop.xlane.xlu0 %996
    %v998 = vsel %vm318, %v980, 0.0
    %999 = vadd.xlane.f32.xlu0 %v998
    %v1000 = vpop.xlane.xlu0 %999
    %v1001 = vsel %vm318, %v982, 0.0
    %1002 = vadd.xlane.f32.xlu0 %v1001
    %v1003 = vpop.xlane.xlu0 %1002
    %v1004 = vsel %vm318, %v984, 0.0
    %1005 = vadd.xlane.f32.xlu0 %v1004
    %v1006 = vpop.xlane.xlu0 %1005
    %v1007 = vsel %vm318, %v986, 0.0
    %1008 = vadd.xlane.f32.xlu0 %v1007
    %v1009 = vpop.xlane.xlu0 %1008
    %v1010 = vsel %vm318, %v988, 0.0
    %1011 = vadd.xlane.f32.xlu0 %v1010
    %v1012 = vpop.xlane.xlu0 %1011
    %v1013 = vrcp.pop %v991
    %v1014 = vrcp.pop %v994
    %v1015 = vrcp.pop %v997
    %v1016 = vrcp.pop %v1000
    %v1017 = vrcp.pop %v1003
    %v1018 = vrcp.pop %v1006
    %v1019 = vrcp.pop %v1009
    %v1020 = vrcp.pop %v1012
    %v1021 = vmul.f32 %v974, %v1013
    %v1022 = vmul.f32 %v976, %v1014
    %v1023 = vmul.f32 %v978, %v1015
    %v1024 = vmul.f32 %v980, %v1016
    %v1025 = vmul.f32 %v982, %v1017
    %v1026 = vmul.f32 %v984, %v1018
    %v1027 = vmul.f32 %v986, %v1019
    %v1028 = vmul.f32 %v988, %v1020
    %1029 = vrot.lane.b32.xlu0 %v272, 64
    %v1030 = vpop.permute.xlu0 %1029
    %v1033 = vsel %vm318, %v1021, 0
    %1035 = vmatprep.subr.mxu0 0.0
    %1036 = vmatpush1.msra.mxu0 %v1030
    %1037 = vmatprep.subr.mxu0 0.0
    %1038 = vmatpush1.msra.mxu0 0.0
    %1039 = vmatprep.subr.mxu0 0.0
    %1040 = vmatpush1.msra.mxu0 0.0
    %1041 = vmatprep.subr.mxu0 0.0
    %1042 = vmatpush1.msra.mxu0 0.0
    %1043 = vmatprep.subr.mxu0 0.0
    %1044 = vmatpush1.msra.mxu0 0.0
    %1045 = vmatprep.subr.mxu0 0.0
    %1046 = vmatpush1.msra.mxu0 0.0
    %1047 = vmatprep.subr.mxu0 0.0
    %1048 = vmatpush1.msra.mxu0 0.0
    %1049 = vmatprep.subr.mxu0 0.0
    %1050 = vmatpush1.msra.mxu0 0.0
    %1051 = vmatprep.subr.mxu0 0.0
    %1052 = vmatpush1.msra.mxu0 0.0
    %1053 = vmatprep.subr.mxu0 0.0
    %1054 = vmatpush1.msra.mxu0 0.0
    %1055 = vmatprep.subr.mxu0 0.0
    %1056 = vmatpush1.msra.mxu0 0.0
    %1057 = vmatprep.subr.mxu0 0.0
    %1058 = vmatpush1.msra.mxu0 0.0
    %1059 = vmatprep.subr.mxu0 0.0
    %1060 = vmatpush1.msra.mxu0 0.0
    %1061 = vmatprep.subr.mxu0 0.0
    %1062 = vmatpush1.msra.mxu0 0.0
    %1063 = vmatprep.subr.mxu0 0.0
    %1064 = vmatpush1.msra.mxu0 0.0
    %1065 = vmatprep.subr.mxu0 0.0
    %1066 = vmatpush1.msra.mxu0 0.0
    %1067 = vmatprep.subr.mxu0 0.0
    %1068 = vmatpush1.msra.mxu0 0.0
    %1069 = vmatprep.subr.mxu0 0.0
    %1070 = vmatpush1.msra.mxu0 0.0
    %1071 = vmatprep.subr.mxu0 0.0
    %1072 = vmatpush1.msra.mxu0 0.0
    %1073 = vmatprep.subr.mxu0 0.0
    %1074 = vmatpush1.msra.mxu0 0.0
    %1075 = vmatprep.subr.mxu0 0.0
    %1076 = vmatpush1.msra.mxu0 0.0
    %1077 = vmatprep.subr.mxu0 0.0
    %1078 = vmatpush1.msra.mxu0 0.0
    %1079 = vmatprep.subr.mxu0 0.0
    %1080 = vmatpush1.msra.mxu0 0.0
    %1081 = vmatprep.subr.mxu0 0.0
    %1082 = vmatpush1.msra.mxu0 0.0
    %1083 = vmatprep.subr.mxu0 0.0
    %1084 = vmatpush1.msra.mxu0 0.0
    %1085 = vmatprep.subr.mxu0 0.0
    %1086 = vmatpush1.msra.mxu0 0.0
    %1087 = vmatprep.subr.mxu0 0.0
    %1088 = vmatpush1.msra.mxu0 0.0
    %1089 = vmatprep.subr.mxu0 0.0
    %1090 = vmatpush1.msra.mxu0 0.0
    %1091 = vmatprep.subr.mxu0 0.0
    %1092 = vmatpush1.msra.mxu0 0.0
    %1093 = vmatprep.subr.mxu0 0.0
    %1094 = vmatpush1.msra.mxu0 0.0
    %1095 = vmatprep.subr.mxu0 0.0
    %1096 = vmatpush1.msra.mxu0 0.0
    %1097 = vmatprep.subr.mxu0 0.0
    %1098 = vmatpush1.msra.mxu0 0.0
    %1099 = vmatprep.mubr.f32.mxu0 0.0
    %1100 = vmatmul.mubr.f32.gmra.mrb[0].mxu0 %v1033
    %v1101 = vpop.f32.mrb[0].mxu0
    %v1102 = vadd.f32 0.0, %v1101
    %v1103 = vpop.f32.mrb[0].mxu0
    %1104 = vdwg.mxu0
    %1105 = vrot.lane.b32.xlu0 %v304, 64
    %v1106 = vpop.permute.xlu0 %1105
    %v1109 = vsel %vm318, %v1022, 0
    %1111 = vmatprep.subr.mxu0 0.0
    %1112 = vmatpush1.msra.mxu0 %v1106
    %1113 = vmatprep.subr.mxu0 0.0
    %1114 = vmatpush1.msra.mxu0 0.0
    %1115 = vmatprep.subr.mxu0 0.0
    %1116 = vmatpush1.msra.mxu0 0.0
    %1117 = vmatprep.subr.mxu0 0.0
    %1118 = vmatpush1.msra.mxu0 0.0
    %1119 = vmatprep.subr.mxu0 0.0
    %1120 = vmatpush1.msra.mxu0 0.0
    %1121 = vmatprep.subr.mxu0 0.0
    %1122 = vmatpush1.msra.mxu0 0.0
    %1123 = vmatprep.subr.mxu0 0.0
    %1124 = vmatpush1.msra.mxu0 0.0
    %1125 = vmatprep.subr.mxu0 0.0
    %1126 = vmatpush1.msra.mxu0 0.0
    %1127 = vmatprep.subr.mxu0 0.0
    %1128 = vmatpush1.msra.mxu0 0.0
    %1129 = vmatprep.subr.mxu0 0.0
    %1130 = vmatpush1.msra.mxu0 0.0
    %1131 = vmatprep.subr.mxu0 0.0
    %1132 = vmatpush1.msra.mxu0 0.0
    %1133 = vmatprep.subr.mxu0 0.0
    %1134 = vmatpush1.msra.mxu0 0.0
    %1135 = vmatprep.subr.mxu0 0.0
    %1136 = vmatpush1.msra.mxu0 0.0
    %1137 = vmatprep.subr.mxu0 0.0
    %1138 = vmatpush1.msra.mxu0 0.0
    %1139 = vmatprep.subr.mxu0 0.0
    %1140 = vmatpush1.msra.mxu0 0.0
    %1141 = vmatprep.subr.mxu0 0.0
    %1142 = vmatpush1.msra.mxu0 0.0
    %1143 = vmatprep.subr.mxu0 0.0
    %1144 = vmatpush1.msra.mxu0 0.0
    %1145 = vmatprep.subr.mxu0 0.0
    %1146 = vmatpush1.msra.mxu0 0.0
    %1147 = vmatprep.subr.mxu0 0.0
    %1148 = vmatpush1.msra.mxu0 0.0
    %1149 = vmatprep.subr.mxu0 0.0
    %1150 = vmatpush1.msra.mxu0 0.0
    %1151 = vmatprep.subr.mxu0 0.0
    %1152 = vmatpush1.msra.mxu0 0.0
    %1153 = vmatprep.subr.mxu0 0.0
    %1154 = vmatpush1.msra.mxu0 0.0
    %1155 = vmatprep.subr.mxu0 0.0
    %1156 = vmatpush1.msra.mxu0 0.0
    %1157 = vmatprep.subr.mxu0 0.0
    %1158 = vmatpush1.msra.mxu0 0.0
    %1159 = vmatprep.subr.mxu0 0.0
    %1160 = vmatpush1.msra.mxu0 0.0
    %1161 = vmatprep.subr.mxu0 0.0
    %1162 = vmatpush1.msra.mxu0 0.0
    %1163 = vmatprep.subr.mxu0 0.0
    %1164 = vmatpush1.msra.mxu0 0.0
    %1165 = vmatprep.subr.mxu0 0.0
    %1166 = vmatpush1.msra.mxu0 0.0
    %1167 = vmatprep.subr.mxu0 0.0
    %1168 = vmatpush1.msra.mxu0 0.0
    %1169 = vmatprep.subr.mxu0 0.0
    %1170 = vmatpush1.msra.mxu0 0.0
    %1171 = vmatprep.subr.mxu0 0.0
    %1172 = vmatpush1.msra.mxu0 0.0
    %1173 = vmatprep.subr.mxu0 0.0
    %1174 = vmatpush1.msra.mxu0 0.0
    %1175 = vmatprep.mubr.f32.mxu0 0.0
    %1176 = vmatmul.mubr.f32.gmra.mrb[0].mxu0 %v1109
    %v1177 = vpop.f32.mrb[0].mxu0
    %v1178 = vadd.f32 0.0, %v1177
    %v1179 = vpop.f32.mrb[0].mxu0
    %1180 = vdwg.mxu0
    %1181 = vrot.lane.b32.xlu0 %v306, 64
    %v1182 = vpop.permute.xlu0 %1181
    %v1185 = vsel %vm318, %v1023, 0
    %1187 = vmatprep.subr.mxu0 0.0
    %1188 = vmatpush1.msra.mxu0 %v1182
    %1189 = vmatprep.subr.mxu0 0.0
    %1190 = vmatpush1.msra.mxu0 0.0
    %1191 = vmatprep.subr.mxu0 0.0
    %1192 = vmatpush1.msra.mxu0 0.0
    %1193 = vmatprep.subr.mxu0 0.0
    %1194 = vmatpush1.msra.mxu0 0.0
    %1195 = vmatprep.subr.mxu0 0.0
    %1196 = vmatpush1.msra.mxu0 0.0
    %1197 = vmatprep.subr.mxu0 0.0
    %1198 = vmatpush1.msra.mxu0 0.0
    %1199 = vmatprep.subr.mxu0 0.0
    %1200 = vmatpush1.msra.mxu0 0.0
    %1201 = vmatprep.subr.mxu0 0.0
    %1202 = vmatpush1.msra.mxu0 0.0
    %1203 = vmatprep.subr.mxu0 0.0
    %1204 = vmatpush1.msra.mxu0 0.0
    %1205 = vmatprep.subr.mxu0 0.0
    %1206 = vmatpush1.msra.mxu0 0.0
    %1207 = vmatprep.subr.mxu0 0.0
    %1208 = vmatpush1.msra.mxu0 0.0
    %1209 = vmatprep.subr.mxu0 0.0
    %1210 = vmatpush1.msra.mxu0 0.0
    %1211 = vmatprep.subr.mxu0 0.0
    %1212 = vmatpush1.msra.mxu0 0.0
    %1213 = vmatprep.subr.mxu0 0.0
    %1214 = vmatpush1.msra.mxu0 0.0
    %1215 = vmatprep.subr.mxu0 0.0
    %1216 = vmatpush1.msra.mxu0 0.0
    %1217 = vmatprep.subr.mxu0 0.0
    %1218 = vmatpush1.msra.mxu0 0.0
    %1219 = vmatprep.subr.mxu0 0.0
    %1220 = vmatpush1.msra.mxu0 0.0
    %1221 = vmatprep.subr.mxu0 0.0
    %1222 = vmatpush1.msra.mxu0 0.0
    %1223 = vmatprep.subr.mxu0 0.0
    %1224 = vmatpush1.msra.mxu0 0.0
    %1225 = vmatprep.subr.mxu0 0.0
    %1226 = vmatpush1.msra.mxu0 0.0
    %1227 = vmatprep.subr.mxu0 0.0
    %1228 = vmatpush1.msra.mxu0 0.0
    %1229 = vmatprep.subr.mxu0 0.0
    %1230 = vmatpush1.msra.mxu0 0.0
    %1231 = vmatprep.subr.mxu0 0.0
    %1232 = vmatpush1.msra.mxu0 0.0
    %1233 = vmatprep.subr.mxu0 0.0
    %1234 = vmatpush1.msra.mxu0 0.0
    %1235 = vmatprep.subr.mxu0 0.0
    %1236 = vmatpush1.msra.mxu0 0.0
    %1237 = vmatprep.subr.mxu0 0.0
    %1238 = vmatpush1.msra.mxu0 0.0
    %1239 = vmatprep.subr.mxu0 0.0
    %1240 = vmatpush1.msra.mxu0 0.0
    %1241 = vmatprep.subr.mxu0 0.0
    %1242 = vmatpush1.msra.mxu0 0.0
    %1243 = vmatprep.subr.mxu0 0.0
    %1244 = vmatpush1.msra.mxu0 0.0
    %1245 = vmatprep.subr.mxu0 0.0
    %1246 = vmatpush1.msra.mxu0 0.0
    %1247 = vmatprep.subr.mxu0 0.0
    %1248 = vmatpush1.msra.mxu0 0.0
    %1249 = vmatprep.subr.mxu0 0.0
    %1250 = vmatpush1.msra.mxu0 0.0
    %1251 = vmatprep.mubr.f32.mxu0 0.0
    %1252 = vmatmul.mubr.f32.gmra.mrb[0].mxu0 %v1185
    %v1253 = vpop.f32.mrb[0].mxu0
    %v1254 = vadd.f32 0.0, %v1253
    %v1255 = vpop.f32.mrb[0].mxu0
    %1256 = vdwg.mxu0
    %1257 = vrot.lane.b32.xlu0 %v308, 64
    %v1258 = vpop.permute.xlu0 %1257
    %v1261 = vsel %vm318, %v1024, 0
    %1263 = vmatprep.subr.mxu0 0.0
    %1264 = vmatpush1.msra.mxu0 %v1258
    %1265 = vmatprep.subr.mxu0 0.0
    %1266 = vmatpush1.msra.mxu0 0.0
    %1267 = vmatprep.subr.mxu0 0.0
    %1268 = vmatpush1.msra.mxu0 0.0
    %1269 = vmatprep.subr.mxu0 0.0
    %1270 = vmatpush1.msra.mxu0 0.0
    %1271 = vmatprep.subr.mxu0 0.0
    %1272 = vmatpush1.msra.mxu0 0.0
    %1273 = vmatprep.subr.mxu0 0.0
    %1274 = vmatpush1.msra.mxu0 0.0
    %1275 = vmatprep.subr.mxu0 0.0
    %1276 = vmatpush1.msra.mxu0 0.0
    %1277 = vmatprep.subr.mxu0 0.0
    %1278 = vmatpush1.msra.mxu0 0.0
    %1279 = vmatprep.subr.mxu0 0.0
    %1280 = vmatpush1.msra.mxu0 0.0
    %1281 = vmatprep.subr.mxu0 0.0
    %1282 = vmatpush1.msra.mxu0 0.0
    %1283 = vmatprep.subr.mxu0 0.0
    %1284 = vmatpush1.msra.mxu0 0.0
    %1285 = vmatprep.subr.mxu0 0.0
    %1286 = vmatpush1.msra.mxu0 0.0
    %1287 = vmatprep.subr.mxu0 0.0
    %1288 = vmatpush1.msra.mxu0 0.0
    %1289 = vmatprep.subr.mxu0 0.0
    %1290 = vmatpush1.msra.mxu0 0.0
    %1291 = vmatprep.subr.mxu0 0.0
    %1292 = vmatpush1.msra.mxu0 0.0
    %1293 = vmatprep.subr.mxu0 0.0
    %1294 = vmatpush1.msra.mxu0 0.0
    %1295 = vmatprep.subr.mxu0 0.0
    %1296 = vmatpush1.msra.mxu0 0.0
    %1297 = vmatprep.subr.mxu0 0.0
    %1298 = vmatpush1.msra.mxu0 0.0
    %1299 = vmatprep.subr.mxu0 0.0
    %1300 = vmatpush1.msra.mxu0 0.0
    %1301 = vmatprep.subr.mxu0 0.0
    %1302 = vmatpush1.msra.mxu0 0.0
    %1303 = vmatprep.subr.mxu0 0.0
    %1304 = vmatpush1.msra.mxu0 0.0
    %1305 = vmatprep.subr.mxu0 0.0
    %1306 = vmatpush1.msra.mxu0 0.0
    %1307 = vmatprep.subr.mxu0 0.0
    %1308 = vmatpush1.msra.mxu0 0.0
    %1309 = vmatprep.subr.mxu0 0.0
    %1310 = vmatpush1.msra.mxu0 0.0
    %1311 = vmatprep.subr.mxu0 0.0
    %1312 = vmatpush1.msra.mxu0 0.0
    %1313 = vmatprep.subr.mxu0 0.0
    %1314 = vmatpush1.msra.mxu0 0.0
    %1315 = vmatprep.subr.mxu0 0.0
    %1316 = vmatpush1.msra.mxu0 0.0
    %1317 = vmatprep.subr.mxu0 0.0
    %1318 = vmatpush1.msra.mxu0 0.0
    %1319 = vmatprep.subr.mxu0 0.0
    %1320 = vmatpush1.msra.mxu0 0.0
    %1321 = vmatprep.subr.mxu0 0.0
    %1322 = vmatpush1.msra.mxu0 0.0
    %1323 = vmatprep.subr.mxu0 0.0
    %1324 = vmatpush1.msra.mxu0 0.0
    %1325 = vmatprep.subr.mxu0 0.0
    %1326 = vmatpush1.msra.mxu0 0.0
    %1327 = vmatprep.mubr.f32.mxu0 0.0
    %1328 = vmatmul.mubr.f32.gmra.mrb[0].mxu0 %v1261
    %v1329 = vpop.f32.mrb[0].mxu0
    %v1330 = vadd.f32 0.0, %v1329
    %v1331 = vpop.f32.mrb[0].mxu0
    %1332 = vdwg.mxu0
    %1333 = vrot.lane.b32.xlu0 %v273, 64
    %v1334 = vpop.permute.xlu0 %1333
    %v1337 = vsel %vm318, %v1025, 0
    %1339 = vmatprep.subr.mxu0 0.0
    %1340 = vmatpush1.msra.mxu0 %v1334
    %1341 = vmatprep.subr.mxu0 0.0
    %1342 = vmatpush1.msra.mxu0 0.0
    %1343 = vmatprep.subr.mxu0 0.0
    %1344 = vmatpush1.msra.mxu0 0.0
    %1345 = vmatprep.subr.mxu0 0.0
    %1346 = vmatpush1.msra.mxu0 0.0
    %1347 = vmatprep.subr.mxu0 0.0
    %1348 = vmatpush1.msra.mxu0 0.0
    %1349 = vmatprep.subr.mxu0 0.0
    %1350 = vmatpush1.msra.mxu0 0.0
    %1351 = vmatprep.subr.mxu0 0.0
    %1352 = vmatpush1.msra.mxu0 0.0
    %1353 = vmatprep.subr.mxu0 0.0
    %1354 = vmatpush1.msra.mxu0 0.0
    %1355 = vmatprep.subr.mxu0 0.0
    %1356 = vmatpush1.msra.mxu0 0.0
    %1357 = vmatprep.subr.mxu0 0.0
    %1358 = vmatpush1.msra.mxu0 0.0
    %1359 = vmatprep.subr.mxu0 0.0
    %1360 = vmatpush1.msra.mxu0 0.0
    %1361 = vmatprep.subr.mxu0 0.0
    %1362 = vmatpush1.msra.mxu0 0.0
    %1363 = vmatprep.subr.mxu0 0.0
    %1364 = vmatpush1.msra.mxu0 0.0
    %1365 = vmatprep.subr.mxu0 0.0
    %1366 = vmatpush1.msra.mxu0 0.0
    %1367 = vmatprep.subr.mxu0 0.0
    %1368 = vmatpush1.msra.mxu0 0.0
    %1369 = vmatprep.subr.mxu0 0.0
    %1370 = vmatpush1.msra.mxu0 0.0
    %1371 = vmatprep.subr.mxu0 0.0
    %1372 = vmatpush1.msra.mxu0 0.0
    %1373 = vmatprep.subr.mxu0 0.0
    %1374 = vmatpush1.msra.mxu0 0.0
    %1375 = vmatprep.subr.mxu0 0.0
    %1376 = vmatpush1.msra.mxu0 0.0
    %1377 = vmatprep.subr.mxu0 0.0
    %1378 = vmatpush1.msra.mxu0 0.0
    %1379 = vmatprep.subr.mxu0 0.0
    %1380 = vmatpush1.msra.mxu0 0.0
    %1381 = vmatprep.subr.mxu0 0.0
    %1382 = vmatpush1.msra.mxu0 0.0
    %1383 = vmatprep.subr.mxu0 0.0
    %1384 = vmatpush1.msra.mxu0 0.0
    %1385 = vmatprep.subr.mxu0 0.0
    %1386 = vmatpush1.msra.mxu0 0.0
    %1387 = vmatprep.subr.mxu0 0.0
    %1388 = vmatpush1.msra.mxu0 0.0
    %1389 = vmatprep.subr.mxu0 0.0
    %1390 = vmatpush1.msra.mxu0 0.0
    %1391 = vmatprep.subr.mxu0 0.0
    %1392 = vmatpush1.msra.mxu0 0.0
    %1393 = vmatprep.subr.mxu0 0.0
    %1394 = vmatpush1.msra.mxu0 0.0
    %1395 = vmatprep.subr.mxu0 0.0
    %1396 = vmatpush1.msra.mxu0 0.0
    %1397 = vmatprep.subr.mxu0 0.0
    %1398 = vmatpush1.msra.mxu0 0.0
    %1399 = vmatprep.subr.mxu0 0.0
    %1400 = vmatpush1.msra.mxu0 0.0
    %1401 = vmatprep.subr.mxu0 0.0
    %1402 = vmatpush1.msra.mxu0 0.0
    %1403 = vmatprep.mubr.f32.mxu0 0.0
    %1404 = vmatmul.mubr.f32.gmra.mrb[0].mxu0 %v1337
    %v1405 = vpop.f32.mrb[0].mxu0
    %v1406 = vadd.f32 0.0, %v1405
    %v1407 = vpop.f32.mrb[0].mxu0
    %1408 = vdwg.mxu0
    %1409 = vrot.lane.b32.xlu0 %v311, 64
    %v1410 = vpop.permute.xlu0 %1409
    %v1413 = vsel %vm318, %v1026, 0
    %1415 = vmatprep.subr.mxu0 0.0
    %1416 = vmatpush1.msra.mxu0 %v1410
    %1417 = vmatprep.subr.mxu0 0.0
    %1418 = vmatpush1.msra.mxu0 0.0
    %1419 = vmatprep.subr.mxu0 0.0
    %1420 = vmatpush1.msra.mxu0 0.0
    %1421 = vmatprep.subr.mxu0 0.0
    %1422 = vmatpush1.msra.mxu0 0.0
    %1423 = vmatprep.subr.mxu0 0.0
    %1424 = vmatpush1.msra.mxu0 0.0
    %1425 = vmatprep.subr.mxu0 0.0
    %1426 = vmatpush1.msra.mxu0 0.0
    %1427 = vmatprep.subr.mxu0 0.0
    %1428 = vmatpush1.msra.mxu0 0.0
    %1429 = vmatprep.subr.mxu0 0.0
    %1430 = vmatpush1.msra.mxu0 0.0
    %1431 = vmatprep.subr.mxu0 0.0
    %1432 = vmatpush1.msra.mxu0 0.0
    %1433 = vmatprep.subr.mxu0 0.0
    %1434 = vmatpush1.msra.mxu0 0.0
    %1435 = vmatprep.subr.mxu0 0.0
    %1436 = vmatpush1.msra.mxu0 0.0
    %1437 = vmatprep.subr.mxu0 0.0
    %1438 = vmatpush1.msra.mxu0 0.0
    %1439 = vmatprep.subr.mxu0 0.0
    %1440 = vmatpush1.msra.mxu0 0.0
    %1441 = vmatprep.subr.mxu0 0.0
    %1442 = vmatpush1.msra.mxu0 0.0
    %1443 = vmatprep.subr.mxu0 0.0
    %1444 = vmatpush1.msra.mxu0 0.0
    %1445 = vmatprep.subr.mxu0 0.0
    %1446 = vmatpush1.msra.mxu0 0.0
    %1447 = vmatprep.subr.mxu0 0.0
    %1448 = vmatpush1.msra.mxu0 0.0
    %1449 = vmatprep.subr.mxu0 0.0
    %1450 = vmatpush1.msra.mxu0 0.0
    %1451 = vmatprep.subr.mxu0 0.0
    %1452 = vmatpush1.msra.mxu0 0.0
    %1453 = vmatprep.subr.mxu0 0.0
    %1454 = vmatpush1.msra.mxu0 0.0
    %1455 = vmatprep.subr.mxu0 0.0
    %1456 = vmatpush1.msra.mxu0 0.0
    %1457 = vmatprep.subr.mxu0 0.0
    %1458 = vmatpush1.msra.mxu0 0.0
    %1459 = vmatprep.subr.mxu0 0.0
    %1460 = vmatpush1.msra.mxu0 0.0
    %1461 = vmatprep.subr.mxu0 0.0
    %1462 = vmatpush1.msra.mxu0 0.0
    %1463 = vmatprep.subr.mxu0 0.0
    %1464 = vmatpush1.msra.mxu0 0.0
    %1465 = vmatprep.subr.mxu0 0.0
    %1466 = vmatpush1.msra.mxu0 0.0
    %1467 = vmatprep.subr.mxu0 0.0
    %1468 = vmatpush1.msra.mxu0 0.0
    %1469 = vmatprep.subr.mxu0 0.0
    %1470 = vmatpush1.msra.mxu0 0.0
    %1471 = vmatprep.subr.mxu0 0.0
    %1472 = vmatpush1.msra.mxu0 0.0
    %1473 = vmatprep.subr.mxu0 0.0
    %1474 = vmatpush1.msra.mxu0 0.0
    %1475 = vmatprep.subr.mxu0 0.0
    %1476 = vmatpush1.msra.mxu0 0.0
    %1477 = vmatprep.subr.mxu0 0.0
    %1478 = vmatpush1.msra.mxu0 0.0
    %1479 = vmatprep.mubr.f32.mxu0 0.0
    %1480 = vmatmul.mubr.f32.gmra.mrb[0].mxu0 %v1413
    %v1481 = vpop.f32.mrb[0].mxu0
    %v1482 = vadd.f32 0.0, %v1481
    %v1483 = vpop.f32.mrb[0].mxu0
    %1484 = vdwg.mxu0
    %1485 = vrot.lane.b32.xlu0 %v313, 64
    %v1486 = vpop.permute.xlu0 %1485
    %v1489 = vsel %vm318, %v1027, 0
    %1491 = vmatprep.subr.mxu0 0.0
    %1492 = vmatpush1.msra.mxu0 %v1486
    %1493 = vmatprep.subr.mxu0 0.0
    %1494 = vmatpush1.msra.mxu0 0.0
    %1495 = vmatprep.subr.mxu0 0.0
    %1496 = vmatpush1.msra.mxu0 0.0
    %1497 = vmatprep.subr.mxu0 0.0
    %1498 = vmatpush1.msra.mxu0 0.0
    %1499 = vmatprep.subr.mxu0 0.0
    %1500 = vmatpush1.msra.mxu0 0.0
    %1501 = vmatprep.subr.mxu0 0.0
    %1502 = vmatpush1.msra.mxu0 0.0
    %1503 = vmatprep.subr.mxu0 0.0
    %1504 = vmatpush1.msra.mxu0 0.0
    %1505 = vmatprep.subr.mxu0 0.0
    %1506 = vmatpush1.msra.mxu0 0.0
    %1507 = vmatprep.subr.mxu0 0.0
    %1508 = vmatpush1.msra.mxu0 0.0
    %1509 = vmatprep.subr.mxu0 0.0
    %1510 = vmatpush1.msra.mxu0 0.0
    %1511 = vmatprep.subr.mxu0 0.0
    %1512 = vmatpush1.msra.mxu0 0.0
    %1513 = vmatprep.subr.mxu0 0.0
    %1514 = vmatpush1.msra.mxu0 0.0
    %1515 = vmatprep.subr.mxu0 0.0
    %1516 = vmatpush1.msra.mxu0 0.0
    %1517 = vmatprep.subr.mxu0 0.0
    %1518 = vmatpush1.msra.mxu0 0.0
    %1519 = vmatprep.subr.mxu0 0.0
    %1520 = vmatpush1.msra.mxu0 0.0
    %1521 = vmatprep.subr.mxu0 0.0
    %1522 = vmatpush1.msra.mxu0 0.0
    %1523 = vmatprep.subr.mxu0 0.0
    %1524 = vmatpush1.msra.mxu0 0.0
    %1525 = vmatprep.subr.mxu0 0.0
    %1526 = vmatpush1.msra.mxu0 0.0
    %1527 = vmatprep.subr.mxu0 0.0
    %1528 = vmatpush1.msra.mxu0 0.0
    %1529 = vmatprep.subr.mxu0 0.0
    %1530 = vmatpush1.msra.mxu0 0.0
    %1531 = vmatprep.subr.mxu0 0.0
    %1532 = vmatpush1.msra.mxu0 0.0
    %1533 = vmatprep.subr.mxu0 0.0
    %1534 = vmatpush1.msra.mxu0 0.0
    %1535 = vmatprep.subr.mxu0 0.0
    %1536 = vmatpush1.msra.mxu0 0.0
    %1537 = vmatprep.subr.mxu0 0.0
    %1538 = vmatpush1.msra.mxu0 0.0
    %1539 = vmatprep.subr.mxu0 0.0
    %1540 = vmatpush1.msra.mxu0 0.0
    %1541 = vmatprep.subr.mxu0 0.0
    %1542 = vmatpush1.msra.mxu0 0.0
    %1543 = vmatprep.subr.mxu0 0.0
    %1544 = vmatpush1.msra.mxu0 0.0
    %1545 = vmatprep.subr.mxu0 0.0
    %1546 = vmatpush1.msra.mxu0 0.0
    %1547 = vmatprep.subr.mxu0 0.0
    %1548 = vmatpush1.msra.mxu0 0.0
    %1549 = vmatprep.subr.mxu0 0.0
    %1550 = vmatpush1.msra.mxu0 0.0
    %1551 = vmatprep.subr.mxu0 0.0
    %1552 = vmatpush1.msra.mxu0 0.0
    %1553 = vmatprep.subr.mxu0 0.0
    %1554 = vmatpush1.msra.mxu0 0.0
    %1555 = vmatprep.mubr.f32.mxu0 0.0
    %1556 = vmatmul.mubr.f32.gmra.mrb[0].mxu0 %v1489
    %v1557 = vpop.f32.mrb[0].mxu0
    %v1558 = vadd.f32 0.0, %v1557
    %v1559 = vpop.f32.mrb[0].mxu0
    %1560 = vdwg.mxu0
    %1561 = vrot.lane.b32.xlu0 %v315, 64
    %v1562 = vpop.permute.xlu0 %1561
    %v1565 = vsel %vm318, %v1028, 0
    %1567 = vmatprep.subr.mxu0 0.0
    %1568 = vmatpush1.msra.mxu0 %v1562
    %1569 = vmatprep.subr.mxu0 0.0
    %1570 = vmatpush1.msra.mxu0 0.0
    %1571 = vmatprep.subr.mxu0 0.0
    %1572 = vmatpush1.msra.mxu0 0.0
    %1573 = vmatprep.subr.mxu0 0.0
    %1574 = vmatpush1.msra.mxu0 0.0
    %1575 = vmatprep.subr.mxu0 0.0
    %1576 = vmatpush1.msra.mxu0 0.0
    %1577 = vmatprep.subr.mxu0 0.0
    %1578 = vmatpush1.msra.mxu0 0.0
    %1579 = vmatprep.subr.mxu0 0.0
    %1580 = vmatpush1.msra.mxu0 0.0
    %1581 = vmatprep.subr.mxu0 0.0
    %1582 = vmatpush1.msra.mxu0 0.0
    %1583 = vmatprep.subr.mxu0 0.0
    %1584 = vmatpush1.msra.mxu0 0.0
    %1585 = vmatprep.subr.mxu0 0.0
    %1586 = vmatpush1.msra.mxu0 0.0
    %1587 = vmatprep.subr.mxu0 0.0
    %1588 = vmatpush1.msra.mxu0 0.0
    %1589 = vmatprep.subr.mxu0 0.0
    %1590 = vmatpush1.msra.mxu0 0.0
    %1591 = vmatprep.subr.mxu0 0.0
    %1592 = vmatpush1.msra.mxu0 0.0
    %1593 = vmatprep.subr.mxu0 0.0
    %1594 = vmatpush1.msra.mxu0 0.0
    %1595 = vmatprep.subr.mxu0 0.0
    %1596 = vmatpush1.msra.mxu0 0.0
    %1597 = vmatprep.subr.mxu0 0.0
    %1598 = vmatpush1.msra.mxu0 0.0
    %1599 = vmatprep.subr.mxu0 0.0
    %1600 = vmatpush1.msra.mxu0 0.0
    %1601 = vmatprep.subr.mxu0 0.0
    %1602 = vmatpush1.msra.mxu0 0.0
    %1603 = vmatprep.subr.mxu0 0.0
    %1604 = vmatpush1.msra.mxu0 0.0
    %1605 = vmatprep.subr.mxu0 0.0
    %1606 = vmatpush1.msra.mxu0 0.0
    %1607 = vmatprep.subr.mxu0 0.0
    %1608 = vmatpush1.msra.mxu0 0.0
    %1609 = vmatprep.subr.mxu0 0.0
    %1610 = vmatpush1.msra.mxu0 0.0
    %1611 = vmatprep.subr.mxu0 0.0
    %1612 = vmatpush1.msra.mxu0 0.0
    %1613 = vmatprep.subr.mxu0 0.0
    %1614 = vmatpush1.msra.mxu0 0.0
    %1615 = vmatprep.subr.mxu0 0.0
    %1616 = vmatpush1.msra.mxu0 0.0
    %1617 = vmatprep.subr.mxu0 0.0
    %1618 = vmatpush1.msra.mxu0 0.0
    %1619 = vmatprep.subr.mxu0 0.0
    %1620 = vmatpush1.msra.mxu0 0.0
    %1621 = vmatprep.subr.mxu0 0.0
    %1622 = vmatpush1.msra.mxu0 0.0
    %1623 = vmatprep.subr.mxu0 0.0
    %1624 = vmatpush1.msra.mxu0 0.0
    %1625 = vmatprep.subr.mxu0 0.0
    %1626 = vmatpush1.msra.mxu0 0.0
    %1627 = vmatprep.subr.mxu0 0.0
    %1628 = vmatpush1.msra.mxu0 0.0
    %1629 = vmatprep.subr.mxu0 0.0
    %1630 = vmatpush1.msra.mxu0 0.0
    %1631 = vmatprep.mubr.f32.mxu0 0.0
    %1632 = vmatmul.mubr.f32.gmra.mrb[0].mxu0 %v1565
    %v1633 = vpop.f32.mrb[0].mxu0
    %v1634 = vadd.f32 0.0, %v1633
    %v1635 = vpop.f32.mrb[0].mxu0
    %1636 = vdwg.mxu0
    %1638 = vrot.lane.b32.xlu0 %v1178, 8
    %v1639 = vpop.permute.xlu0 %1638
    %1642 = vrot.lane.b32.xlu0 %v1254, 16
    %v1643 = vpop.permute.xlu0 %1642
    %1646 = vrot.lane.b32.xlu0 %v1330, 24
    %v1647 = vpop.permute.xlu0 %1646
    %v1649 = vsel %vm318, %v1102, %v1639
    %vm1650 = vcmask 130048
    %v1651 = vsel %vm1650, %v1649, %v1643
    %vm1652 = vcmask 195584
    %v1653 = vsel %vm1652, %v1651, %v1647
    %1655 = vrot.lane.b32.xlu0 %v1482, 8
    %v1656 = vpop.permute.xlu0 %1655
    %1659 = vrot.lane.b32.xlu0 %v1558, 16
    %v1660 = vpop.permute.xlu0 %1659
    %1663 = vrot.lane.b32.xlu0 %v1634, 24
    %v1664 = vpop.permute.xlu0 %1663
    %v1666 = vsel %vm318, %v1406, %v1656
    %v1667 = vsel %vm1650, %v1666, %v1660
    %v1668 = vsel %vm1652, %v1667, %v1664
    %v1670 = vsel %vm113, %v1653, 0
    %v1673 = vsel %vm113, %v1668, 0
    %1675 = vmatprep.subr.mxu0 0.0
    %1676 = vmatpush1.msra.mxu0 %v94
    %1677 = vmatprep.subr.mxu0 0.0
    %1678 = vmatpush1.msra.mxu0 %v95
    %1679 = vmatprep.subr.mxu0 0.0
    %1680 = vmatpush1.msra.mxu0 %v96
    %1681 = vmatprep.subr.mxu0 0.0
    %1682 = vmatpush1.msra.mxu0 %v97
    %1683 = vmatprep.subr.mxu0 0.0
    %1684 = vmatpush1.msra.mxu0 0.0
    %1685 = vmatprep.subr.mxu0 0.0
    %1686 = vmatpush1.msra.mxu0 0.0
    %1687 = vmatprep.subr.mxu0 0.0
    %1688 = vmatpush1.msra.mxu0 0.0
    %1689 = vmatprep.subr.mxu0 0.0
    %1690 = vmatpush1.msra.mxu0 0.0
    %1691 = vmatprep.subr.mxu0 0.0
    %1692 = vmatpush1.msra.mxu0 0.0
    %1693 = vmatprep.subr.mxu0 0.0
    %1694 = vmatpush1.msra.mxu0 0.0
    %1695 = vmatprep.subr.mxu0 0.0
    %1696 = vmatpush1.msra.mxu0 0.0
    %1697 = vmatprep.subr.mxu0 0.0
    %1698 = vmatpush1.msra.mxu0 0.0
    %1699 = vmatprep.subr.mxu0 0.0
    %1700 = vmatpush1.msra.mxu0 0.0
    %1701 = vmatprep.subr.mxu0 0.0
    %1702 = vmatpush1.msra.mxu0 0.0
    %1703 = vmatprep.subr.mxu0 0.0
    %1704 = vmatpush1.msra.mxu0 0.0
    %1705 = vmatprep.subr.mxu0 0.0
    %1706 = vmatpush1.msra.mxu0 0.0
    %1707 = vmatprep.subr.mxu0 0.0
    %1708 = vmatpush1.msra.mxu0 0.0
    %1709 = vmatprep.subr.mxu0 0.0
    %1710 = vmatpush1.msra.mxu0 0.0
    %1711 = vmatprep.subr.mxu0 0.0
    %1712 = vmatpush1.msra.mxu0 0.0
    %1713 = vmatprep.subr.mxu0 0.0
    %1714 = vmatpush1.msra.mxu0 0.0
    %1715 = vmatprep.subr.mxu0 0.0
    %1716 = vmatpush1.msra.mxu0 0.0
    %1717 = vmatprep.subr.mxu0 0.0
    %1718 = vmatpush1.msra.mxu0 0.0
    %1719 = vmatprep.subr.mxu0 0.0
    %1720 = vmatpush1.msra.mxu0 0.0
    %1721 = vmatprep.subr.mxu0 0.0
    %1722 = vmatpush1.msra.mxu0 0.0
    %1723 = vmatprep.subr.mxu0 0.0
    %1724 = vmatpush1.msra.mxu0 0.0
    %1725 = vmatprep.subr.mxu0 0.0
    %1726 = vmatpush1.msra.mxu0 0.0
    %1727 = vmatprep.subr.mxu0 0.0
    %1728 = vmatpush1.msra.mxu0 0.0
    %1729 = vmatprep.subr.mxu0 0.0
    %1730 = vmatpush1.msra.mxu0 0.0
    %1731 = vmatprep.subr.mxu0 0.0
    %1732 = vmatpush1.msra.mxu0 0.0
    %1733 = vmatprep.subr.mxu0 0.0
    %1734 = vmatpush1.msra.mxu0 0.0
    %1735 = vmatprep.subr.mxu0 0.0
    %1736 = vmatpush1.msra.mxu0 0.0
    %1737 = vmatprep.subr.mxu0 0.0
    %1738 = vmatpush1.msra.mxu0 0.0
    %1739 = vmatprep.mubr.f32.mxu0 0.0
    %1740 = vmatmul.mubr.f32.gmra.mrb[0].mxu0 %v1670
    %v1741 = vpop.f32.mrb[0].mxu0
    %v1742 = vadd.f32 0.0, %v1741
    %v1743 = vpop.f32.mrb[0].mxu0
    %1744 = vmatprep.mubr.f32.mxu0 0.0
    %1745 = vmatmul.mubr.f32.gmra.mrb[0].mxu0 %v1673
    %v1746 = vpop.f32.mrb[0].mxu0
    %v1747 = vadd.f32 0.0, %v1746
    %v1748 = vpop.f32.mrb[0].mxu0
    %1749 = vdwg.mxu0
    %v1750 = vadd.f32 %v80, %v1742
    %v1751 = vadd.f32 %v81, %v1747
    %v1752 = vlaneseq
    %v1753 = vshrl.u32 %v1752, 7
    %v1754 = vsub.s32 3, %v1753
    %v1755 = vrot.slane %v110, %v1754
    %v1756 = vadd.f32 %v1750, %v1755
    %v1757 = vadd.f32 %v1751, %v1755
    %v1758 = vsel %vm113, %v1756, 0.0
    %1759 = vadd.xlane.f32.xlu0 %v1758
    %v1760 = vpop.xlane.xlu0 %1759
    %v1761 = vsel %vm113, %v1757, 0.0
    %1762 = vadd.xlane.f32.xlu0 %v1761
    %v1763 = vpop.xlane.xlu0 %1762
    %v1764 = vmul.f32 %v1760, %v120
    %v1765 = vmul.f32 %v1763, %v120
    %v1766 = vsub.f32 %v1756, %v1764
    %v1767 = vsub.f32 %v1757, %v1765
    %v1768 = vmul.f32 %v1766, %v1766
    %v1769 = vmul.f32 %v1767, %v1767
    %v1770 = vsel %vm113, %v1768, 0.0
    %1771 = vadd.xlane.f32.xlu0 %v1770
    %v1772 = vpop.xlane.xlu0 %1771
    %v1773 = vsel %vm113, %v1769, 0.0
    %1774 = vadd.xlane.f32.xlu0 %v1773
    %v1775 = vpop.xlane.xlu0 %1774
    %v1776 = vmul.f32 %v1772, 0.032258064
    %v1777 = vmul.f32 %v1775, 0.032258064
    %v1778 = vrsqrt.pop %v1776
    %v1779 = vmul.f32 %v1776, %v1778
    %vm1780 = vcmp.eq.f32.partialorder %v1776, inf
    %v1781 = vsel %vm1780, %v1776, %v1779
    %vm1782 = vcmp.eq.f32.partialorder %v1776, 0.0
    %v1783 = vand.u32 %v1776, 2147483648
    %v1784 = vsel %vm1782, %v1783, %v1781
    %v1785 = vrsqrt.pop %v1777
    %v1786 = vmul.f32 %v1777, %v1785
    %vm1787 = vcmp.eq.f32.partialorder %v1777, inf
    %v1788 = vsel %vm1787, %v1777, %v1786
    %vm1789 = vcmp.eq.f32.partialorder %v1777, 0.0
    %v1790 = vand.u32 %v1777, 2147483648
    %v1791 = vsel %vm1789, %v1790, %v1788
    %v1792 = vadd.f32 %v1784, 1e-06
    %v1793 = vadd.f32 %v1791, 1e-06
    %v1794 = vrcp.pop %v1792
    %v1795 = vrcp.pop %v1793
    %v1796 = vmul.f32 %v1766, %v1794
    %v1797 = vmul.f32 %v1767, %v1795
    %v1798 = vlaneseq
    %v1799 = vshrl.u32 %v1798, 7
    %v1800 = vsub.s32 7, %v1799
    %v1801 = vrot.slane %v110, %v1800
    %v1802 = vmul.f32 %v1801, %v1796
    %v1803 = vmul.f32 %v1801, %v1797
    %v1804 = vlaneseq
    %v1805 = vshrl.u32 %v1804, 7
    %v1806 = vsub.s32 0, %v1805
    %v1807 = vrot.slane %v111, %v1806
    %v1808 = vadd.f32 %v1802, %v1807
    %v1809 = vadd.f32 %v1803, %v1807
    %v1811 = vlaneseq
    %v1812 = vshrl.u32 %v1811, 7
    %v1813 = vsub.s32 0, %v1812
    %v1814 = vrot.slane %v112, %v1813
    %v1817 = vsel %vm113, %v1808, 0
    %v1820 = vsel %vm113, %v1809, 0
    %1822 = vmatprep.subr.mxu0 0.0
    %1823 = vmatpush1.msra.mxu0 %v98
    %1824 = vmatprep.subr.mxu0 0.0
    %1825 = vmatpush1.msra.mxu0 %v99
    %1826 = vmatprep.subr.mxu0 0.0
    %1827 = vmatpush1.msra.mxu0 %v100
    %1828 = vmatprep.subr.mxu0 0.0
    %1829 = vmatpush1.msra.mxu0 %v101
    %1830 = vmatprep.subr.mxu0 0.0
    %1831 = vmatpush1.msra.mxu0 0.0
    %1832 = vmatprep.subr.mxu0 0.0
    %1833 = vmatpush1.msra.mxu0 0.0
    %1834 = vmatprep.subr.mxu0 0.0
    %1835 = vmatpush1.msra.mxu0 0.0
    %1836 = vmatprep.subr.mxu0 0.0
    %1837 = vmatpush1.msra.mxu0 0.0
    %1838 = vmatprep.subr.mxu0 0.0
    %1839 = vmatpush1.msra.mxu0 0.0
    %1840 = vmatprep.subr.mxu0 0.0
    %1841 = vmatpush1.msra.mxu0 0.0
    %1842 = vmatprep.subr.mxu0 0.0
    %1843 = vmatpush1.msra.mxu0 0.0
    %1844 = vmatprep.subr.mxu0 0.0
    %1845 = vmatpush1.msra.mxu0 0.0
    %1846 = vmatprep.subr.mxu0 0.0
    %1847 = vmatpush1.msra.mxu0 0.0
    %1848 = vmatprep.subr.mxu0 0.0
    %1849 = vmatpush1.msra.mxu0 0.0
    %1850 = vmatprep.subr.mxu0 0.0
    %1851 = vmatpush1.msra.mxu0 0.0
    %1852 = vmatprep.subr.mxu0 0.0
    %1853 = vmatpush1.msra.mxu0 0.0
    %1854 = vmatprep.subr.mxu0 0.0
    %1855 = vmatpush1.msra.mxu0 0.0
    %1856 = vmatprep.subr.mxu0 0.0
    %1857 = vmatpush1.msra.mxu0 0.0
    %1858 = vmatprep.subr.mxu0 0.0
    %1859 = vmatpush1.msra.mxu0 0.0
    %1860 = vmatprep.subr.mxu0 0.0
    %1861 = vmatpush1.msra.mxu0 0.0
    %1862 = vmatprep.subr.mxu0 0.0
    %1863 = vmatpush1.msra.mxu0 0.0
    %1864 = vmatprep.subr.mxu0 0.0
    %1865 = vmatpush1.msra.mxu0 0.0
    %1866 = vmatprep.subr.mxu0 0.0
    %1867 = vmatpush1.msra.mxu0 0.0
    %1868 = vmatprep.subr.mxu0 0.0
    %1869 = vmatpush1.msra.mxu0 0.0
    %1870 = vmatprep.subr.mxu0 0.0
    %1871 = vmatpush1.msra.mxu0 0.0
    %1872 = vmatprep.subr.mxu0 0.0
    %1873 = vmatpush1.msra.mxu0 0.0
    %1874 = vmatprep.subr.mxu0 0.0
    %1875 = vmatpush1.msra.mxu0 0.0
    %1876 = vmatprep.subr.mxu0 0.0
    %1877 = vmatpush1.msra.mxu0 0.0
    %1878 = vmatprep.subr.mxu0 0.0
    %1879 = vmatpush1.msra.mxu0 0.0
    %1880 = vmatprep.subr.mxu0 0.0
    %1881 = vmatpush1.msra.mxu0 0.0
    %1882 = vmatprep.subr.mxu0 0.0
    %1883 = vmatpush1.msra.mxu0 0.0
    %1884 = vmatprep.subr.mxu0 0.0
    %1885 = vmatpush1.msra.mxu0 0.0
    %1886 = vmatprep.mubr.f32.mxu0 0.0
    %1887 = vmatmul.mubr.f32.gmra.mrb[0].mxu0 %v1817
    %v1888 = vpop.f32.mrb[0].mxu0
    %v1889 = vadd.f32 %v1814, %v1888
    %v1890 = vpop.f32.mrb[0].mxu0
    %1891 = vmatprep.mubr.f32.mxu0 0.0
    %1892 = vmatmul.mubr.f32.gmra.mrb[0].mxu0 %v1820
    %v1893 = vpop.f32.mrb[0].mxu0
    %v1894 = vadd.f32 %v1814, %v1893
    %v1895 = vpop.f32.mrb[0].mxu0
    %1896 = vdwg.mxu0
    %v1897 = vmax.f32 %v1889, 0.0
    %v1898 = vmax.f32 %v1894, 0.0
    %vm1899 = vcmask 523264
    %v1901 = vsel %vm1899, %v1897, 0
    %v1904 = vsel %vm1899, %v1898, 0
    %1906 = vmatprep.subr.mxu0 0.0
    %1907 = vmatpush1.msra.mxu0 %v102
    %1908 = vmatprep.subr.mxu0 0.0
    %1909 = vmatpush1.msra.mxu0 %v103
    %1910 = vmatprep.subr.mxu0 0.0
    %1911 = vmatpush1.msra.mxu0 %v104
    %1912 = vmatprep.subr.mxu0 0.0
    %1913 = vmatpush1.msra.mxu0 %v105
    %1914 = vmatprep.subr.mxu0 0.0
    %1915 = vmatpush1.msra.mxu0 %v106
    %1916 = vmatprep.subr.mxu0 0.0
    %1917 = vmatpush1.msra.mxu0 %v107
    %1918 = vmatprep.subr.mxu0 0.0
    %1919 = vmatpush1.msra.mxu0 %v108
    %1920 = vmatprep.subr.mxu0 0.0
    %1921 = vmatpush1.msra.mxu0 %v109
    %1922 = vmatprep.subr.mxu0 0.0
    %1923 = vmatpush1.msra.mxu0 0.0
    %1924 = vmatprep.subr.mxu0 0.0
    %1925 = vmatpush1.msra.mxu0 0.0
    %1926 = vmatprep.subr.mxu0 0.0
    %1927 = vmatpush1.msra.mxu0 0.0
    %1928 = vmatprep.subr.mxu0 0.0
    %1929 = vmatpush1.msra.mxu0 0.0
    %1930 = vmatprep.subr.mxu0 0.0
    %1931 = vmatpush1.msra.mxu0 0.0
    %1932 = vmatprep.subr.mxu0 0.0
    %1933 = vmatpush1.msra.mxu0 0.0
    %1934 = vmatprep.subr.mxu0 0.0
    %1935 = vmatpush1.msra.mxu0 0.0
    %1936 = vmatprep.subr.mxu0 0.0
    %1937 = vmatpush1.msra.mxu0 0.0
    %1938 = vmatprep.subr.mxu0 0.0
    %1939 = vmatpush1.msra.mxu0 0.0
    %1940 = vmatprep.subr.mxu0 0.0
    %1941 = vmatpush1.msra.mxu0 0.0
    %1942 = vmatprep.subr.mxu0 0.0
    %1943 = vmatpush1.msra.mxu0 0.0
    %1944 = vmatprep.subr.mxu0 0.0
    %1945 = vmatpush1.msra.mxu0 0.0
    %1946 = vmatprep.subr.mxu0 0.0
    %1947 = vmatpush1.msra.mxu0 0.0
    %1948 = vmatprep.subr.mxu0 0.0
    %1949 = vmatpush1.msra.mxu0 0.0
    %1950 = vmatprep.subr.mxu0 0.0
    %1951 = vmatpush1.msra.mxu0 0.0
    %1952 = vmatprep.subr.mxu0 0.0
    %1953 = vmatpush1.msra.mxu0 0.0
    %1954 = vmatprep.subr.mxu0 0.0
    %1955 = vmatpush1.msra.mxu0 0.0
    %1956 = vmatprep.subr.mxu0 0.0
    %1957 = vmatpush1.msra.mxu0 0.0
    %1958 = vmatprep.subr.mxu0 0.0
    %1959 = vmatpush1.msra.mxu0 0.0
    %1960 = vmatprep.subr.mxu0 0.0
    %1961 = vmatpush1.msra.mxu0 0.0
    %1962 = vmatprep.subr.mxu0 0.0
    %1963 = vmatpush1.msra.mxu0 0.0
    %1964 = vmatprep.subr.mxu0 0.0
    %1965 = vmatpush1.msra.mxu0 0.0
    %1966 = vmatprep.subr.mxu0 0.0
    %1967 = vmatpush1.msra.mxu0 0.0
    %1968 = vmatprep.subr.mxu0 0.0
    %1969 = vmatpush1.msra.mxu0 0.0
    %1970 = vmatprep.mubr.f32.mxu0 0.0
    %1971 = vmatmul.mubr.f32.gmra.mrb[0].mxu0 %v1901
    %v1972 = vpop.f32.mrb[0].mxu0
    %v1973 = vadd.f32 0.0, %v1972
    %v1974 = vpop.f32.mrb[0].mxu0
    %1975 = vmatprep.mubr.f32.mxu0 0.0
    %1976 = vmatmul.mubr.f32.gmra.mrb[0].mxu0 %v1904
    %v1977 = vpop.f32.mrb[0].mxu0
    %v1978 = vadd.f32 0.0, %v1977
    %v1979 = vpop.f32.mrb[0].mxu0
    %1980 = vdwg.mxu0
    %v1981 = vadd.f32 %v1756, %v1973
    %v1982 = vadd.f32 %v1757, %v1978
    %v1983 = vlaneseq
    %v1984 = vshrl.u32 %v1983, 7
    %v1985 = vsub.s32 4, %v1984
    %v1986 = vrot.slane %v110, %v1985
    %v1987 = vadd.f32 %v1981, %v1986
    %v1988 = vadd.f32 %v1982, %v1986
    %s1989 = scalar_lea.vmem %s2, 32
    %v1990 = vld [vmem:[%s1989] sm:$0xff]
    %v1991 = vld [vmem:[%s1989 + $0x8] sm:$0xff]
    %v1992 = vld [vmem:[%s1989 + $0x10] sm:$0xff]
    %v1993 = vld [vmem:[%s1989 + $0x18] sm:$0xff]
    %s1994 = scalar_lea.vmem %s3, 32
    %v1995 = vld [vmem:[%s1994] sm:$0xff]
    %v1996 = vld [vmem:[%s1994 + $0x8] sm:$0xff]
    %v1997 = vld [vmem:[%s1994 + $0x10] sm:$0xff]
    %v1998 = vld [vmem:[%s1994 + $0x18] sm:$0xff]
    %s1999 = scalar_lea.vmem [#allocation5], 32
    %v2000 = vld [vmem:[%s1999] sm:$0xff]
    %v2001 = vld [vmem:[%s1999 + $0x8] sm:$0xff]
    %v2002 = vld [vmem:[%s1999 + $0x10] sm:$0xff]
    %v2003 = vld [vmem:[%s1999 + $0x18] sm:$0xff]
    %s2004 = scalar_lea.vmem %s5, 64
    %v2005 = vld [vmem:[%s2004] sm:$0xff]
    %v2006 = vld [vmem:[%s2004 + $0x8] sm:$0xff]
    %v2007 = vld [vmem:[%s2004 + $0x10] sm:$0xff]
    %v2008 = vld [vmem:[%s2004 + $0x18] sm:$0xff]
    %v2009 = vld [vmem:[%s2004 + $0x20] sm:$0xff]
    %v2010 = vld [vmem:[%s2004 + $0x28] sm:$0xff]
    %v2011 = vld [vmem:[%s2004 + $0x30] sm:$0xff]
    %v2012 = vld [vmem:[%s2004 + $0x38] sm:$0xff]
    %s2013 = scalar_lea.vmem %s6, 16
    %v2014 = vld [vmem:[%s2013] sm:$0xff]
    %v2015 = vld [vmem:[%s2013 + $0x8] sm:$0x1]
    %s2016 = scalar_lea.vmem %s7, 1
    %v2017 = vld [vmem:[%s2016] sm:$0x1]
    %v2018 = vsel %vm113, %v1987, 0.0
    %2019 = vadd.xlane.f32.xlu0 %v2018
    %v2020 = vpop.xlane.xlu0 %2019
    %v2021 = vsel %vm113, %v1988, 0.0
    %2022 = vadd.xlane.f32.xlu0 %v2021
    %v2023 = vpop.xlane.xlu0 %2022
    %v2024 = vmul.f32 %v2020, %v120
    %v2025 = vmul.f32 %v2023, %v120
    %v2026 = vsub.f32 %v1987, %v2024
    %v2027 = vsub.f32 %v1988, %v2025
    %v2028 = vmul.f32 %v2026, %v2026
    %v2029 = vmul.f32 %v2027, %v2027
    %v2030 = vsel %vm113, %v2028, 0.0
    %2031 = vadd.xlane.f32.xlu0 %v2030
    %v2032 = vpop.xlane.xlu0 %2031
    %v2033 = vsel %vm113, %v2029, 0.0
    %2034 = vadd.xlane.f32.xlu0 %v2033
    %v2035 = vpop.xlane.xlu0 %2034
    %v2036 = vmul.f32 %v2032, 0.032258064
    %v2037 = vmul.f32 %v2035, 0.032258064
    %v2038 = vrsqrt.pop %v2036
    %v2039 = vmul.f32 %v2036, %v2038
    %vm2040 = vcmp.eq.f32.partialorder %v2036, inf
    %v2041 = vsel %vm2040, %v2036, %v2039
    %vm2042 = vcmp.eq.f32.partialorder %v2036, 0.0
    %v2043 = vand.u32 %v2036, 2147483648
    %v2044 = vsel %vm2042, %v2043, %v2041
    %v2045 = vrsqrt.pop %v2037
    %v2046 = vmul.f32 %v2037, %v2045
    %vm2047 = vcmp.eq.f32.partialorder %v2037, inf
    %v2048 = vsel %vm2047, %v2037, %v2046
    %vm2049 = vcmp.eq.f32.partialorder %v2037, 0.0
    %v2050 = vand.u32 %v2037, 2147483648
    %v2051 = vsel %vm2049, %v2050, %v2048
    %v2052 = vadd.f32 %v2044, 1e-06
    %v2053 = vadd.f32 %v2051, 1e-06
    %v2054 = vrcp.pop %v2052
    %v2055 = vrcp.pop %v2053
    %v2056 = vmul.f32 %v2026, %v2054
    %v2057 = vmul.f32 %v2027, %v2055
    %v2058 = vlaneseq
    %v2059 = vshrl.u32 %v2058, 7
    %v2060 = vsub.s32 5, %v2059
    %v2061 = vrot.slane %v2014, %v2060
    %v2062 = vmul.f32 %v2061, %v2056
    %v2063 = vmul.f32 %v2061, %v2057
    %v2064 = vlaneseq
    %v2065 = vshrl.u32 %v2064, 7
    %v2066 = vsub.s32 6, %v2065
    %v2067 = vrot.slane %v2014, %v2066
    %v2068 = vadd.f32 %v2062, %v2067
    %v2069 = vadd.f32 %v2063, %v2067
    %v2071 = vsel %vm113, %v2068, 0
    %v2074 = vsel %vm113, %v2069, 0
    %2076 = vmatprep.subr.mxu0 0.0
    %2077 = vmatpush1.msra.mxu0 %v1990
    %2078 = vmatprep.subr.mxu0 0.0
    %2079 = vmatpush1.msra.mxu0 %v1991
    %2080 = vmatprep.subr.mxu0 0.0
    %2081 = vmatpush1.msra.mxu0 %v1992
    %2082 = vmatprep.subr.mxu0 0.0
    %2083 = vmatpush1.msra.mxu0 %v1993
    %2084 = vmatprep.subr.mxu0 0.0
    %2085 = vmatpush1.msra.mxu0 0.0
    %2086 = vmatprep.subr.mxu0 0.0
    %2087 = vmatpush1.msra.mxu0 0.0
    %2088 = vmatprep.subr.mxu0 0.0
    %2089 = vmatpush1.msra.mxu0 0.0
    %2090 = vmatprep.subr.mxu0 0.0
    %2091 = vmatpush1.msra.mxu0 0.0
    %2092 = vmatprep.subr.mxu0 0.0
    %2093 = vmatpush1.msra.mxu0 0.0
    %2094 = vmatprep.subr.mxu0 0.0
    %2095 = vmatpush1.msra.mxu0 0.0
    %2096 = vmatprep.subr.mxu0 0.0
    %2097 = vmatpush1.msra.mxu0 0.0
    %2098 = vmatprep.subr.mxu0 0.0
    %2099 = vmatpush1.msra.mxu0 0.0
    %2100 = vmatprep.subr.mxu0 0.0
    %2101 = vmatpush1.msra.mxu0 0.0
    %2102 = vmatprep.subr.mxu0 0.0
    %2103 = vmatpush1.msra.mxu0 0.0
    %2104 = vmatprep.subr.mxu0 0.0
    %2105 = vmatpush1.msra.mxu0 0.0
    %2106 = vmatprep.subr.mxu0 0.0
    %2107 = vmatpush1.msra.mxu0 0.0
    %2108 = vmatprep.subr.mxu0 0.0
    %2109 = vmatpush1.msra.mxu0 0.0
    %2110 = vmatprep.subr.mxu0 0.0
    %2111 = vmatpush1.msra.mxu0 0.0
    %2112 = vmatprep.subr.mxu0 0.0
    %2113 = vmatpush1.msra.mxu0 0.0
    %2114 = vmatprep.subr.mxu0 0.0
    %2115 = vmatpush1.msra.mxu0 0.0
    %2116 = vmatprep.subr.mxu0 0.0
    %2117 = vmatpush1.msra.mxu0 0.0
    %2118 = vmatprep.subr.mxu0 0.0
    %2119 = vmatpush1.msra.mxu0 0.0
    %2120 = vmatprep.subr.mxu0 0.0
    %2121 = vmatpush1.msra.mxu0 0.0
    %2122 = vmatprep.subr.mxu0 0.0
    %2123 = vmatpush1.msra.mxu0 0.0
    %2124 = vmatprep.subr.mxu0 0.0
    %2125 = vmatpush1.msra.mxu0 0.0
    %2126 = vmatprep.subr.mxu0 0.0
    %2127 = vmatpush1.msra.mxu0 0.0
    %2128 = vmatprep.subr.mxu0 0.0
    %2129 = vmatpush1.msra.mxu0 0.0
    %2130 = vmatprep.subr.mxu0 0.0
    %2131 = vmatpush1.msra.mxu0 0.0
    %2132 = vmatprep.subr.mxu0 0.0
    %2133 = vmatpush1.msra.mxu0 0.0
    %2134 = vmatprep.subr.mxu0 0.0
    %2135 = vmatpush1.msra.mxu0 0.0
    %2136 = vmatprep.subr.mxu0 0.0
    %2137 = vmatpush1.msra.mxu0 0.0
    %2138 = vmatprep.subr.mxu0 0.0
    %2139 = vmatpush1.msra.mxu0 0.0
    %2140 = vmatprep.mubr.f32.mxu0 0.0
    %2141 = vmatmul.mubr.f32.gmra.mrb[0].mxu0 %v2071
    %v2142 = vpop.f32.mrb[0].mxu0
    %v2143 = vadd.f32 0.0, %v2142
    %v2144 = vpop.f32.mrb[0].mxu0
    %2145 = vmatprep.mubr.f32.mxu0 0.0
    %2146 = vmatmul.mubr.f32.gmra.mrb[0].mxu0 %v2074
    %v2147 = vpop.f32.mrb[0].mxu0
    %v2148 = vadd.f32 0.0, %v2147
    %v2149 = vpop.f32.mrb[0].mxu0
    %2150 = vdwg.mxu0
    %v2151 = vlaneseq
    %v2152 = vshrl.u32 %v2151, 7
    %v2153 = vsub.s32 0, %v2152
    %v2154 = vrot.slane %v2014, %v2153
    %v2155 = vadd.f32 %v2143, %v2154
    %v2156 = vadd.f32 %v2148, %v2154
    %v2157 = vlaneseq
    %v2158 = vshrl.u32 %v2157, 7
    %v2159 = vsub.s32 1, %v2158
    %v2160 = vrot.slane %v2014, %v2159
    %2162 = vrot.lane.b32.xlu0 %v2160, 32
    %v2163 = vpop.permute.xlu0 %2162
    %v2165 = vadd.f32 %v2143, %v2163
    %v2166 = vadd.f32 %v2148, %v2163
    %v2167 = vlaneseq
    %v2168 = vshrl.u32 %v2167, 7
    %v2169 = vsub.s32 2, %v2168
    %v2170 = vrot.slane %v2014, %v2169
    %2172 = vrot.lane.b32.xlu0 %v2170, 64
    %v2173 = vpop.permute.xlu0 %2172
    %v2175 = vadd.f32 %v2143, %v2173
    %v2176 = vadd.f32 %v2148, %v2173
    %2178 = vrot.lane.b32.xlu0 %v2155, 120
    %v2179 = vpop.permute.xlu0 %2178
    %2180 = vrot.lane.b32.xlu0 %v2155, 112
    %v2181 = vpop.permute.xlu0 %2180
    %2182 = vrot.lane.b32.xlu0 %v2155, 104
    %v2183 = vpop.permute.xlu0 %2182
    %2185 = vrot.lane.b32.xlu0 %v2156, 120
    %v2186 = vpop.permute.xlu0 %2185
    %2187 = vrot.lane.b32.xlu0 %v2156, 112
    %v2188 = vpop.permute.xlu0 %2187
    %2189 = vrot.lane.b32.xlu0 %v2156, 104
    %v2190 = vpop.permute.xlu0 %2189
    %2192 = vrot.lane.b32.xlu0 %v2165, 120
    %v2193 = vpop.permute.xlu0 %2192
    %2194 = vrot.lane.b32.xlu0 %v2165, 112
    %v2195 = vpop.permute.xlu0 %2194
    %2196 = vrot.lane.b32.xlu0 %v2165, 104
    %v2197 = vpop.permute.xlu0 %2196
    %2199 = vrot.lane.b32.xlu0 %v2166, 120
    %v2200 = vpop.permute.xlu0 %2199
    %2201 = vrot.lane.b32.xlu0 %v2166, 112
    %v2202 = vpop.permute.xlu0 %2201
    %2203 = vrot.lane.b32.xlu0 %v2166, 104
    %v2204 = vpop.permute.xlu0 %2203
    %2206 = vrot.lane.b32.xlu0 %v2175, 120
    %v2207 = vpop.permute.xlu0 %2206
    %2208 = vrot.lane.b32.xlu0 %v2175, 112
    %v2209 = vpop.permute.xlu0 %2208
    %2210 = vrot.lane.b32.xlu0 %v2175, 104
    %v2211 = vpop.permute.xlu0 %2210
    %2213 = vrot.lane.b32.xlu0 %v2176, 120
    %v2214 = vpop.permute.xlu0 %2213
    %2215 = vrot.lane.b32.xlu0 %v2176, 112
    %v2216 = vpop.permute.xlu0 %2215
    %2217 = vrot.lane.b32.xlu0 %v2176, 104
    %v2218 = vpop.permute.xlu0 %2217
    %2219 = vrot.lane.b32.xlu0 %v2165, 96
    %v2220 = vpop.permute.xlu0 %2219
    %v2221 = vsel %vm318, %v2155, 0
    %v2223 = vsel %vm318, %v2220, 0
    %2225 = vmatprep.subr.mxu0 0.0
    %2226 = vmatpush1.xpose.msra.mxu0 %v2223
    %2227 = vmatprep.subr.mxu0 0.0
    %2228 = vmatpush1.xpose.msra.mxu0 0.0
    %2229 = vmatprep.subr.mxu0 0.0
    %2230 = vmatpush1.xpose.msra.mxu0 0.0
    %2231 = vmatprep.subr.mxu0 0.0
    %2232 = vmatpush1.xpose.msra.mxu0 0.0
    %2233 = vmatprep.subr.mxu0 0.0
    %2234 = vmatpush1.xpose.msra.mxu0 0.0
    %2235 = vmatprep.subr.mxu0 0.0
    %2236 = vmatpush1.xpose.msra.mxu0 0.0
    %2237 = vmatprep.subr.mxu0 0.0
    %2238 = vmatpush1.xpose.msra.mxu0 0.0
    %2239 = vmatprep.subr.mxu0 0.0
    %2240 = vmatpush1.xpose.msra.mxu0 0.0
    %2241 = vmatprep.subr.mxu0 0.0
    %2242 = vmatpush1.xpose.msra.mxu0 0.0
    %2243 = vmatprep.subr.mxu0 0.0
    %2244 = vmatpush1.xpose.msra.mxu0 0.0
    %2245 = vmatprep.subr.mxu0 0.0
    %2246 = vmatpush1.xpose.msra.mxu0 0.0
    %2247 = vmatprep.subr.mxu0 0.0
    %2248 = vmatpush1.xpose.msra.mxu0 0.0
    %2249 = vmatprep.subr.mxu0 0.0
    %2250 = vmatpush1.xpose.msra.mxu0 0.0
    %2251 = vmatprep.subr.mxu0 0.0
    %2252 = vmatpush1.xpose.msra.mxu0 0.0
    %2253 = vmatprep.subr.mxu0 0.0
    %2254 = vmatpush1.xpose.msra.mxu0 0.0
    %2255 = vmatprep.subr.mxu0 0.0
    %2256 = vmatpush1.xpose.msra.mxu0 0.0
    %2257 = vmatprep.subr.mxu0 0.0
    %2258 = vmatpush1.xpose.msra.mxu0 0.0
    %2259 = vmatprep.subr.mxu0 0.0
    %2260 = vmatpush1.xpose.msra.mxu0 0.0
    %2261 = vmatprep.subr.mxu0 0.0
    %2262 = vmatpush1.xpose.msra.mxu0 0.0
    %2263 = vmatprep.subr.mxu0 0.0
    %2264 = vmatpush1.xpose.msra.mxu0 0.0
    %2265 = vmatprep.subr.mxu0 0.0
    %2266 = vmatpush1.xpose.msra.mxu0 0.0
    %2267 = vmatprep.subr.mxu0 0.0
    %2268 = vmatpush1.xpose.msra.mxu0 0.0
    %2269 = vmatprep.subr.mxu0 0.0
    %2270 = vmatpush1.xpose.msra.mxu0 0.0
    %2271 = vmatprep.subr.mxu0 0.0
    %2272 = vmatpush1.xpose.msra.mxu0 0.0
    %2273 = vmatprep.subr.mxu0 0.0
    %2274 = vmatpush1.xpose.msra.mxu0 0.0
    %2275 = vmatprep.subr.mxu0 0.0
    %2276 = vmatpush1.xpose.msra.mxu0 0.0
    %2277 = vmatprep.subr.mxu0 0.0
    %2278 = vmatpush1.xpose.msra.mxu0 0.0
    %2279 = vmatprep.subr.mxu0 0.0
    %2280 = vmatpush1.xpose.msra.mxu0 0.0
    %2281 = vmatprep.subr.mxu0 0.0
    %2282 = vmatpush1.xpose.msra.mxu0 0.0
    %2283 = vmatprep.subr.mxu0 0.0
    %2284 = vmatpush1.xpose.msra.mxu0 0.0
    %2285 = vmatprep.subr.mxu0 0.0
    %2286 = vmatpush1.xpose.msra.mxu0 0.0
    %2287 = vmatprep.subr.mxu0 0.0
    %2288 = vmatpush1.xpose.msra.mxu0 0.0
    %2289 = vmatprep.mubr.f32.mxu0 0.0
    %2290 = vmatmul.mubr.f32.gmra.mrb[0].mxu0 %v2221
    %v2291 = vpop.f32.mrb[0].mxu0
    %v2292 = vadd.f32 0.0, %v2291
    %v2293 = vpop.f32.mrb[0].mxu0
    %2294 = vdwg.mxu0
    %2295 = vrot.lane.b32.xlu0 %v2193, 96
    %v2296 = vpop.permute.xlu0 %2295
    %v2297 = vsel %vm318, %v2179, 0
    %v2299 = vsel %vm318, %v2296, 0
    %2301 = vmatprep.subr.mxu0 0.0
    %2302 = vmatpush1.xpose.msra.mxu0 %v2299
    %2303 = vmatprep.subr.mxu0 0.0
    %2304 = vmatpush1.xpose.msra.mxu0 0.0
    %2305 = vmatprep.subr.mxu0 0.0
    %2306 = vmatpush1.xpose.msra.mxu0 0.0
    %2307 = vmatprep.subr.mxu0 0.0
    %2308 = vmatpush1.xpose.msra.mxu0 0.0
    %2309 = vmatprep.subr.mxu0 0.0
    %2310 = vmatpush1.xpose.msra.mxu0 0.0
    %2311 = vmatprep.subr.mxu0 0.0
    %2312 = vmatpush1.xpose.msra.mxu0 0.0
    %2313 = vmatprep.subr.mxu0 0.0
    %2314 = vmatpush1.xpose.msra.mxu0 0.0
    %2315 = vmatprep.subr.mxu0 0.0
    %2316 = vmatpush1.xpose.msra.mxu0 0.0
    %2317 = vmatprep.subr.mxu0 0.0
    %2318 = vmatpush1.xpose.msra.mxu0 0.0
    %2319 = vmatprep.subr.mxu0 0.0
    %2320 = vmatpush1.xpose.msra.mxu0 0.0
    %2321 = vmatprep.subr.mxu0 0.0
    %2322 = vmatpush1.xpose.msra.mxu0 0.0
    %2323 = vmatprep.subr.mxu0 0.0
    %2324 = vmatpush1.xpose.msra.mxu0 0.0
    %2325 = vmatprep.subr.mxu0 0.0
    %2326 = vmatpush1.xpose.msra.mxu0 0.0
    %2327 = vmatprep.subr.mxu0 0.0
    %2328 = vmatpush1.xpose.msra.mxu0 0.0
    %2329 = vmatprep.subr.mxu0 0.0
    %2330 = vmatpush1.xpose.msra.mxu0 0.0
    %2331 = vmatprep.subr.mxu0 0.0
    %2332 = vmatpush1.xpose.msra.mxu0 0.0
    %2333 = vmatprep.subr.mxu0 0.0
    %2334 = vmatpush1.xpose.msra.mxu0 0.0
    %2335 = vmatprep.subr.mxu0 0.0
    %2336 = vmatpush1.xpose.msra.mxu0 0.0
    %2337 = vmatprep.subr.mxu0 0.0
    %2338 = vmatpush1.xpose.msra.mxu0 0.0
    %2339 = vmatprep.subr.mxu0 0.0
    %2340 = vmatpush1.xpose.msra.mxu0 0.0
    %2341 = vmatprep.subr.mxu0 0.0
    %2342 = vmatpush1.xpose.msra.mxu0 0.0
    %2343 = vmatprep.subr.mxu0 0.0
    %2344 = vmatpush1.xpose.msra.mxu0 0.0
    %2345 = vmatprep.subr.mxu0 0.0
    %2346 = vmatpush1.xpose.msra.mxu0 0.0
    %2347 = vmatprep.subr.mxu0 0.0
    %2348 = vmatpush1.xpose.msra.mxu0 0.0
    %2349 = vmatprep.subr.mxu0 0.0
    %2350 = vmatpush1.xpose.msra.mxu0 0.0
    %2351 = vmatprep.subr.mxu0 0.0
    %2352 = vmatpush1.xpose.msra.mxu0 0.0
    %2353 = vmatprep.subr.mxu0 0.0
    %2354 = vmatpush1.xpose.msra.mxu0 0.0
    %2355 = vmatprep.subr.mxu0 0.0
    %2356 = vmatpush1.xpose.msra.mxu0 0.0
    %2357 = vmatprep.subr.mxu0 0.0
    %2358 = vmatpush1.xpose.msra.mxu0 0.0
    %2359 = vmatprep.subr.mxu0 0.0
    %2360 = vmatpush1.xpose.msra.mxu0 0.0
    %2361 = vmatprep.subr.mxu0 0.0
    %2362 = vmatpush1.xpose.msra.mxu0 0.0
    %2363 = vmatprep.subr.mxu0 0.0
    %2364 = vmatpush1.xpose.msra.mxu0 0.0
    %2365 = vmatprep.mubr.f32.mxu0 0.0
    %2366 = vmatmul.mubr.f32.gmra.mrb[0].mxu0 %v2297
    %v2367 = vpop.f32.mrb[0].mxu0
    %v2368 = vadd.f32 0.0, %v2367
    %v2369 = vpop.f32.mrb[0].mxu0
    %2370 = vdwg.mxu0
    %2371 = vrot.lane.b32.xlu0 %v2195, 96
    %v2372 = vpop.permute.xlu0 %2371
    %v2373 = vsel %vm318, %v2181, 0
    %v2375 = vsel %vm318, %v2372, 0
    %2377 = vmatprep.subr.mxu0 0.0
    %2378 = vmatpush1.xpose.msra.mxu0 %v2375
    %2379 = vmatprep.subr.mxu0 0.0
    %2380 = vmatpush1.xpose.msra.mxu0 0.0
    %2381 = vmatprep.subr.mxu0 0.0
    %2382 = vmatpush1.xpose.msra.mxu0 0.0
    %2383 = vmatprep.subr.mxu0 0.0
    %2384 = vmatpush1.xpose.msra.mxu0 0.0
    %2385 = vmatprep.subr.mxu0 0.0
    %2386 = vmatpush1.xpose.msra.mxu0 0.0
    %2387 = vmatprep.subr.mxu0 0.0
    %2388 = vmatpush1.xpose.msra.mxu0 0.0
    %2389 = vmatprep.subr.mxu0 0.0
    %2390 = vmatpush1.xpose.msra.mxu0 0.0
    %2391 = vmatprep.subr.mxu0 0.0
    %2392 = vmatpush1.xpose.msra.mxu0 0.0
    %2393 = vmatprep.subr.mxu0 0.0
    %2394 = vmatpush1.xpose.msra.mxu0 0.0
    %2395 = vmatprep.subr.mxu0 0.0
    %2396 = vmatpush1.xpose.msra.mxu0 0.0
    %2397 = vmatprep.subr.mxu0 0.0
    %2398 = vmatpush1.xpose.msra.mxu0 0.0
    %2399 = vmatprep.subr.mxu0 0.0
    %2400 = vmatpush1.xpose.msra.mxu0 0.0
    %2401 = vmatprep.subr.mxu0 0.0
    %2402 = vmatpush1.xpose.msra.mxu0 0.0
    %2403 = vmatprep.subr.mxu0 0.0
    %2404 = vmatpush1.xpose.msra.mxu0 0.0
    %2405 = vmatprep.subr.mxu0 0.0
    %2406 = vmatpush1.xpose.msra.mxu0 0.0
    %2407 = vmatprep.subr.mxu0 0.0
    %2408 = vmatpush1.xpose.msra.mxu0 0.0
    %2409 = vmatprep.subr.mxu0 0.0
    %2410 = vmatpush1.xpose.msra.mxu0 0.0
    %2411 = vmatprep.subr.mxu0 0.0
    %2412 = vmatpush1.xpose.msra.mxu0 0.0
    %2413 = vmatprep.subr.mxu0 0.0
    %2414 = vmatpush1.xpose.msra.mxu0 0.0
    %2415 = vmatprep.subr.mxu0 0.0
    %2416 = vmatpush1.xpose.msra.mxu0 0.0
    %2417 = vmatprep.subr.mxu0 0.0
    %2418 = vmatpush1.xpose.msra.mxu0 0.0
    %2419 = vmatprep.subr.mxu0 0.0
    %2420 = vmatpush1.xpose.msra.mxu0 0.0
    %2421 = vmatprep.subr.mxu0 0.0
    %2422 = vmatpush1.xpose.msra.mxu0 0.0
    %2423 = vmatprep.subr.mxu0 0.0
    %2424 = vmatpush1.xpose.msra.mxu0 0.0
    %2425 = vmatprep.subr.mxu0 0.0
    %2426 = vmatpush1.xpose.msra.mxu0 0.0
    %2427 = vmatprep.subr.mxu0 0.0
    %2428 = vmatpush1.xpose.msra.mxu0 0.0
    %2429 = vmatprep.subr.mxu0 0.0
    %2430 = vmatpush1.xpose.msra.mxu0 0.0
    %2431 = vmatprep.subr.mxu0 0.0
    %2432 = vmatpush1.xpose.msra.mxu0 0.0
    %2433 = vmatprep.subr.mxu0 0.0
    %2434 = vmatpush1.xpose.msra.mxu0 0.0
    %2435 = vmatprep.subr.mxu0 0.0
    %2436 = vmatpush1.xpose.msra.mxu0 0.0
    %2437 = vmatprep.subr.mxu0 0.0
    %2438 = vmatpush1.xpose.msra.mxu0 0.0
    %2439 = vmatprep.subr.mxu0 0.0
    %2440 = vmatpush1.xpose.msra.mxu0 0.0
    %2441 = vmatprep.mubr.f32.mxu0 0.0
    %2442 = vmatmul.mubr.f32.gmra.mrb[0].mxu0 %v2373
    %v2443 = vpop.f32.mrb[0].mxu0
    %v2444 = vadd.f32 0.0, %v2443
    %v2445 = vpop.f32.mrb[0].mxu0
    %2446 = vdwg.mxu0
    %2447 = vrot.lane.b32.xlu0 %v2197, 96
    %v2448 = vpop.permute.xlu0 %2447
    %v2449 = vsel %vm318, %v2183, 0
    %v2451 = vsel %vm318, %v2448, 0
    %2453 = vmatprep.subr.mxu0 0.0
    %2454 = vmatpush1.xpose.msra.mxu0 %v2451
    %2455 = vmatprep.subr.mxu0 0.0
    %2456 = vmatpush1.xpose.msra.mxu0 0.0
    %2457 = vmatprep.subr.mxu0 0.0
    %2458 = vmatpush1.xpose.msra.mxu0 0.0
    %2459 = vmatprep.subr.mxu0 0.0
    %2460 = vmatpush1.xpose.msra.mxu0 0.0
    %2461 = vmatprep.subr.mxu0 0.0
    %2462 = vmatpush1.xpose.msra.mxu0 0.0
    %2463 = vmatprep.subr.mxu0 0.0
    %2464 = vmatpush1.xpose.msra.mxu0 0.0
    %2465 = vmatprep.subr.mxu0 0.0
    %2466 = vmatpush1.xpose.msra.mxu0 0.0
    %2467 = vmatprep.subr.mxu0 0.0
    %2468 = vmatpush1.xpose.msra.mxu0 0.0
    %2469 = vmatprep.subr.mxu0 0.0
    %2470 = vmatpush1.xpose.msra.mxu0 0.0
    %2471 = vmatprep.subr.mxu0 0.0
    %2472 = vmatpush1.xpose.msra.mxu0 0.0
    %2473 = vmatprep.subr.mxu0 0.0
    %2474 = vmatpush1.xpose.msra.mxu0 0.0
    %2475 = vmatprep.subr.mxu0 0.0
    %2476 = vmatpush1.xpose.msra.mxu0 0.0
    %2477 = vmatprep.subr.mxu0 0.0
    %2478 = vmatpush1.xpose.msra.mxu0 0.0
    %2479 = vmatprep.subr.mxu0 0.0
    %2480 = vmatpush1.xpose.msra.mxu0 0.0
    %2481 = vmatprep.subr.mxu0 0.0
    %2482 = vmatpush1.xpose.msra.mxu0 0.0
    %2483 = vmatprep.subr.mxu0 0.0
    %2484 = vmatpush1.xpose.msra.mxu0 0.0
    %2485 = vmatprep.subr.mxu0 0.0
    %2486 = vmatpush1.xpose.msra.mxu0 0.0
    %2487 = vmatprep.subr.mxu0 0.0
    %2488 = vmatpush1.xpose.msra.mxu0 0.0
    %2489 = vmatprep.subr.mxu0 0.0
    %2490 = vmatpush1.xpose.msra.mxu0 0.0
    %2491 = vmatprep.subr.mxu0 0.0
    %2492 = vmatpush1.xpose.msra.mxu0 0.0
    %2493 = vmatprep.subr.mxu0 0.0
    %2494 = vmatpush1.xpose.msra.mxu0 0.0
    %2495 = vmatprep.subr.mxu0 0.0
    %2496 = vmatpush1.xpose.msra.mxu0 0.0
    %2497 = vmatprep.subr.mxu0 0.0
    %2498 = vmatpush1.xpose.msra.mxu0 0.0
    %2499 = vmatprep.subr.mxu0 0.0
    %2500 = vmatpush1.xpose.msra.mxu0 0.0
    %2501 = vmatprep.subr.mxu0 0.0
    %2502 = vmatpush1.xpose.msra.mxu0 0.0
    %2503 = vmatprep.subr.mxu0 0.0
    %2504 = vmatpush1.xpose.msra.mxu0 0.0
    %2505 = vmatprep.subr.mxu0 0.0
    %2506 = vmatpush1.xpose.msra.mxu0 0.0
    %2507 = vmatprep.subr.mxu0 0.0
    %2508 = vmatpush1.xpose.msra.mxu0 0.0
    %2509 = vmatprep.subr.mxu0 0.0
    %2510 = vmatpush1.xpose.msra.mxu0 0.0
    %2511 = vmatprep.subr.mxu0 0.0
    %2512 = vmatpush1.xpose.msra.mxu0 0.0
    %2513 = vmatprep.subr.mxu0 0.0
    %2514 = vmatpush1.xpose.msra.mxu0 0.0
    %2515 = vmatprep.subr.mxu0 0.0
    %2516 = vmatpush1.xpose.msra.mxu0 0.0
    %2517 = vmatprep.mubr.f32.mxu0 0.0
    %2518 = vmatmul.mubr.f32.gmra.mrb[0].mxu0 %v2449
    %v2519 = vpop.f32.mrb[0].mxu0
    %v2520 = vadd.f32 0.0, %v2519
    %v2521 = vpop.f32.mrb[0].mxu0
    %2522 = vdwg.mxu0
    %2523 = vrot.lane.b32.xlu0 %v2166, 96
    %v2524 = vpop.permute.xlu0 %2523
    %v2525 = vsel %vm318, %v2156, 0
    %v2527 = vsel %vm318, %v2524, 0
    %2529 = vmatprep.subr.mxu0 0.0
    %2530 = vmatpush1.xpose.msra.mxu0 %v2527
    %2531 = vmatprep.subr.mxu0 0.0
    %2532 = vmatpush1.xpose.msra.mxu0 0.0
    %2533 = vmatprep.subr.mxu0 0.0
    %2534 = vmatpush1.xpose.msra.mxu0 0.0
    %2535 = vmatprep.subr.mxu0 0.0
    %2536 = vmatpush1.xpose.msra.mxu0 0.0
    %2537 = vmatprep.subr.mxu0 0.0
    %2538 = vmatpush1.xpose.msra.mxu0 0.0
    %2539 = vmatprep.subr.mxu0 0.0
    %2540 = vmatpush1.xpose.msra.mxu0 0.0
    %2541 = vmatprep.subr.mxu0 0.0
    %2542 = vmatpush1.xpose.msra.mxu0 0.0
    %2543 = vmatprep.subr.mxu0 0.0
    %2544 = vmatpush1.xpose.msra.mxu0 0.0
    %2545 = vmatprep.subr.mxu0 0.0
    %2546 = vmatpush1.xpose.msra.mxu0 0.0
    %2547 = vmatprep.subr.mxu0 0.0
    %2548 = vmatpush1.xpose.msra.mxu0 0.0
    %2549 = vmatprep.subr.mxu0 0.0
    %2550 = vmatpush1.xpose.msra.mxu0 0.0
    %2551 = vmatprep.subr.mxu0 0.0
    %2552 = vmatpush1.xpose.msra.mxu0 0.0
    %2553 = vmatprep.subr.mxu0 0.0
    %2554 = vmatpush1.xpose.msra.mxu0 0.0
    %2555 = vmatprep.subr.mxu0 0.0
    %2556 = vmatpush1.xpose.msra.mxu0 0.0
    %2557 = vmatprep.subr.mxu0 0.0
    %2558 = vmatpush1.xpose.msra.mxu0 0.0
    %2559 = vmatprep.subr.mxu0 0.0
    %2560 = vmatpush1.xpose.msra.mxu0 0.0
    %2561 = vmatprep.subr.mxu0 0.0
    %2562 = vmatpush1.xpose.msra.mxu0 0.0
    %2563 = vmatprep.subr.mxu0 0.0
    %2564 = vmatpush1.xpose.msra.mxu0 0.0
    %2565 = vmatprep.subr.mxu0 0.0
    %2566 = vmatpush1.xpose.msra.mxu0 0.0
    %2567 = vmatprep.subr.mxu0 0.0
    %2568 = vmatpush1.xpose.msra.mxu0 0.0
    %2569 = vmatprep.subr.mxu0 0.0
    %2570 = vmatpush1.xpose.msra.mxu0 0.0
    %2571 = vmatprep.subr.mxu0 0.0
    %2572 = vmatpush1.xpose.msra.mxu0 0.0
    %2573 = vmatprep.subr.mxu0 0.0
    %2574 = vmatpush1.xpose.msra.mxu0 0.0
    %2575 = vmatprep.subr.mxu0 0.0
    %2576 = vmatpush1.xpose.msra.mxu0 0.0
    %2577 = vmatprep.subr.mxu0 0.0
    %2578 = vmatpush1.xpose.msra.mxu0 0.0
    %2579 = vmatprep.subr.mxu0 0.0
    %2580 = vmatpush1.xpose.msra.mxu0 0.0
    %2581 = vmatprep.subr.mxu0 0.0
    %2582 = vmatpush1.xpose.msra.mxu0 0.0
    %2583 = vmatprep.subr.mxu0 0.0
    %2584 = vmatpush1.xpose.msra.mxu0 0.0
    %2585 = vmatprep.subr.mxu0 0.0
    %2586 = vmatpush1.xpose.msra.mxu0 0.0
    %2587 = vmatprep.subr.mxu0 0.0
    %2588 = vmatpush1.xpose.msra.mxu0 0.0
    %2589 = vmatprep.subr.mxu0 0.0
    %2590 = vmatpush1.xpose.msra.mxu0 0.0
    %2591 = vmatprep.subr.mxu0 0.0
    %2592 = vmatpush1.xpose.msra.mxu0 0.0
    %2593 = vmatprep.mubr.f32.mxu0 0.0
    %2594 = vmatmul.mubr.f32.gmra.mrb[0].mxu0 %v2525
    %v2595 = vpop.f32.mrb[0].mxu0
    %v2596 = vadd.f32 0.0, %v2595
    %v2597 = vpop.f32.mrb[0].mxu0
    %2598 = vdwg.mxu0
    %2599 = vrot.lane.b32.xlu0 %v2200, 96
    %v2600 = vpop.permute.xlu0 %2599
    %v2601 = vsel %vm318, %v2186, 0
    %v2603 = vsel %vm318, %v2600, 0
    %2605 = vmatprep.subr.mxu0 0.0
    %2606 = vmatpush1.xpose.msra.mxu0 %v2603
    %2607 = vmatprep.subr.mxu0 0.0
    %2608 = vmatpush1.xpose.msra.mxu0 0.0
    %2609 = vmatprep.subr.mxu0 0.0
    %2610 = vmatpush1.xpose.msra.mxu0 0.0
    %2611 = vmatprep.subr.mxu0 0.0
    %2612 = vmatpush1.xpose.msra.mxu0 0.0
    %2613 = vmatprep.subr.mxu0 0.0
    %2614 = vmatpush1.xpose.msra.mxu0 0.0
    %2615 = vmatprep.subr.mxu0 0.0
    %2616 = vmatpush1.xpose.msra.mxu0 0.0
    %2617 = vmatprep.subr.mxu0 0.0
    %2618 = vmatpush1.xpose.msra.mxu0 0.0
    %2619 = vmatprep.subr.mxu0 0.0
    %2620 = vmatpush1.xpose.msra.mxu0 0.0
    %2621 = vmatprep.subr.mxu0 0.0
    %2622 = vmatpush1.xpose.msra.mxu0 0.0
    %2623 = vmatprep.subr.mxu0 0.0
    %2624 = vmatpush1.xpose.msra.mxu0 0.0
    %2625 = vmatprep.subr.mxu0 0.0
    %2626 = vmatpush1.xpose.msra.mxu0 0.0
    %2627 = vmatprep.subr.mxu0 0.0
    %2628 = vmatpush1.xpose.msra.mxu0 0.0
    %2629 = vmatprep.subr.mxu0 0.0
    %2630 = vmatpush1.xpose.msra.mxu0 0.0
    %2631 = vmatprep.subr.mxu0 0.0
    %2632 = vmatpush1.xpose.msra.mxu0 0.0
    %2633 = vmatprep.subr.mxu0 0.0
    %2634 = vmatpush1.xpose.msra.mxu0 0.0
    %2635 = vmatprep.subr.mxu0 0.0
    %2636 = vmatpush1.xpose.msra.mxu0 0.0
    %2637 = vmatprep.subr.mxu0 0.0
    %2638 = vmatpush1.xpose.msra.mxu0 0.0
    %2639 = vmatprep.subr.mxu0 0.0
    %2640 = vmatpush1.xpose.msra.mxu0 0.0
    %2641 = vmatprep.subr.mxu0 0.0
    %2642 = vmatpush1.xpose.msra.mxu0 0.0
    %2643 = vmatprep.subr.mxu0 0.0
    %2644 = vmatpush1.xpose.msra.mxu0 0.0
    %2645 = vmatprep.subr.mxu0 0.0
    %2646 = vmatpush1.xpose.msra.mxu0 0.0
    %2647 = vmatprep.subr.mxu0 0.0
    %2648 = vmatpush1.xpose.msra.mxu0 0.0
    %2649 = vmatprep.subr.mxu0 0.0
    %2650 = vmatpush1.xpose.msra.mxu0 0.0
    %2651 = vmatprep.subr.mxu0 0.0
    %2652 = vmatpush1.xpose.msra.mxu0 0.0
    %2653 = vmatprep.subr.mxu0 0.0
    %2654 = vmatpush1.xpose.msra.mxu0 0.0
    %2655 = vmatprep.subr.mxu0 0.0
    %2656 = vmatpush1.xpose.msra.mxu0 0.0
    %2657 = vmatprep.subr.mxu0 0.0
    %2658 = vmatpush1.xpose.msra.mxu0 0.0
    %2659 = vmatprep.subr.mxu0 0.0
    %2660 = vmatpush1.xpose.msra.mxu0 0.0
    %2661 = vmatprep.subr.mxu0 0.0
    %2662 = vmatpush1.xpose.msra.mxu0 0.0
    %2663 = vmatprep.subr.mxu0 0.0
    %2664 = vmatpush1.xpose.msra.mxu0 0.0
    %2665 = vmatprep.subr.mxu0 0.0
    %2666 = vmatpush1.xpose.msra.mxu0 0.0
    %2667 = vmatprep.subr.mxu0 0.0
    %2668 = vmatpush1.xpose.msra.mxu0 0.0
    %2669 = vmatprep.mubr.f32.mxu0 0.0
    %2670 = vmatmul.mubr.f32.gmra.mrb[0].mxu0 %v2601
    %v2671 = vpop.f32.mrb[0].mxu0
    %v2672 = vadd.f32 0.0, %v2671
    %v2673 = vpop.f32.mrb[0].mxu0
    %2674 = vdwg.mxu0
    %2675 = vrot.lane.b32.xlu0 %v2202, 96
    %v2676 = vpop.permute.xlu0 %2675
    %v2677 = vsel %vm318, %v2188, 0
    %v2679 = vsel %vm318, %v2676, 0
    %2681 = vmatprep.subr.mxu0 0.0
    %2682 = vmatpush1.xpose.msra.mxu0 %v2679
    %2683 = vmatprep.subr.mxu0 0.0
    %2684 = vmatpush1.xpose.msra.mxu0 0.0
    %2685 = vmatprep.subr.mxu0 0.0
    %2686 = vmatpush1.xpose.msra.mxu0 0.0
    %2687 = vmatprep.subr.mxu0 0.0
    %2688 = vmatpush1.xpose.msra.mxu0 0.0
    %2689 = vmatprep.subr.mxu0 0.0
    %2690 = vmatpush1.xpose.msra.mxu0 0.0
    %2691 = vmatprep.subr.mxu0 0.0
    %2692 = vmatpush1.xpose.msra.mxu0 0.0
    %2693 = vmatprep.subr.mxu0 0.0
    %2694 = vmatpush1.xpose.msra.mxu0 0.0
    %2695 = vmatprep.subr.mxu0 0.0
    %2696 = vmatpush1.xpose.msra.mxu0 0.0
    %2697 = vmatprep.subr.mxu0 0.0
    %2698 = vmatpush1.xpose.msra.mxu0 0.0
    %2699 = vmatprep.subr.mxu0 0.0
    %2700 = vmatpush1.xpose.msra.mxu0 0.0
    %2701 = vmatprep.subr.mxu0 0.0
    %2702 = vmatpush1.xpose.msra.mxu0 0.0
    %2703 = vmatprep.subr.mxu0 0.0
    %2704 = vmatpush1.xpose.msra.mxu0 0.0
    %2705 = vmatprep.subr.mxu0 0.0
    %2706 = vmatpush1.xpose.msra.mxu0 0.0
    %2707 = vmatprep.subr.mxu0 0.0
    %2708 = vmatpush1.xpose.msra.mxu0 0.0
    %2709 = vmatprep.subr.mxu0 0.0
    %2710 = vmatpush1.xpose.msra.mxu0 0.0
    %2711 = vmatprep.subr.mxu0 0.0
    %2712 = vmatpush1.xpose.msra.mxu0 0.0
    %2713 = vmatprep.subr.mxu0 0.0
    %2714 = vmatpush1.xpose.msra.mxu0 0.0
    %2715 = vmatprep.subr.mxu0 0.0
    %2716 = vmatpush1.xpose.msra.mxu0 0.0
    %2717 = vmatprep.subr.mxu0 0.0
    %2718 = vmatpush1.xpose.msra.mxu0 0.0
    %2719 = vmatprep.subr.mxu0 0.0
    %2720 = vmatpush1.xpose.msra.mxu0 0.0
    %2721 = vmatprep.subr.mxu0 0.0
    %2722 = vmatpush1.xpose.msra.mxu0 0.0
    %2723 = vmatprep.subr.mxu0 0.0
    %2724 = vmatpush1.xpose.msra.mxu0 0.0
    %2725 = vmatprep.subr.mxu0 0.0
    %2726 = vmatpush1.xpose.msra.mxu0 0.0
    %2727 = vmatprep.subr.mxu0 0.0
    %2728 = vmatpush1.xpose.msra.mxu0 0.0
    %2729 = vmatprep.subr.mxu0 0.0
    %2730 = vmatpush1.xpose.msra.mxu0 0.0
    %2731 = vmatprep.subr.mxu0 0.0
    %2732 = vmatpush1.xpose.msra.mxu0 0.0
    %2733 = vmatprep.subr.mxu0 0.0
    %2734 = vmatpush1.xpose.msra.mxu0 0.0
    %2735 = vmatprep.subr.mxu0 0.0
    %2736 = vmatpush1.xpose.msra.mxu0 0.0
    %2737 = vmatprep.subr.mxu0 0.0
    %2738 = vmatpush1.xpose.msra.mxu0 0.0
    %2739 = vmatprep.subr.mxu0 0.0
    %2740 = vmatpush1.xpose.msra.mxu0 0.0
    %2741 = vmatprep.subr.mxu0 0.0
    %2742 = vmatpush1.xpose.msra.mxu0 0.0
    %2743 = vmatprep.subr.mxu0 0.0
    %2744 = vmatpush1.xpose.msra.mxu0 0.0
    %2745 = vmatprep.mubr.f32.mxu0 0.0
    %2746 = vmatmul.mubr.f32.gmra.mrb[0].mxu0 %v2677
    %v2747 = vpop.f32.mrb[0].mxu0
    %v2748 = vadd.f32 0.0, %v2747
    %v2749 = vpop.f32.mrb[0].mxu0
    %2750 = vdwg.mxu0
    %2751 = vrot.lane.b32.xlu0 %v2204, 96
    %v2752 = vpop.permute.xlu0 %2751
    %v2753 = vsel %vm318, %v2190, 0
    %v2755 = vsel %vm318, %v2752, 0
    %2757 = vmatprep.subr.mxu0 0.0
    %2758 = vmatpush1.xpose.msra.mxu0 %v2755
    %2759 = vmatprep.subr.mxu0 0.0
    %2760 = vmatpush1.xpose.msra.mxu0 0.0
    %2761 = vmatprep.subr.mxu0 0.0
    %2762 = vmatpush1.xpose.msra.mxu0 0.0
    %2763 = vmatprep.subr.mxu0 0.0
    %2764 = vmatpush1.xpose.msra.mxu0 0.0
    %2765 = vmatprep.subr.mxu0 0.0
    %2766 = vmatpush1.xpose.msra.mxu0 0.0
    %2767 = vmatprep.subr.mxu0 0.0
    %2768 = vmatpush1.xpose.msra.mxu0 0.0
    %2769 = vmatprep.subr.mxu0 0.0
    %2770 = vmatpush1.xpose.msra.mxu0 0.0
    %2771 = vmatprep.subr.mxu0 0.0
    %2772 = vmatpush1.xpose.msra.mxu0 0.0
    %2773 = vmatprep.subr.mxu0 0.0
    %2774 = vmatpush1.xpose.msra.mxu0 0.0
    %2775 = vmatprep.subr.mxu0 0.0
    %2776 = vmatpush1.xpose.msra.mxu0 0.0
    %2777 = vmatprep.subr.mxu0 0.0
    %2778 = vmatpush1.xpose.msra.mxu0 0.0
    %2779 = vmatprep.subr.mxu0 0.0
    %2780 = vmatpush1.xpose.msra.mxu0 0.0
    %2781 = vmatprep.subr.mxu0 0.0
    %2782 = vmatpush1.xpose.msra.mxu0 0.0
    %2783 = vmatprep.subr.mxu0 0.0
    %2784 = vmatpush1.xpose.msra.mxu0 0.0
    %2785 = vmatprep.subr.mxu0 0.0
    %2786 = vmatpush1.xpose.msra.mxu0 0.0
    %2787 = vmatprep.subr.mxu0 0.0
    %2788 = vmatpush1.xpose.msra.mxu0 0.0
    %2789 = vmatprep.subr.mxu0 0.0
    %2790 = vmatpush1.xpose.msra.mxu0 0.0
    %2791 = vmatprep.subr.mxu0 0.0
    %2792 = vmatpush1.xpose.msra.mxu0 0.0
    %2793 = vmatprep.subr.mxu0 0.0
    %2794 = vmatpush1.xpose.msra.mxu0 0.0
    %2795 = vmatprep.subr.mxu0 0.0
    %2796 = vmatpush1.xpose.msra.mxu0 0.0
    %2797 = vmatprep.subr.mxu0 0.0
    %2798 = vmatpush1.xpose.msra.mxu0 0.0
    %2799 = vmatprep.subr.mxu0 0.0
    %2800 = vmatpush1.xpose.msra.mxu0 0.0
    %2801 = vmatprep.subr.mxu0 0.0
    %2802 = vmatpush1.xpose.msra.mxu0 0.0
    %2803 = vmatprep.subr.mxu0 0.0
    %2804 = vmatpush1.xpose.msra.mxu0 0.0
    %2805 = vmatprep.subr.mxu0 0.0
    %2806 = vmatpush1.xpose.msra.mxu0 0.0
    %2807 = vmatprep.subr.mxu0 0.0
    %2808 = vmatpush1.xpose.msra.mxu0 0.0
    %2809 = vmatprep.subr.mxu0 0.0
    %2810 = vmatpush1.xpose.msra.mxu0 0.0
    %2811 = vmatprep.subr.mxu0 0.0
    %2812 = vmatpush1.xpose.msra.mxu0 0.0
    %2813 = vmatprep.subr.mxu0 0.0
    %2814 = vmatpush1.xpose.msra.mxu0 0.0
    %2815 = vmatprep.subr.mxu0 0.0
    %2816 = vmatpush1.xpose.msra.mxu0 0.0
    %2817 = vmatprep.subr.mxu0 0.0
    %2818 = vmatpush1.xpose.msra.mxu0 0.0
    %2819 = vmatprep.subr.mxu0 0.0
    %2820 = vmatpush1.xpose.msra.mxu0 0.0
    %2821 = vmatprep.mubr.f32.mxu0 0.0
    %2822 = vmatmul.mubr.f32.gmra.mrb[0].mxu0 %v2753
    %v2823 = vpop.f32.mrb[0].mxu0
    %v2824 = vadd.f32 0.0, %v2823
    %v2825 = vpop.f32.mrb[0].mxu0
    %2826 = vdwg.mxu0
    %v2827 = vmul.f32 %v2292, 0.35355338
    %v2828 = vmul.f32 %v2368, 0.35355338
    %v2829 = vmul.f32 %v2444, 0.35355338
    %v2830 = vmul.f32 %v2520, 0.35355338
    %v2831 = vmul.f32 %v2596, 0.35355338
    %v2832 = vmul.f32 %v2672, 0.35355338
    %v2833 = vmul.f32 %v2748, 0.35355338
    %v2834 = vmul.f32 %v2824, 0.35355338
    %v2835 = vadd.f32 %v2827, %v82
    %v2836 = vadd.f32 %v2828, %v83
    %v2837 = vadd.f32 %v2829, %v84
    %v2838 = vadd.f32 %v2830, %v85
    %v2839 = vadd.f32 %v2831, %v86
    %v2840 = vadd.f32 %v2832, %v87
    %v2841 = vadd.f32 %v2833, %v88
    %v2842 = vadd.f32 %v2834, %v89
    %v2843 = vsel %vm318, %v2835, -inf
    %2844 = vmax.xlane.f32.xlu0 %v2843
    %v2845 = vpop.xlane.xlu0 %2844
    %v2846 = vsel %vm318, %v2836, -inf
    %2847 = vmax.xlane.f32.xlu0 %v2846
    %v2848 = vpop.xlane.xlu0 %2847
    %v2849 = vsel %vm318, %v2837, -inf
    %2850 = vmax.xlane.f32.xlu0 %v2849
    %v2851 = vpop.xlane.xlu0 %2850
    %v2852 = vsel %vm318, %v2838, -inf
    %2853 = vmax.xlane.f32.xlu0 %v2852
    %v2854 = vpop.xlane.xlu0 %2853
    %v2855 = vsel %vm318, %v2839, -inf
    %2856 = vmax.xlane.f32.xlu0 %v2855
    %v2857 = vpop.xlane.xlu0 %2856
    %v2858 = vsel %vm318, %v2840, -inf
    %2859 = vmax.xlane.f32.xlu0 %v2858
    %v2860 = vpop.xlane.xlu0 %2859
    %v2861 = vsel %vm318, %v2841, -inf
    %2862 = vmax.xlane.f32.xlu0 %v2861
    %v2863 = vpop.xlane.xlu0 %2862
    %v2864 = vsel %vm318, %v2842, -inf
    %2865 = vmax.xlane.f32.xlu0 %v2864
    %v2866 = vpop.xlane.xlu0 %2865
    %v2867 = vsub.f32 %v2835, %v2845
    %v2868 = vsub.f32 %v2836, %v2848
    %v2869 = vsub.f32 %v2837, %v2851
    %v2870 = vsub.f32 %v2838, %v2854
    %v2871 = vsub.f32 %v2839, %v2857
    %v2872 = vsub.f32 %v2840, %v2860
    %v2873 = vsub.f32 %v2841, %v2863
    %v2874 = vsub.f32 %v2842, %v2866
    %v2875 = vmul.f32 %v2867, 1.442695
    %v2876 = vpow.pop %v2875
    %v2877 = vmul.f32 %v2868, 1.442695
    %v2878 = vpow.pop %v2877
    %v2879 = vmul.f32 %v2869, 1.442695
    %v2880 = vpow.pop %v2879
    %v2881 = vmul.f32 %v2870, 1.442695
    %v2882 = vpow.pop %v2881
    %v2883 = vmul.f32 %v2871, 1.442695
    %v2884 = vpow.pop %v2883
    %v2885 = vmul.f32 %v2872, 1.442695
    %v2886 = vpow.pop %v2885
    %v2887 = vmul.f32 %v2873, 1.442695
    %v2888 = vpow.pop %v2887
    %v2889 = vmul.f32 %v2874, 1.442695
    %v2890 = vpow.pop %v2889
    %v2891 = vsel %vm318, %v2876, 0.0
    %2892 = vadd.xlane.f32.xlu0 %v2891
    %v2893 = vpop.xlane.xlu0 %2892
    %v2894 = vsel %vm318, %v2878, 0.0
    %2895 = vadd.xlane.f32.xlu0 %v2894
    %v2896 = vpop.xlane.xlu0 %2895
    %v2897 = vsel %vm318, %v2880, 0.0
    %2898 = vadd.xlane.f32.xlu0 %v2897
    %v2899 = vpop.xlane.xlu0 %2898
    %v2900 = vsel %vm318, %v2882, 0.0
    %2901 = vadd.xlane.f32.xlu0 %v2900
    %v2902 = vpop.xlane.xlu0 %2901
    %v2903 = vsel %vm318, %v2884, 0.0
    %2904 = vadd.xlane.f32.xlu0 %v2903
    %v2905 = vpop.xlane.xlu0 %2904
    %v2906 = vsel %vm318, %v2886, 0.0
    %2907 = vadd.xlane.f32.xlu0 %v2906
    %v2908 = vpop.xlane.xlu0 %2907
    %v2909 = vsel %vm318, %v2888, 0.0
    %2910 = vadd.xlane.f32.xlu0 %v2909
    %v2911 = vpop.xlane.xlu0 %2910
    %v2912 = vsel %vm318, %v2890, 0.0
    %2913 = vadd.xlane.f32.xlu0 %v2912
    %v2914 = vpop.xlane.xlu0 %2913
    %v2915 = vrcp.pop %v2893
    %v2916 = vrcp.pop %v2896
    %v2917 = vrcp.pop %v2899
    %v2918 = vrcp.pop %v2902
    %v2919 = vrcp.pop %v2905
    %v2920 = vrcp.pop %v2908
    %v2921 = vrcp.pop %v2911
    %v2922 = vrcp.pop %v2914
    %v2923 = vmul.f32 %v2876, %v2915
    %v2924 = vmul.f32 %v2878, %v2916
    %v2925 = vmul.f32 %v2880, %v2917
    %v2926 = vmul.f32 %v2882, %v2918
    %v2927 = vmul.f32 %v2884, %v2919
    %v2928 = vmul.f32 %v2886, %v2920
    %v2929 = vmul.f32 %v2888, %v2921
    %v2930 = vmul.f32 %v2890, %v2922
    %2931 = vrot.lane.b32.xlu0 %v2175, 64
    %v2932 = vpop.permute.xlu0 %2931
    %v2935 = vsel %vm318, %v2923, 0
    %2937 = vmatprep.subr.mxu0 0.0
    %2938 = vmatpush1.msra.mxu0 %v2932
    %2939 = vmatprep.subr.mxu0 0.0
    %2940 = vmatpush1.msra.mxu0 0.0
    %2941 = vmatprep.subr.mxu0 0.0
    %2942 = vmatpush1.msra.mxu0 0.0
    %2943 = vmatprep.subr.mxu0 0.0
    %2944 = vmatpush1.msra.mxu0 0.0
    %2945 = vmatprep.subr.mxu0 0.0
    %2946 = vmatpush1.msra.mxu0 0.0
    %2947 = vmatprep.subr.mxu0 0.0
    %2948 = vmatpush1.msra.mxu0 0.0
    %2949 = vmatprep.subr.mxu0 0.0
    %2950 = vmatpush1.msra.mxu0 0.0
    %2951 = vmatprep.subr.mxu0 0.0
    %2952 = vmatpush1.msra.mxu0 0.0
    %2953 = vmatprep.subr.mxu0 0.0
    %2954 = vmatpush1.msra.mxu0 0.0
    %2955 = vmatprep.subr.mxu0 0.0
    %2956 = vmatpush1.msra.mxu0 0.0
    %2957 = vmatprep.subr.mxu0 0.0
    %2958 = vmatpush1.msra.mxu0 0.0
    %2959 = vmatprep.subr.mxu0 0.0
    %2960 = vmatpush1.msra.mxu0 0.0
    %2961 = vmatprep.subr.mxu0 0.0
    %2962 = vmatpush1.msra.mxu0 0.0
    %2963 = vmatprep.subr.mxu0 0.0
    %2964 = vmatpush1.msra.mxu0 0.0
    %2965 = vmatprep.subr.mxu0 0.0
    %2966 = vmatpush1.msra.mxu0 0.0
    %2967 = vmatprep.subr.mxu0 0.0
    %2968 = vmatpush1.msra.mxu0 0.0
    %2969 = vmatprep.subr.mxu0 0.0
    %2970 = vmatpush1.msra.mxu0 0.0
    %2971 = vmatprep.subr.mxu0 0.0
    %2972 = vmatpush1.msra.mxu0 0.0
    %2973 = vmatprep.subr.mxu0 0.0
    %2974 = vmatpush1.msra.mxu0 0.0
    %2975 = vmatprep.subr.mxu0 0.0
    %2976 = vmatpush1.msra.mxu0 0.0
    %2977 = vmatprep.subr.mxu0 0.0
    %2978 = vmatpush1.msra.mxu0 0.0
    %2979 = vmatprep.subr.mxu0 0.0
    %2980 = vmatpush1.msra.mxu0 0.0
    %2981 = vmatprep.subr.mxu0 0.0
    %2982 = vmatpush1.msra.mxu0 0.0
    %2983 = vmatprep.subr.mxu0 0.0
    %2984 = vmatpush1.msra.mxu0 0.0
    %2985 = vmatprep.subr.mxu0 0.0
    %2986 = vmatpush1.msra.mxu0 0.0
    %2987 = vmatprep.subr.mxu0 0.0
    %2988 = vmatpush1.msra.mxu0 0.0
    %2989 = vmatprep.subr.mxu0 0.0
    %2990 = vmatpush1.msra.mxu0 0.0
    %2991 = vmatprep.subr.mxu0 0.0
    %2992 = vmatpush1.msra.mxu0 0.0
    %2993 = vmatprep.subr.mxu0 0.0
    %2994 = vmatpush1.msra.mxu0 0.0
    %2995 = vmatprep.subr.mxu0 0.0
    %2996 = vmatpush1.msra.mxu0 0.0
    %2997 = vmatprep.subr.mxu0 0.0
    %2998 = vmatpush1.msra.mxu0 0.0
    %2999 = vmatprep.subr.mxu0 0.0
    %3000 = vmatpush1.msra.mxu0 0.0
    %3001 = vmatprep.mubr.f32.mxu0 0.0
    %3002 = vmatmul.mubr.f32.gmra.mrb[0].mxu0 %v2935
    %v3003 = vpop.f32.mrb[0].mxu0
    %v3004 = vadd.f32 0.0, %v3003
    %v3005 = vpop.f32.mrb[0].mxu0
    %3006 = vdwg.mxu0
    %3007 = vrot.lane.b32.xlu0 %v2207, 64
    %v3008 = vpop.permute.xlu0 %3007
    %v3011 = vsel %vm318, %v2924, 0
    %3013 = vmatprep.subr.mxu0 0.0
    %3014 = vmatpush1.msra.mxu0 %v3008
    %3015 = vmatprep.subr.mxu0 0.0
    %3016 = vmatpush1.msra.mxu0 0.0
    %3017 = vmatprep.subr.mxu0 0.0
    %3018 = vmatpush1.msra.mxu0 0.0
    %3019 = vmatprep.subr.mxu0 0.0
    %3020 = vmatpush1.msra.mxu0 0.0
    %3021 = vmatprep.subr.mxu0 0.0
    %3022 = vmatpush1.msra.mxu0 0.0
    %3023 = vmatprep.subr.mxu0 0.0
    %3024 = vmatpush1.msra.mxu0 0.0
    %3025 = vmatprep.subr.mxu0 0.0
    %3026 = vmatpush1.msra.mxu0 0.0
    %3027 = vmatprep.subr.mxu0 0.0
    %3028 = vmatpush1.msra.mxu0 0.0
    %3029 = vmatprep.subr.mxu0 0.0
    %3030 = vmatpush1.msra.mxu0 0.0
    %3031 = vmatprep.subr.mxu0 0.0
    %3032 = vmatpush1.msra.mxu0 0.0
    %3033 = vmatprep.subr.mxu0 0.0
    %3034 = vmatpush1.msra.mxu0 0.0
    %3035 = vmatprep.subr.mxu0 0.0
    %3036 = vmatpush1.msra.mxu0 0.0
    %3037 = vmatprep.subr.mxu0 0.0
    %3038 = vmatpush1.msra.mxu0 0.0
    %3039 = vmatprep.subr.mxu0 0.0
    %3040 = vmatpush1.msra.mxu0 0.0
    %3041 = vmatprep.subr.mxu0 0.0
    %3042 = vmatpush1.msra.mxu0 0.0
    %3043 = vmatprep.subr.mxu0 0.0
    %3044 = vmatpush1.msra.mxu0 0.0
    %3045 = vmatprep.subr.mxu0 0.0
    %3046 = vmatpush1.msra.mxu0 0.0
    %3047 = vmatprep.subr.mxu0 0.0
    %3048 = vmatpush1.msra.mxu0 0.0
    %3049 = vmatprep.subr.mxu0 0.0
    %3050 = vmatpush1.msra.mxu0 0.0
    %3051 = vmatprep.subr.mxu0 0.0
    %3052 = vmatpush1.msra.mxu0 0.0
    %3053 = vmatprep.subr.mxu0 0.0
    %3054 = vmatpush1.msra.mxu0 0.0
    %3055 = vmatprep.subr.mxu0 0.0
    %3056 = vmatpush1.msra.mxu0 0.0
    %3057 = vmatprep.subr.mxu0 0.0
    %3058 = vmatpush1.msra.mxu0 0.0
    %3059 = vmatprep.subr.mxu0 0.0
    %3060 = vmatpush1.msra.mxu0 0.0
    %3061 = vmatprep.subr.mxu0 0.0
    %3062 = vmatpush1.msra.mxu0 0.0
    %3063 = vmatprep.subr.mxu0 0.0
    %3064 = vmatpush1.msra.mxu0 0.0
    %3065 = vmatprep.subr.mxu0 0.0
    %3066 = vmatpush1.msra.mxu0 0.0
    %3067 = vmatprep.subr.mxu0 0.0
    %3068 = vmatpush1.msra.mxu0 0.0
    %3069 = vmatprep.subr.mxu0 0.0
    %3070 = vmatpush1.msra.mxu0 0.0
    %3071 = vmatprep.subr.mxu0 0.0
    %3072 = vmatpush1.msra.mxu0 0.0
    %3073 = vmatprep.subr.mxu0 0.0
    %3074 = vmatpush1.msra.mxu0 0.0
    %3075 = vmatprep.subr.mxu0 0.0
    %3076 = vmatpush1.msra.mxu0 0.0
    %3077 = vmatprep.mubr.f32.mxu0 0.0
    %3078 = vmatmul.mubr.f32.gmra.mrb[0].mxu0 %v3011
    %v3079 = vpop.f32.mrb[0].mxu0
    %v3080 = vadd.f32 0.0, %v3079
    %v3081 = vpop.f32.mrb[0].mxu0
    %3082 = vdwg.mxu0
    %3083 = vrot.lane.b32.xlu0 %v2209, 64
    %v3084 = vpop.permute.xlu0 %3083
    %v3087 = vsel %vm318, %v2925, 0
    %3089 = vmatprep.subr.mxu0 0.0
    %3090 = vmatpush1.msra.mxu0 %v3084
    %3091 = vmatprep.subr.mxu0 0.0
    %3092 = vmatpush1.msra.mxu0 0.0
    %3093 = vmatprep.subr.mxu0 0.0
    %3094 = vmatpush1.msra.mxu0 0.0
    %3095 = vmatprep.subr.mxu0 0.0
    %3096 = vmatpush1.msra.mxu0 0.0
    %3097 = vmatprep.subr.mxu0 0.0
    %3098 = vmatpush1.msra.mxu0 0.0
    %3099 = vmatprep.subr.mxu0 0.0
    %3100 = vmatpush1.msra.mxu0 0.0
    %3101 = vmatprep.subr.mxu0 0.0
    %3102 = vmatpush1.msra.mxu0 0.0
    %3103 = vmatprep.subr.mxu0 0.0
    %3104 = vmatpush1.msra.mxu0 0.0
    %3105 = vmatprep.subr.mxu0 0.0
    %3106 = vmatpush1.msra.mxu0 0.0
    %3107 = vmatprep.subr.mxu0 0.0
    %3108 = vmatpush1.msra.mxu0 0.0
    %3109 = vmatprep.subr.mxu0 0.0
    %3110 = vmatpush1.msra.mxu0 0.0
    %3111 = vmatprep.subr.mxu0 0.0
    %3112 = vmatpush1.msra.mxu0 0.0
    %3113 = vmatprep.subr.mxu0 0.0
    %3114 = vmatpush1.msra.mxu0 0.0
    %3115 = vmatprep.subr.mxu0 0.0
    %3116 = vmatpush1.msra.mxu0 0.0
    %3117 = vmatprep.subr.mxu0 0.0
    %3118 = vmatpush1.msra.mxu0 0.0
    %3119 = vmatprep.subr.mxu0 0.0
    %3120 = vmatpush1.msra.mxu0 0.0
    %3121 = vmatprep.subr.mxu0 0.0
    %3122 = vmatpush1.msra.mxu0 0.0
    %3123 = vmatprep.subr.mxu0 0.0
    %3124 = vmatpush1.msra.mxu0 0.0
    %3125 = vmatprep.subr.mxu0 0.0
    %3126 = vmatpush1.msra.mxu0 0.0
    %3127 = vmatprep.subr.mxu0 0.0
    %3128 = vmatpush1.msra.mxu0 0.0
    %3129 = vmatprep.subr.mxu0 0.0
    %3130 = vmatpush1.msra.mxu0 0.0
    %3131 = vmatprep.subr.mxu0 0.0
    %3132 = vmatpush1.msra.mxu0 0.0
    %3133 = vmatprep.subr.mxu0 0.0
    %3134 = vmatpush1.msra.mxu0 0.0
    %3135 = vmatprep.subr.mxu0 0.0
    %3136 = vmatpush1.msra.mxu0 0.0
    %3137 = vmatprep.subr.mxu0 0.0
    %3138 = vmatpush1.msra.mxu0 0.0
    %3139 = vmatprep.subr.mxu0 0.0
    %3140 = vmatpush1.msra.mxu0 0.0
    %3141 = vmatprep.subr.mxu0 0.0
    %3142 = vmatpush1.msra.mxu0 0.0
    %3143 = vmatprep.subr.mxu0 0.0
    %3144 = vmatpush1.msra.mxu0 0.0
    %3145 = vmatprep.subr.mxu0 0.0
    %3146 = vmatpush1.msra.mxu0 0.0
    %3147 = vmatprep.subr.mxu0 0.0
    %3148 = vmatpush1.msra.mxu0 0.0
    %3149 = vmatprep.subr.mxu0 0.0
    %3150 = vmatpush1.msra.mxu0 0.0
    %3151 = vmatprep.subr.mxu0 0.0
    %3152 = vmatpush1.msra.mxu0 0.0
    %3153 = vmatprep.mubr.f32.mxu0 0.0
    %3154 = vmatmul.mubr.f32.gmra.mrb[0].mxu0 %v3087
    %v3155 = vpop.f32.mrb[0].mxu0
    %v3156 = vadd.f32 0.0, %v3155
    %v3157 = vpop.f32.mrb[0].mxu0
    %3158 = vdwg.mxu0
    %3159 = vrot.lane.b32.xlu0 %v2211, 64
    %v3160 = vpop.permute.xlu0 %3159
    %v3163 = vsel %vm318, %v2926, 0
    %3165 = vmatprep.subr.mxu0 0.0
    %3166 = vmatpush1.msra.mxu0 %v3160
    %3167 = vmatprep.subr.mxu0 0.0
    %3168 = vmatpush1.msra.mxu0 0.0
    %3169 = vmatprep.subr.mxu0 0.0
    %3170 = vmatpush1.msra.mxu0 0.0
    %3171 = vmatprep.subr.mxu0 0.0
    %3172 = vmatpush1.msra.mxu0 0.0
    %3173 = vmatprep.subr.mxu0 0.0
    %3174 = vmatpush1.msra.mxu0 0.0
    %3175 = vmatprep.subr.mxu0 0.0
    %3176 = vmatpush1.msra.mxu0 0.0
    %3177 = vmatprep.subr.mxu0 0.0
    %3178 = vmatpush1.msra.mxu0 0.0
    %3179 = vmatprep.subr.mxu0 0.0
    %3180 = vmatpush1.msra.mxu0 0.0
    %3181 = vmatprep.subr.mxu0 0.0
    %3182 = vmatpush1.msra.mxu0 0.0
    %3183 = vmatprep.subr.mxu0 0.0
    %3184 = vmatpush1.msra.mxu0 0.0
    %3185 = vmatprep.subr.mxu0 0.0
    %3186 = vmatpush1.msra.mxu0 0.0
    %3187 = vmatprep.subr.mxu0 0.0
    %3188 = vmatpush1.msra.mxu0 0.0
    %3189 = vmatprep.subr.mxu0 0.0
    %3190 = vmatpush1.msra.mxu0 0.0
    %3191 = vmatprep.subr.mxu0 0.0
    %3192 = vmatpush1.msra.mxu0 0.0
    %3193 = vmatprep.subr.mxu0 0.0
    %3194 = vmatpush1.msra.mxu0 0.0
    %3195 = vmatprep.subr.mxu0 0.0
    %3196 = vmatpush1.msra.mxu0 0.0
    %3197 = vmatprep.subr.mxu0 0.0
    %3198 = vmatpush1.msra.mxu0 0.0
    %3199 = vmatprep.subr.mxu0 0.0
    %3200 = vmatpush1.msra.mxu0 0.0
    %3201 = vmatprep.subr.mxu0 0.0
    %3202 = vmatpush1.msra.mxu0 0.0
    %3203 = vmatprep.subr.mxu0 0.0
    %3204 = vmatpush1.msra.mxu0 0.0
    %3205 = vmatprep.subr.mxu0 0.0
    %3206 = vmatpush1.msra.mxu0 0.0
    %3207 = vmatprep.subr.mxu0 0.0
    %3208 = vmatpush1.msra.mxu0 0.0
    %3209 = vmatprep.subr.mxu0 0.0
    %3210 = vmatpush1.msra.mxu0 0.0
    %3211 = vmatprep.subr.mxu0 0.0
    %3212 = vmatpush1.msra.mxu0 0.0
    %3213 = vmatprep.subr.mxu0 0.0
    %3214 = vmatpush1.msra.mxu0 0.0
    %3215 = vmatprep.subr.mxu0 0.0
    %3216 = vmatpush1.msra.mxu0 0.0
    %3217 = vmatprep.subr.mxu0 0.0
    %3218 = vmatpush1.msra.mxu0 0.0
    %3219 = vmatprep.subr.mxu0 0.0
    %3220 = vmatpush1.msra.mxu0 0.0
    %3221 = vmatprep.subr.mxu0 0.0
    %3222 = vmatpush1.msra.mxu0 0.0
    %3223 = vmatprep.subr.mxu0 0.0
    %3224 = vmatpush1.msra.mxu0 0.0
    %3225 = vmatprep.subr.mxu0 0.0
    %3226 = vmatpush1.msra.mxu0 0.0
    %3227 = vmatprep.subr.mxu0 0.0
    %3228 = vmatpush1.msra.mxu0 0.0
    %3229 = vmatprep.mubr.f32.mxu0 0.0
    %3230 = vmatmul.mubr.f32.gmra.mrb[0].mxu0 %v3163
    %v3231 = vpop.f32.mrb[0].mxu0
    %v3232 = vadd.f32 0.0, %v3231
    %v3233 = vpop.f32.mrb[0].mxu0
    %3234 = vdwg.mxu0
    %3235 = vrot.lane.b32.xlu0 %v2176, 64
    %v3236 = vpop.permute.xlu0 %3235
    %v3239 = vsel %vm318, %v2927, 0
    %3241 = vmatprep.subr.mxu0 0.0
    %3242 = vmatpush1.msra.mxu0 %v3236
    %3243 = vmatprep.subr.mxu0 0.0
    %3244 = vmatpush1.msra.mxu0 0.0
    %3245 = vmatprep.subr.mxu0 0.0
    %3246 = vmatpush1.msra.mxu0 0.0
    %3247 = vmatprep.subr.mxu0 0.0
    %3248 = vmatpush1.msra.mxu0 0.0
    %3249 = vmatprep.subr.mxu0 0.0
    %3250 = vmatpush1.msra.mxu0 0.0
    %3251 = vmatprep.subr.mxu0 0.0
    %3252 = vmatpush1.msra.mxu0 0.0
    %3253 = vmatprep.subr.mxu0 0.0
    %3254 = vmatpush1.msra.mxu0 0.0
    %3255 = vmatprep.subr.mxu0 0.0
    %3256 = vmatpush1.msra.mxu0 0.0
    %3257 = vmatprep.subr.mxu0 0.0
    %3258 = vmatpush1.msra.mxu0 0.0
    %3259 = vmatprep.subr.mxu0 0.0
    %3260 = vmatpush1.msra.mxu0 0.0
    %3261 = vmatprep.subr.mxu0 0.0
    %3262 = vmatpush1.msra.mxu0 0.0
    %3263 = vmatprep.subr.mxu0 0.0
    %3264 = vmatpush1.msra.mxu0 0.0
    %3265 = vmatprep.subr.mxu0 0.0
    %3266 = vmatpush1.msra.mxu0 0.0
    %3267 = vmatprep.subr.mxu0 0.0
    %3268 = vmatpush1.msra.mxu0 0.0
    %3269 = vmatprep.subr.mxu0 0.0
    %3270 = vmatpush1.msra.mxu0 0.0
    %3271 = vmatprep.subr.mxu0 0.0
    %3272 = vmatpush1.msra.mxu0 0.0
    %3273 = vmatprep.subr.mxu0 0.0
    %3274 = vmatpush1.msra.mxu0 0.0
    %3275 = vmatprep.subr.mxu0 0.0
    %3276 = vmatpush1.msra.mxu0 0.0
    %3277 = vmatprep.subr.mxu0 0.0
    %3278 = vmatpush1.msra.mxu0 0.0
    %3279 = vmatprep.subr.mxu0 0.0
    %3280 = vmatpush1.msra.mxu0 0.0
    %3281 = vmatprep.subr.mxu0 0.0
    %3282 = vmatpush1.msra.mxu0 0.0
    %3283 = vmatprep.subr.mxu0 0.0
    %3284 = vmatpush1.msra.mxu0 0.0
    %3285 = vmatprep.subr.mxu0 0.0
    %3286 = vmatpush1.msra.mxu0 0.0
    %3287 = vmatprep.subr.mxu0 0.0
    %3288 = vmatpush1.msra.mxu0 0.0
    %3289 = vmatprep.subr.mxu0 0.0
    %3290 = vmatpush1.msra.mxu0 0.0
    %3291 = vmatprep.subr.mxu0 0.0
    %3292 = vmatpush1.msra.mxu0 0.0
    %3293 = vmatprep.subr.mxu0 0.0
    %3294 = vmatpush1.msra.mxu0 0.0
    %3295 = vmatprep.subr.mxu0 0.0
    %3296 = vmatpush1.msra.mxu0 0.0
    %3297 = vmatprep.subr.mxu0 0.0
    %3298 = vmatpush1.msra.mxu0 0.0
    %3299 = vmatprep.subr.mxu0 0.0
    %3300 = vmatpush1.msra.mxu0 0.0
    %3301 = vmatprep.subr.mxu0 0.0
    %3302 = vmatpush1.msra.mxu0 0.0
    %3303 = vmatprep.subr.mxu0 0.0
    %3304 = vmatpush1.msra.mxu0 0.0
    %3305 = vmatprep.mubr.f32.mxu0 0.0
    %3306 = vmatmul.mubr.f32.gmra.mrb[0].mxu0 %v3239
    %v3307 = vpop.f32.mrb[0].mxu0
    %v3308 = vadd.f32 0.0, %v3307
    %v3309 = vpop.f32.mrb[0].mxu0
    %3310 = vdwg.mxu0
    %3311 = vrot.lane.b32.xlu0 %v2214, 64
    %v3312 = vpop.permute.xlu0 %3311
    %v3315 = vsel %vm318, %v2928, 0
    %3317 = vmatprep.subr.mxu0 0.0
    %3318 = vmatpush1.msra.mxu0 %v3312
    %3319 = vmatprep.subr.mxu0 0.0
    %3320 = vmatpush1.msra.mxu0 0.0
    %3321 = vmatprep.subr.mxu0 0.0
    %3322 = vmatpush1.msra.mxu0 0.0
    %3323 = vmatprep.subr.mxu0 0.0
    %3324 = vmatpush1.msra.mxu0 0.0
    %3325 = vmatprep.subr.mxu0 0.0
    %3326 = vmatpush1.msra.mxu0 0.0
    %3327 = vmatprep.subr.mxu0 0.0
    %3328 = vmatpush1.msra.mxu0 0.0
    %3329 = vmatprep.subr.mxu0 0.0
    %3330 = vmatpush1.msra.mxu0 0.0
    %3331 = vmatprep.subr.mxu0 0.0
    %3332 = vmatpush1.msra.mxu0 0.0
    %3333 = vmatprep.subr.mxu0 0.0
    %3334 = vmatpush1.msra.mxu0 0.0
    %3335 = vmatprep.subr.mxu0 0.0
    %3336 = vmatpush1.msra.mxu0 0.0
    %3337 = vmatprep.subr.mxu0 0.0
    %3338 = vmatpush1.msra.mxu0 0.0
    %3339 = vmatprep.subr.mxu0 0.0
    %3340 = vmatpush1.msra.mxu0 0.0
    %3341 = vmatprep.subr.mxu0 0.0
    %3342 = vmatpush1.msra.mxu0 0.0
    %3343 = vmatprep.subr.mxu0 0.0
    %3344 = vmatpush1.msra.mxu0 0.0
    %3345 = vmatprep.subr.mxu0 0.0
    %3346 = vmatpush1.msra.mxu0 0.0
    %3347 = vmatprep.subr.mxu0 0.0
    %3348 = vmatpush1.msra.mxu0 0.0
    %3349 = vmatprep.subr.mxu0 0.0
    %3350 = vmatpush1.msra.mxu0 0.0
    %3351 = vmatprep.subr.mxu0 0.0
    %3352 = vmatpush1.msra.mxu0 0.0
    %3353 = vmatprep.subr.mxu0 0.0
    %3354 = vmatpush1.msra.mxu0 0.0
    %3355 = vmatprep.subr.mxu0 0.0
    %3356 = vmatpush1.msra.mxu0 0.0
    %3357 = vmatprep.subr.mxu0 0.0
    %3358 = vmatpush1.msra.mxu0 0.0
    %3359 = vmatprep.subr.mxu0 0.0
    %3360 = vmatpush1.msra.mxu0 0.0
    %3361 = vmatprep.subr.mxu0 0.0
    %3362 = vmatpush1.msra.mxu0 0.0
    %3363 = vmatprep.subr.mxu0 0.0
    %3364 = vmatpush1.msra.mxu0 0.0
    %3365 = vmatprep.subr.mxu0 0.0
    %3366 = vmatpush1.msra.mxu0 0.0
    %3367 = vmatprep.subr.mxu0 0.0
    %3368 = vmatpush1.msra.mxu0 0.0
    %3369 = vmatprep.subr.mxu0 0.0
    %3370 = vmatpush1.msra.mxu0 0.0
    %3371 = vmatprep.subr.mxu0 0.0
    %3372 = vmatpush1.msra.mxu0 0.0
    %3373 = vmatprep.subr.mxu0 0.0
    %3374 = vmatpush1.msra.mxu0 0.0
    %3375 = vmatprep.subr.mxu0 0.0
    %3376 = vmatpush1.msra.mxu0 0.0
    %3377 = vmatprep.subr.mxu0 0.0
    %3378 = vmatpush1.msra.mxu0 0.0
    %3379 = vmatprep.subr.mxu0 0.0
    %3380 = vmatpush1.msra.mxu0 0.0
    %3381 = vmatprep.mubr.f32.mxu0 0.0
    %3382 = vmatmul.mubr.f32.gmra.mrb[0].mxu0 %v3315
    %v3383 = vpop.f32.mrb[0].mxu0
    %v3384 = vadd.f32 0.0, %v3383
    %v3385 = vpop.f32.mrb[0].mxu0
    %3386 = vdwg.mxu0
    %3387 = vrot.lane.b32.xlu0 %v2216, 64
    %v3388 = vpop.permute.xlu0 %3387
    %v3391 = vsel %vm318, %v2929, 0
    %3393 = vmatprep.subr.mxu0 0.0
    %3394 = vmatpush1.msra.mxu0 %v3388
    %3395 = vmatprep.subr.mxu0 0.0
    %3396 = vmatpush1.msra.mxu0 0.0
    %3397 = vmatprep.subr.mxu0 0.0
    %3398 = vmatpush1.msra.mxu0 0.0
    %3399 = vmatprep.subr.mxu0 0.0
    %3400 = vmatpush1.msra.mxu0 0.0
    %3401 = vmatprep.subr.mxu0 0.0
    %3402 = vmatpush1.msra.mxu0 0.0
    %3403 = vmatprep.subr.mxu0 0.0
    %3404 = vmatpush1.msra.mxu0 0.0
    %3405 = vmatprep.subr.mxu0 0.0
    %3406 = vmatpush1.msra.mxu0 0.0
    %3407 = vmatprep.subr.mxu0 0.0
    %3408 = vmatpush1.msra.mxu0 0.0
    %3409 = vmatprep.subr.mxu0 0.0
    %3410 = vmatpush1.msra.mxu0 0.0
    %3411 = vmatprep.subr.mxu0 0.0
    %3412 = vmatpush1.msra.mxu0 0.0
    %3413 = vmatprep.subr.mxu0 0.0
    %3414 = vmatpush1.msra.mxu0 0.0
    %3415 = vmatprep.subr.mxu0 0.0
    %3416 = vmatpush1.msra.mxu0 0.0
    %3417 = vmatprep.subr.mxu0 0.0
    %3418 = vmatpush1.msra.mxu0 0.0
    %3419 = vmatprep.subr.mxu0 0.0
    %3420 = vmatpush1.msra.mxu0 0.0
    %3421 = vmatprep.subr.mxu0 0.0
    %3422 = vmatpush1.msra.mxu0 0.0
    %3423 = vmatprep.subr.mxu0 0.0
    %3424 = vmatpush1.msra.mxu0 0.0
    %3425 = vmatprep.subr.mxu0 0.0
    %3426 = vmatpush1.msra.mxu0 0.0
    %3427 = vmatprep.subr.mxu0 0.0
    %3428 = vmatpush1.msra.mxu0 0.0
    %3429 = vmatprep.subr.mxu0 0.0
    %3430 = vmatpush1.msra.mxu0 0.0
    %3431 = vmatprep.subr.mxu0 0.0
    %3432 = vmatpush1.msra.mxu0 0.0
    %3433 = vmatprep.subr.mxu0 0.0
    %3434 = vmatpush1.msra.mxu0 0.0
    %3435 = vmatprep.subr.mxu0 0.0
    %3436 = vmatpush1.msra.mxu0 0.0
    %3437 = vmatprep.subr.mxu0 0.0
    %3438 = vmatpush1.msra.mxu0 0.0
    %3439 = vmatprep.subr.mxu0 0.0
    %3440 = vmatpush1.msra.mxu0 0.0
    %3441 = vmatprep.subr.mxu0 0.0
    %3442 = vmatpush1.msra.mxu0 0.0
    %3443 = vmatprep.subr.mxu0 0.0
    %3444 = vmatpush1.msra.mxu0 0.0
    %3445 = vmatprep.subr.mxu0 0.0
    %3446 = vmatpush1.msra.mxu0 0.0
    %3447 = vmatprep.subr.mxu0 0.0
    %3448 = vmatpush1.msra.mxu0 0.0
    %3449 = vmatprep.subr.mxu0 0.0
    %3450 = vmatpush1.msra.mxu0 0.0
    %3451 = vmatprep.subr.mxu0 0.0
    %3452 = vmatpush1.msra.mxu0 0.0
    %3453 = vmatprep.subr.mxu0 0.0
    %3454 = vmatpush1.msra.mxu0 0.0
    %3455 = vmatprep.subr.mxu0 0.0
    %3456 = vmatpush1.msra.mxu0 0.0
    %3457 = vmatprep.mubr.f32.mxu0 0.0
    %3458 = vmatmul.mubr.f32.gmra.mrb[0].mxu0 %v3391
    %v3459 = vpop.f32.mrb[0].mxu0
    %v3460 = vadd.f32 0.0, %v3459
    %v3461 = vpop.f32.mrb[0].mxu0
    %3462 = vdwg.mxu0
    %3463 = vrot.lane.b32.xlu0 %v2218, 64
    %v3464 = vpop.permute.xlu0 %3463
    %v3467 = vsel %vm318, %v2930, 0
    %3469 = vmatprep.subr.mxu0 0.0
    %3470 = vmatpush1.msra.mxu0 %v3464
    %3471 = vmatprep.subr.mxu0 0.0
    %3472 = vmatpush1.msra.mxu0 0.0
    %3473 = vmatprep.subr.mxu0 0.0
    %3474 = vmatpush1.msra.mxu0 0.0
    %3475 = vmatprep.subr.mxu0 0.0
    %3476 = vmatpush1.msra.mxu0 0.0
    %3477 = vmatprep.subr.mxu0 0.0
    %3478 = vmatpush1.msra.mxu0 0.0
    %3479 = vmatprep.subr.mxu0 0.0
    %3480 = vmatpush1.msra.mxu0 0.0
    %3481 = vmatprep.subr.mxu0 0.0
    %3482 = vmatpush1.msra.mxu0 0.0
    %3483 = vmatprep.subr.mxu0 0.0
    %3484 = vmatpush1.msra.mxu0 0.0
    %3485 = vmatprep.subr.mxu0 0.0
    %3486 = vmatpush1.msra.mxu0 0.0
    %3487 = vmatprep.subr.mxu0 0.0
    %3488 = vmatpush1.msra.mxu0 0.0
    %3489 = vmatprep.subr.mxu0 0.0
    %3490 = vmatpush1.msra.mxu0 0.0
    %3491 = vmatprep.subr.mxu0 0.0
    %3492 = vmatpush1.msra.mxu0 0.0
    %3493 = vmatprep.subr.mxu0 0.0
    %3494 = vmatpush1.msra.mxu0 0.0
    %3495 = vmatprep.subr.mxu0 0.0
    %3496 = vmatpush1.msra.mxu0 0.0
    %3497 = vmatprep.subr.mxu0 0.0
    %3498 = vmatpush1.msra.mxu0 0.0
    %3499 = vmatprep.subr.mxu0 0.0
    %3500 = vmatpush1.msra.mxu0 0.0
    %3501 = vmatprep.subr.mxu0 0.0
    %3502 = vmatpush1.msra.mxu0 0.0
    %3503 = vmatprep.subr.mxu0 0.0
    %3504 = vmatpush1.msra.mxu0 0.0
    %3505 = vmatprep.subr.mxu0 0.0
    %3506 = vmatpush1.msra.mxu0 0.0
    %3507 = vmatprep.subr.mxu0 0.0
    %3508 = vmatpush1.msra.mxu0 0.0
    %3509 = vmatprep.subr.mxu0 0.0
    %3510 = vmatpush1.msra.mxu0 0.0
    %3511 = vmatprep.subr.mxu0 0.0
    %3512 = vmatpush1.msra.mxu0 0.0
    %3513 = vmatprep.subr.mxu0 0.0
    %3514 = vmatpush1.msra.mxu0 0.0
    %3515 = vmatprep.subr.mxu0 0.0
    %3516 = vmatpush1.msra.mxu0 0.0
    %3517 = vmatprep.subr.mxu0 0.0
    %3518 = vmatpush1.msra.mxu0 0.0
    %3519 = vmatprep.subr.mxu0 0.0
    %3520 = vmatpush1.msra.mxu0 0.0
    %3521 = vmatprep.subr.mxu0 0.0
    %3522 = vmatpush1.msra.mxu0 0.0
    %3523 = vmatprep.subr.mxu0 0.0
    %3524 = vmatpush1.msra.mxu0 0.0
    %3525 = vmatprep.subr.mxu0 0.0
    %3526 = vmatpush1.msra.mxu0 0.0
    %3527 = vmatprep.subr.mxu0 0.0
    %3528 = vmatpush1.msra.mxu0 0.0
    %3529 = vmatprep.subr.mxu0 0.0
    %3530 = vmatpush1.msra.mxu0 0.0
    %3531 = vmatprep.subr.mxu0 0.0
    %3532 = vmatpush1.msra.mxu0 0.0
    %3533 = vmatprep.mubr.f32.mxu0 0.0
    %3534 = vmatmul.mubr.f32.gmra.mrb[0].mxu0 %v3467
    %v3535 = vpop.f32.mrb[0].mxu0
    %v3536 = vadd.f32 0.0, %v3535
    %v3537 = vpop.f32.mrb[0].mxu0
    %3538 = vdwg.mxu0
    %3540 = vrot.lane.b32.xlu0 %v3080, 8
    %v3541 = vpop.permute.xlu0 %3540
    %3544 = vrot.lane.b32.xlu0 %v3156, 16
    %v3545 = vpop.permute.xlu0 %3544
    %3548 = vrot.lane.b32.xlu0 %v3232, 24
    %v3549 = vpop.permute.xlu0 %3548
    %v3551 = vsel %vm318, %v3004, %v3541
    %v3552 = vsel %vm1650, %v3551, %v3545
    %v3553 = vsel %vm1652, %v3552, %v3549
    %3555 = vrot.lane.b32.xlu0 %v3384, 8
    %v3556 = vpop.permute.xlu0 %3555
    %3559 = vrot.lane.b32.xlu0 %v3460, 16
    %v3560 = vpop.permute.xlu0 %3559
    %3563 = vrot.lane.b32.xlu0 %v3536, 24
    %v3564 = vpop.permute.xlu0 %3563
    %v3566 = vsel %vm318, %v3308, %v3556
    %v3567 = vsel %vm1650, %v3566, %v3560
    %v3568 = vsel %vm1652, %v3567, %v3564
    %v3570 = vsel %vm113, %v3553, 0
    %v3573 = vsel %vm113, %v3568, 0
    %3575 = vmatprep.subr.mxu0 0.0
    %3576 = vmatpush1.msra.mxu0 %v1995
    %3577 = vmatprep.subr.mxu0 0.0
    %3578 = vmatpush1.msra.mxu0 %v1996
    %3579 = vmatprep.subr.mxu0 0.0
    %3580 = vmatpush1.msra.mxu0 %v1997
    %3581 = vmatprep.subr.mxu0 0.0
    %3582 = vmatpush1.msra.mxu0 %v1998
    %3583 = vmatprep.subr.mxu0 0.0
    %3584 = vmatpush1.msra.mxu0 0.0
    %3585 = vmatprep.subr.mxu0 0.0
    %3586 = vmatpush1.msra.mxu0 0.0
    %3587 = vmatprep.subr.mxu0 0.0
    %3588 = vmatpush1.msra.mxu0 0.0
    %3589 = vmatprep.subr.mxu0 0.0
    %3590 = vmatpush1.msra.mxu0 0.0
    %3591 = vmatprep.subr.mxu0 0.0
    %3592 = vmatpush1.msra.mxu0 0.0
    %3593 = vmatprep.subr.mxu0 0.0
    %3594 = vmatpush1.msra.mxu0 0.0
    %3595 = vmatprep.subr.mxu0 0.0
    %3596 = vmatpush1.msra.mxu0 0.0
    %3597 = vmatprep.subr.mxu0 0.0
    %3598 = vmatpush1.msra.mxu0 0.0
    %3599 = vmatprep.subr.mxu0 0.0
    %3600 = vmatpush1.msra.mxu0 0.0
    %3601 = vmatprep.subr.mxu0 0.0
    %3602 = vmatpush1.msra.mxu0 0.0
    %3603 = vmatprep.subr.mxu0 0.0
    %3604 = vmatpush1.msra.mxu0 0.0
    %3605 = vmatprep.subr.mxu0 0.0
    %3606 = vmatpush1.msra.mxu0 0.0
    %3607 = vmatprep.subr.mxu0 0.0
    %3608 = vmatpush1.msra.mxu0 0.0
    %3609 = vmatprep.subr.mxu0 0.0
    %3610 = vmatpush1.msra.mxu0 0.0
    %3611 = vmatprep.subr.mxu0 0.0
    %3612 = vmatpush1.msra.mxu0 0.0
    %3613 = vmatprep.subr.mxu0 0.0
    %3614 = vmatpush1.msra.mxu0 0.0
    %3615 = vmatprep.subr.mxu0 0.0
    %3616 = vmatpush1.msra.mxu0 0.0
    %3617 = vmatprep.subr.mxu0 0.0
    %3618 = vmatpush1.msra.mxu0 0.0
    %3619 = vmatprep.subr.mxu0 0.0
    %3620 = vmatpush1.msra.mxu0 0.0
    %3621 = vmatprep.subr.mxu0 0.0
    %3622 = vmatpush1.msra.mxu0 0.0
    %3623 = vmatprep.subr.mxu0 0.0
    %3624 = vmatpush1.msra.mxu0 0.0
    %3625 = vmatprep.subr.mxu0 0.0
    %3626 = vmatpush1.msra.mxu0 0.0
    %3627 = vmatprep.subr.mxu0 0.0
    %3628 = vmatpush1.msra.mxu0 0.0
    %3629 = vmatprep.subr.mxu0 0.0
    %3630 = vmatpush1.msra.mxu0 0.0
    %3631 = vmatprep.subr.mxu0 0.0
    %3632 = vmatpush1.msra.mxu0 0.0
    %3633 = vmatprep.subr.mxu0 0.0
    %3634 = vmatpush1.msra.mxu0 0.0
    %3635 = vmatprep.subr.mxu0 0.0
    %3636 = vmatpush1.msra.mxu0 0.0
    %3637 = vmatprep.subr.mxu0 0.0
    %3638 = vmatpush1.msra.mxu0 0.0
    %3639 = vmatprep.mubr.f32.mxu0 0.0
    %3640 = vmatmul.mubr.f32.gmra.mrb[0].mxu0 %v3570
    %v3641 = vpop.f32.mrb[0].mxu0
    %v3642 = vadd.f32 0.0, %v3641
    %v3643 = vpop.f32.mrb[0].mxu0
    %3644 = vmatprep.mubr.f32.mxu0 0.0
    %3645 = vmatmul.mubr.f32.gmra.mrb[0].mxu0 %v3573
    %v3646 = vpop.f32.mrb[0].mxu0
    %v3647 = vadd.f32 0.0, %v3646
    %v3648 = vpop.f32.mrb[0].mxu0
    %3649 = vdwg.mxu0
    %v3650 = vadd.f32 %v1987, %v3642
    %v3651 = vadd.f32 %v1988, %v3647
    %v3652 = vlaneseq
    %v3653 = vshrl.u32 %v3652, 7
    %v3654 = vsub.s32 3, %v3653
    %v3655 = vrot.slane %v2014, %v3654
    %v3656 = vadd.f32 %v3650, %v3655
    %v3657 = vadd.f32 %v3651, %v3655
    %v3658 = vsel %vm113, %v3656, 0.0
    %3659 = vadd.xlane.f32.xlu0 %v3658
    %v3660 = vpop.xlane.xlu0 %3659
    %v3661 = vsel %vm113, %v3657, 0.0
    %3662 = vadd.xlane.f32.xlu0 %v3661
    %v3663 = vpop.xlane.xlu0 %3662
    %v3664 = vmul.f32 %v3660, %v120
    %v3665 = vmul.f32 %v3663, %v120
    %v3666 = vsub.f32 %v3656, %v3664
    %v3667 = vsub.f32 %v3657, %v3665
    %v3668 = vmul.f32 %v3666, %v3666
    %v3669 = vmul.f32 %v3667, %v3667
    %v3670 = vsel %vm113, %v3668, 0.0
    %3671 = vadd.xlane.f32.xlu0 %v3670
    %v3672 = vpop.xlane.xlu0 %3671
    %v3673 = vsel %vm113, %v3669, 0.0
    %3674 = vadd.xlane.f32.xlu0 %v3673
    %v3675 = vpop.xlane.xlu0 %3674
    %v3676 = vmul.f32 %v3672, 0.032258064
    %v3677 = vmul.f32 %v3675, 0.032258064
    %v3678 = vrsqrt.pop %v3676
    %v3679 = vmul.f32 %v3676, %v3678
    %vm3680 = vcmp.eq.f32.partialorder %v3676, inf
    %v3681 = vsel %vm3680, %v3676, %v3679
    %vm3682 = vcmp.eq.f32.partialorder %v3676, 0.0
    %v3683 = vand.u32 %v3676, 2147483648
    %v3684 = vsel %vm3682, %v3683, %v3681
    %v3685 = vrsqrt.pop %v3677
    %v3686 = vmul.f32 %v3677, %v3685
    %vm3687 = vcmp.eq.f32.partialorder %v3677, inf
    %v3688 = vsel %vm3687, %v3677, %v3686
    %vm3689 = vcmp.eq.f32.partialorder %v3677, 0.0
    %v3690 = vand.u32 %v3677, 2147483648
    %v3691 = vsel %vm3689, %v3690, %v3688
    %v3692 = vadd.f32 %v3684, 1e-06
    %v3693 = vadd.f32 %v3691, 1e-06
    %v3694 = vrcp.pop %v3692
    %v3695 = vrcp.pop %v3693
    %v3696 = vmul.f32 %v3666, %v3694
    %v3697 = vmul.f32 %v3667, %v3695
    %v3698 = vlaneseq
    %v3699 = vshrl.u32 %v3698, 7
    %v3700 = vsub.s32 7, %v3699
    %v3701 = vrot.slane %v2014, %v3700
    %v3702 = vmul.f32 %v3701, %v3696
    %v3703 = vmul.f32 %v3701, %v3697
    %v3704 = vlaneseq
    %v3705 = vshrl.u32 %v3704, 7
    %v3706 = vsub.s32 0, %v3705
    %v3707 = vrot.slane %v2015, %v3706
    %v3708 = vadd.f32 %v3702, %v3707
    %v3709 = vadd.f32 %v3703, %v3707
    %v3711 = vlaneseq
    %v3712 = vshrl.u32 %v3711, 7
    %v3713 = vsub.s32 0, %v3712
    %v3714 = vrot.slane %v2017, %v3713
    %v3717 = vsel %vm113, %v3708, 0
    %v3720 = vsel %vm113, %v3709, 0
    %3722 = vmatprep.subr.mxu0 0.0
    %3723 = vmatpush1.msra.mxu0 %v2000
    %3724 = vmatprep.subr.mxu0 0.0
    %3725 = vmatpush1.msra.mxu0 %v2001
    %3726 = vmatprep.subr.mxu0 0.0
    %3727 = vmatpush1.msra.mxu0 %v2002
    %3728 = vmatprep.subr.mxu0 0.0
    %3729 = vmatpush1.msra.mxu0 %v2003
    %3730 = vmatprep.subr.mxu0 0.0
    %3731 = vmatpush1.msra.mxu0 0.0
    %3732 = vmatprep.subr.mxu0 0.0
    %3733 = vmatpush1.msra.mxu0 0.0
    %3734 = vmatprep.subr.mxu0 0.0
    %3735 = vmatpush1.msra.mxu0 0.0
    %3736 = vmatprep.subr.mxu0 0.0
    %3737 = vmatpush1.msra.mxu0 0.0
    %3738 = vmatprep.subr.mxu0 0.0
    %3739 = vmatpush1.msra.mxu0 0.0
    %3740 = vmatprep.subr.mxu0 0.0
    %3741 = vmatpush1.msra.mxu0 0.0
    %3742 = vmatprep.subr.mxu0 0.0
    %3743 = vmatpush1.msra.mxu0 0.0
    %3744 = vmatprep.subr.mxu0 0.0
    %3745 = vmatpush1.msra.mxu0 0.0
    %3746 = vmatprep.subr.mxu0 0.0
    %3747 = vmatpush1.msra.mxu0 0.0
    %3748 = vmatprep.subr.mxu0 0.0
    %3749 = vmatpush1.msra.mxu0 0.0
    %3750 = vmatprep.subr.mxu0 0.0
    %3751 = vmatpush1.msra.mxu0 0.0
    %3752 = vmatprep.subr.mxu0 0.0
    %3753 = vmatpush1.msra.mxu0 0.0
    %3754 = vmatprep.subr.mxu0 0.0
    %3755 = vmatpush1.msra.mxu0 0.0
    %3756 = vmatprep.subr.mxu0 0.0
    %3757 = vmatpush1.msra.mxu0 0.0
    %3758 = vmatprep.subr.mxu0 0.0
    %3759 = vmatpush1.msra.mxu0 0.0
    %3760 = vmatprep.subr.mxu0 0.0
    %3761 = vmatpush1.msra.mxu0 0.0
    %3762 = vmatprep.subr.mxu0 0.0
    %3763 = vmatpush1.msra.mxu0 0.0
    %3764 = vmatprep.subr.mxu0 0.0
    %3765 = vmatpush1.msra.mxu0 0.0
    %3766 = vmatprep.subr.mxu0 0.0
    %3767 = vmatpush1.msra.mxu0 0.0
    %3768 = vmatprep.subr.mxu0 0.0
    %3769 = vmatpush1.msra.mxu0 0.0
    %3770 = vmatprep.subr.mxu0 0.0
    %3771 = vmatpush1.msra.mxu0 0.0
    %3772 = vmatprep.subr.mxu0 0.0
    %3773 = vmatpush1.msra.mxu0 0.0
    %3774 = vmatprep.subr.mxu0 0.0
    %3775 = vmatpush1.msra.mxu0 0.0
    %3776 = vmatprep.subr.mxu0 0.0
    %3777 = vmatpush1.msra.mxu0 0.0
    %3778 = vmatprep.subr.mxu0 0.0
    %3779 = vmatpush1.msra.mxu0 0.0
    %3780 = vmatprep.subr.mxu0 0.0
    %3781 = vmatpush1.msra.mxu0 0.0
    %3782 = vmatprep.subr.mxu0 0.0
    %3783 = vmatpush1.msra.mxu0 0.0
    %3784 = vmatprep.subr.mxu0 0.0
    %3785 = vmatpush1.msra.mxu0 0.0
    %3786 = vmatprep.mubr.f32.mxu0 0.0
    %3787 = vmatmul.mubr.f32.gmra.mrb[0].mxu0 %v3717
    %v3788 = vpop.f32.mrb[0].mxu0
    %v3789 = vadd.f32 %v3714, %v3788
    %v3790 = vpop.f32.mrb[0].mxu0
    %3791 = vmatprep.mubr.f32.mxu0 0.0
    %3792 = vmatmul.mubr.f32.gmra.mrb[0].mxu0 %v3720
    %v3793 = vpop.f32.mrb[0].mxu0
    %v3794 = vadd.f32 %v3714, %v3793
    %v3795 = vpop.f32.mrb[0].mxu0
    %3796 = vdwg.mxu0
    %v3797 = vmax.f32 %v3789, 0.0
    %v3798 = vmax.f32 %v3794, 0.0
    %v3800 = vsel %vm1899, %v3797, 0
    %v3803 = vsel %vm1899, %v3798, 0
    %3805 = vmatprep.subr.mxu0 0.0
    %3806 = vmatpush1.msra.mxu0 %v2005
    %3807 = vmatprep.subr.mxu0 0.0
    %3808 = vmatpush1.msra.mxu0 %v2006
    %3809 = vmatprep.subr.mxu0 0.0
    %3810 = vmatpush1.msra.mxu0 %v2007
    %3811 = vmatprep.subr.mxu0 0.0
    %3812 = vmatpush1.msra.mxu0 %v2008
    %3813 = vmatprep.subr.mxu0 0.0
    %3814 = vmatpush1.msra.mxu0 %v2009
    %3815 = vmatprep.subr.mxu0 0.0
    %3816 = vmatpush1.msra.mxu0 %v2010
    %3817 = vmatprep.subr.mxu0 0.0
    %3818 = vmatpush1.msra.mxu0 %v2011
    %3819 = vmatprep.subr.mxu0 0.0
    %3820 = vmatpush1.msra.mxu0 %v2012
    %3821 = vmatprep.subr.mxu0 0.0
    %3822 = vmatpush1.msra.mxu0 0.0
    %3823 = vmatprep.subr.mxu0 0.0
    %3824 = vmatpush1.msra.mxu0 0.0
    %3825 = vmatprep.subr.mxu0 0.0
    %3826 = vmatpush1.msra.mxu0 0.0
    %3827 = vmatprep.subr.mxu0 0.0
    %3828 = vmatpush1.msra.mxu0 0.0
    %3829 = vmatprep.subr.mxu0 0.0
    %3830 = vmatpush1.msra.mxu0 0.0
    %3831 = vmatprep.subr.mxu0 0.0
    %3832 = vmatpush1.msra.mxu0 0.0
    %3833 = vmatprep.subr.mxu0 0.0
    %3834 = vmatpush1.msra.mxu0 0.0
    %3835 = vmatprep.subr.mxu0 0.0
    %3836 = vmatpush1.msra.mxu0 0.0
    %3837 = vmatprep.subr.mxu0 0.0
    %3838 = vmatpush1.msra.mxu0 0.0
    %3839 = vmatprep.subr.mxu0 0.0
    %3840 = vmatpush1.msra.mxu0 0.0
    %3841 = vmatprep.subr.mxu0 0.0
    %3842 = vmatpush1.msra.mxu0 0.0
    %3843 = vmatprep.subr.mxu0 0.0
    %3844 = vmatpush1.msra.mxu0 0.0
    %3845 = vmatprep.subr.mxu0 0.0
    %3846 = vmatpush1.msra.mxu0 0.0
    %3847 = vmatprep.subr.mxu0 0.0
    %3848 = vmatpush1.msra.mxu0 0.0
    %3849 = vmatprep.subr.mxu0 0.0
    %3850 = vmatpush1.msra.mxu0 0.0
    %3851 = vmatprep.subr.mxu0 0.0
    %3852 = vmatpush1.msra.mxu0 0.0
    %3853 = vmatprep.subr.mxu0 0.0
    %3854 = vmatpush1.msra.mxu0 0.0
    %3855 = vmatprep.subr.mxu0 0.0
    %3856 = vmatpush1.msra.mxu0 0.0
    %3857 = vmatprep.subr.mxu0 0.0
    %3858 = vmatpush1.msra.mxu0 0.0
    %3859 = vmatprep.subr.mxu0 0.0
    %3860 = vmatpush1.msra.mxu0 0.0
    %3861 = vmatprep.subr.mxu0 0.0
    %3862 = vmatpush1.msra.mxu0 0.0
    %3863 = vmatprep.subr.mxu0 0.0
    %3864 = vmatpush1.msra.mxu0 0.0
    %3865 = vmatprep.subr.mxu0 0.0
    %3866 = vmatpush1.msra.mxu0 0.0
    %3867 = vmatprep.subr.mxu0 0.0
    %3868 = vmatpush1.msra.mxu0 0.0
    %3869 = vmatprep.mubr.f32.mxu0 0.0
    %3870 = vmatmul.mubr.f32.gmra.mrb[0].mxu0 %v3800
    %v3871 = vpop.f32.mrb[0].mxu0
    %v3872 = vadd.f32 0.0, %v3871
    %v3873 = vpop.f32.mrb[0].mxu0
    %3874 = vmatprep.mubr.f32.mxu0 0.0
    %3875 = vmatmul.mubr.f32.gmra.mrb[0].mxu0 %v3803
    %v3876 = vpop.f32.mrb[0].mxu0
    %v3877 = vadd.f32 0.0, %v3876
    %v3878 = vpop.f32.mrb[0].mxu0
    %3879 = vdwg.mxu0
    %v3880 = vadd.f32 %v3656, %v3872
    %v3881 = vadd.f32 %v3657, %v3877
    %v3882 = vlaneseq
    %v3883 = vshrl.u32 %v3882, 7
    %v3884 = vsub.s32 4, %v3883
    %v3885 = vrot.slane %v2014, %v3884
    %v3886 = vadd.f32 %v3880, %v3885
    %v3887 = vadd.f32 %v3881, %v3885
    %v3888 = vld [vmem:[%s8] sm:$0x3]
    %v3889 = vsel %vm113, %v3886, 0.0
    %3890 = vadd.xlane.f32.xlu0 %v3889
    %v3891 = vpop.xlane.xlu0 %3890
    %v3892 = vsel %vm113, %v3887, 0.0
    %3893 = vadd.xlane.f32.xlu0 %v3892
    %v3894 = vpop.xlane.xlu0 %3893
    %v3895 = vmul.f32 %v3891, %v120
    %v3896 = vmul.f32 %v3894, %v120
    %v3897 = vsub.f32 %v3886, %v3895
    %v3898 = vsub.f32 %v3887, %v3896
    %v3899 = vmul.f32 %v3897, %v3897
    %v3900 = vmul.f32 %v3898, %v3898
    %v3901 = vsel %vm113, %v3899, 0.0
    %3902 = vadd.xlane.f32.xlu0 %v3901
    %v3903 = vpop.xlane.xlu0 %3902
    %v3904 = vsel %vm113, %v3900, 0.0
    %3905 = vadd.xlane.f32.xlu0 %v3904
    %v3906 = vpop.xlane.xlu0 %3905
    %v3907 = vmul.f32 %v3903, 0.032258064
    %v3908 = vmul.f32 %v3906, 0.032258064
    %v3909 = vrsqrt.pop %v3907
    %v3910 = vmul.f32 %v3907, %v3909
    %vm3911 = vcmp.eq.f32.partialorder %v3907, inf
    %v3912 = vsel %vm3911, %v3907, %v3910
    %vm3913 = vcmp.eq.f32.partialorder %v3907, 0.0
    %v3914 = vand.u32 %v3907, 2147483648
    %v3915 = vsel %vm3913, %v3914, %v3912
    %v3916 = vrsqrt.pop %v3908
    %v3917 = vmul.f32 %v3908, %v3916
    %vm3918 = vcmp.eq.f32.partialorder %v3908, inf
    %v3919 = vsel %vm3918, %v3908, %v3917
    %vm3920 = vcmp.eq.f32.partialorder %v3908, 0.0
    %v3921 = vand.u32 %v3908, 2147483648
    %v3922 = vsel %vm3920, %v3921, %v3919
    %v3923 = vadd.f32 %v3915, 1e-06
    %v3924 = vadd.f32 %v3922, 1e-06
    %v3925 = vrcp.pop %v3923
    %v3926 = vrcp.pop %v3924
    %v3927 = vmul.f32 %v3897, %v3925
    %v3928 = vmul.f32 %v3898, %v3926
    %v3929 = vlaneseq
    %v3930 = vshrl.u32 %v3929, 7
    %v3931 = vsub.s32 0, %v3930
    %v3932 = vrot.slane %v3888, %v3931
    %v3933 = vmul.f32 %v3932, %v3927
    %v3934 = vmul.f32 %v3932, %v3928
    %v3935 = vlaneseq
    %v3936 = vshrl.u32 %v3935, 7
    %v3937 = vsub.s32 1, %v3936
    %v3938 = vrot.slane %v3888, %v3937
    %v3939 = vadd.f32 %v3933, %v3938
    %v3940 = vadd.f32 %v3934, %v3938
    %v3941 = vld [vmem:[#allocation7] sm:$0xff]
    %v3942 = vld [vmem:[#allocation7 + $0x8] sm:$0xff]
    %v3943 = vld [vmem:[#allocation7 + $0x10] sm:$0xff]
    %v3944 = vld [vmem:[#allocation7 + $0x18] sm:$0xff]
    %v3945 = vld [vmem:[%s10] sm:$0x1]
    %v3947 = vlaneseq
    %v3948 = vshrl.u32 %v3947, 7
    %v3949 = vsub.s32 0, %v3948
    %v3950 = vrot.slane %v3945, %v3949
    %v3953 = vsel %vm113, %v3939, 0
    %v3956 = vsel %vm113, %v3940, 0
    %3958 = vmatprep.subr.mxu0 0.0
    %3959 = vmatpush1.msra.mxu0 %v3941
    %3960 = vmatprep.subr.mxu0 0.0
    %3961 = vmatpush1.msra.mxu0 %v3942
    %3962 = vmatprep.subr.mxu0 0.0
    %3963 = vmatpush1.msra.mxu0 %v3943
    %3964 = vmatprep.subr.mxu0 0.0
    %3965 = vmatpush1.msra.mxu0 %v3944
    %3966 = vmatprep.subr.mxu0 0.0
    %3967 = vmatpush1.msra.mxu0 0.0
    %3968 = vmatprep.subr.mxu0 0.0
    %3969 = vmatpush1.msra.mxu0 0.0
    %3970 = vmatprep.subr.mxu0 0.0
    %3971 = vmatpush1.msra.mxu0 0.0
    %3972 = vmatprep.subr.mxu0 0.0
    %3973 = vmatpush1.msra.mxu0 0.0
    %3974 = vmatprep.subr.mxu0 0.0
    %3975 = vmatpush1.msra.mxu0 0.0
    %3976 = vmatprep.subr.mxu0 0.0
    %3977 = vmatpush1.msra.mxu0 0.0
    %3978 = vmatprep.subr.mxu0 0.0
    %3979 = vmatpush1.msra.mxu0 0.0
    %3980 = vmatprep.subr.mxu0 0.0
    %3981 = vmatpush1.msra.mxu0 0.0
    %3982 = vmatprep.subr.mxu0 0.0
    %3983 = vmatpush1.msra.mxu0 0.0
    %3984 = vmatprep.subr.mxu0 0.0
    %3985 = vmatpush1.msra.mxu0 0.0
    %3986 = vmatprep.subr.mxu0 0.0
    %3987 = vmatpush1.msra.mxu0 0.0
    %3988 = vmatprep.subr.mxu0 0.0
    %3989 = vmatpush1.msra.mxu0 0.0
    %3990 = vmatprep.subr.mxu0 0.0
    %3991 = vmatpush1.msra.mxu0 0.0
    %3992 = vmatprep.subr.mxu0 0.0
    %3993 = vmatpush1.msra.mxu0 0.0
    %3994 = vmatprep.subr.mxu0 0.0
    %3995 = vmatpush1.msra.mxu0 0.0
    %3996 = vmatprep.subr.mxu0 0.0
    %3997 = vmatpush1.msra.mxu0 0.0
    %3998 = vmatprep.subr.mxu0 0.0
    %3999 = vmatpush1.msra.mxu0 0.0
    %4000 = vmatprep.subr.mxu0 0.0
    %4001 = vmatpush1.msra.mxu0 0.0
    %4002 = vmatprep.subr.mxu0 0.0
    %4003 = vmatpush1.msra.mxu0 0.0
    %4004 = vmatprep.subr.mxu0 0.0
    %4005 = vmatpush1.msra.mxu0 0.0
    %4006 = vmatprep.subr.mxu0 0.0
    %4007 = vmatpush1.msra.mxu0 0.0
    %4008 = vmatprep.subr.mxu0 0.0
    %4009 = vmatpush1.msra.mxu0 0.0
    %4010 = vmatprep.subr.mxu0 0.0
    %4011 = vmatpush1.msra.mxu0 0.0
    %4012 = vmatprep.subr.mxu0 0.0
    %4013 = vmatpush1.msra.mxu0 0.0
    %4014 = vmatprep.subr.mxu0 0.0
    %4015 = vmatpush1.msra.mxu0 0.0
    %4016 = vmatprep.subr.mxu0 0.0
    %4017 = vmatpush1.msra.mxu0 0.0
    %4018 = vmatprep.subr.mxu0 0.0
    %4019 = vmatpush1.msra.mxu0 0.0
    %4020 = vmatprep.subr.mxu0 0.0
    %4021 = vmatpush1.msra.mxu0 0.0
    %4022 = vmatprep.mubr.f32.mxu0 0.0
    %4023 = vmatmul.mubr.f32.gmra.mrb[0].mxu0 %v3953
    %v4024 = vpop.f32.mrb[0].mxu0
    %v4025 = vadd.f32 %v3950, %v4024
    %v4026 = vpop.f32.mrb[0].mxu0
    %4027 = vmatprep.mubr.f32.mxu0 0.0
    %4028 = vmatmul.mubr.f32.gmra.mrb[0].mxu0 %v3956
    %v4029 = vpop.f32.mrb[0].mxu0
    %v4030 = vadd.f32 %v3950, %v4029
    %v4031 = vpop.f32.mrb[0].mxu0
    %4032 = vdwg.mxu0
    %4033 = vmax.xlane.f32.xlu0 %v4025
    %v4034 = vpop.xlane.xlu0 %4033
    %4035 = vmax.xlane.f32.xlu0 %v4030
    %v4036 = vpop.xlane.xlu0 %4035
    %v4037 = vsub.f32 %v4025, %v4034
    %v4038 = vsub.f32 %v4030, %v4036
    %v4039 = vmul.f32 %v4037, 1.442695
    %v4040 = vpow.pop %v4039
    %v4041 = vmul.f32 %v4038, 1.442695
    %v4042 = vpow.pop %v4041
    %4043 = vadd.xlane.f32.xlu0 %v4040
    %v4044 = vpop.xlane.xlu0 %4043
    %4045 = vadd.xlane.f32.xlu0 %v4042
    %v4046 = vpop.xlane.xlu0 %4045
    %v4047 = vlog2.pop %v4044
    %v4048 = vmul.f32 %v4047, 0.6931472
    %v4049 = vlog2.pop %v4046
    %v4050 = vmul.f32 %v4049, 0.6931472
    %v4051 = vadd.f32 %v4048, %v4034
    %v4052 = vadd.f32 %v4050, %v4036
    %v4053 = vsub.f32 %v4025, %v4051
    %v4054 = vsub.f32 %v4030, %v4052
    %4055 = vst [vmem:[#allocation8] sm:$0xff] %v4053
    %4056 = vst [vmem:[#allocation8 + $0x8] sm:$0xff] %v4054
    // Predicated region
    $region58: #{tpu_custom_call.1} parent=1 // pred_check
      _
    $region59: #{tpu_custom_call.1} parent=1 // pred_check_branch
      %4058 = sbr.rel (0) target = $region61
    $region60: #{tpu_custom_call.1} parent=1 // pred_region
      %s4060 = ssub.s32 256, 256
      %4061 = vsyncadd [#allocation4], %s4060
      %s4062 = sshll.u32 [#allocation8], 4
      %s4063 = int_to_ptr.vmem [resolvable:$true] %s4062
      %4068 = dma.vmem_to_hbm [thread:$0]  %s4063, 256, %s11, [#allocation4], 128, 128, 8
    $region61: #{tpu_custom_call.1} parent=1 // pred_fallthru
      _
    // Predicated region
    $region62: #{tpu_custom_call.1} parent=1 // pred_check
      _
    $region63: #{tpu_custom_call.1} parent=1 // pred_check_branch
      %4070 = sbr.rel (0) target = $region65
    $region64: #{tpu_custom_call.1} parent=1 // pred_region
      %4071 = dma.done [#allocation4], 256
    $region65: #{tpu_custom_call.1} parent=1 // pred_fallthru
      _
    %4072 = vsyncpa [#allocation3], 1
    %4073 = vsyncpa [#allocation6], 1
    %4074 = vsyncpa [#allocation4], 1

</llo_original>
